<compile_context>
chip_gen: v7x
topology: tpu7x:2x2x1
jax: 0.10.0
libtpu: 0.0.40
codegen_flags: <defaults>
</compile_context>

<pallas_src>
import functools

import jax
import jax.numpy as jnp
from jax.experimental import pallas as pl
from jax.experimental.pallas import tpu as pltpu

NEG_SLOPE = 0.01   # torch.nn.LeakyReLU default
LN_EPS = 1e-5      # torch.nn.LayerNorm default

TM_MAX = 4096                        # row tile upper bound (fits VMEM easily at these widths)
VMEM_LIMIT_BYTES = 32 * 1024 * 1024  # explicit scoped-VMEM budget (safe on v5e/v6e/v7x)
LANE = 128                           # lane-dense padding width


def _round_up(x, m):
    return ((x + m - 1) // m) * m


def _cdiv(a, b):
    return -(-a // b)


def _leaky(x):
    return jnp.where(x > 0, x, NEG_SLOPE * x)


def _mlp4_kernel(*refs, n_in, use_ln, res_idx, out_raw):
    """Fused: (sum_i x_i @ w1_i + b1) -> LReLU -> Lin -> LReLU -> Lin -> LReLU
    -> Lin [-> LayerNorm] [-> +residual].  Optionally also writes the
    pre-residual result as a separate (f32) output for aggregation.

    Ref order: x_0..x_{n_in-1}, w1_0..w1_{n_in-1}, b1, w2, b2, w3, b3, w4, b4,
               [gamma, beta], out_refs...
    """
    pos = 0
    x_refs = refs[pos:pos + n_in]; pos += n_in
    w1_refs = refs[pos:pos + n_in]; pos += n_in
    b1, w2, b2, w3, b3, w4, b4 = refs[pos:pos + 7]; pos += 7
    if use_ln:
        g_ref, beta_ref = refs[pos:pos + 2]; pos += 2
    out_refs = refs[pos:]

    # First layer consumes the un-concatenated inputs (w1 pre-split row-wise).
    # Inputs may arrive f32 (raw features / aggregated messages) -> cast here.
    acc = jnp.dot(x_refs[0][...].astype(jnp.bfloat16), w1_refs[0][...],
                  preferred_element_type=jnp.float32)
    for xr, wr in zip(x_refs[1:], w1_refs[1:]):
        acc = acc + jnp.dot(xr[...].astype(jnp.bfloat16), wr[...],
                            preferred_element_type=jnp.float32)
    h = _leaky(acc + b1[...])
    h = _leaky(jnp.dot(h.astype(w2.dtype), w2[...],
                       preferred_element_type=jnp.float32) + b2[...])
    h = _leaky(jnp.dot(h.astype(w3.dtype), w3[...],
                       preferred_element_type=jnp.float32) + b3[...])
    h = jnp.dot(h.astype(w4.dtype), w4[...],
                preferred_element_type=jnp.float32) + b4[...]
    if use_ln:
        mu = jnp.mean(h, axis=-1, keepdims=True)
        var = jnp.mean((h - mu) ** 2, axis=-1, keepdims=True)
        h = (h - mu) * jax.lax.rsqrt(var + LN_EPS)
        h = h * g_ref[...] + beta_ref[...]

    oi = 0
    if out_raw:                       # pre-residual result (raw messages, f32)
        out_refs[oi][...] = h.astype(out_refs[oi].dtype)
        oi += 1
    if res_idx is not None:           # fused residual add (same-width input)
        h = h + x_refs[res_idx][...].astype(jnp.float32)
    out_refs[oi][...] = h.astype(out_refs[oi].dtype)


def fused_mlp4(xs, p, *, use_ln, res_idx=None, out_raw=False,
               out_dtype=jnp.bfloat16, raw_dtype=jnp.float32):
    """Row-tiled fused 4-layer MLP.  xs: list of [N, Din_i] arrays."""
    n = xs[0].shape[0]
    dout = p["w4"].shape[1]

    # Tile selection: as large as possible (amortize ~0.35us/grid-step), but
    # keep >= 2 grid steps when the row count allows so ("parallel",) can
    # shard across v7x's two TensorCores.  16-row alignment for bf16 packing.
    n_al = _round_up(max(n, 1), 16)
    n_tiles = _cdiv(n_al, TM_MAX)
    if n_al >= 32:
        n_tiles = max(n_tiles, 2)
    tm = _round_up(_cdiv(n_al, n_tiles), 16)
    n_pad = _round_up(n, tm)
    grid = n_pad // tm

    def pad_rows(x):
        if x.shape[0] == n_pad:
            return x                          # already tile-aligned: no copy
        return jnp.pad(x, ((0, n_pad - x.shape[0]), (0, 0)))

    xs_p = [pad_rows(x) for x in xs]          # native dtypes; cast in-kernel

    ins = list(xs_p)
    in_specs = [pl.BlockSpec((tm, x.shape[1]), lambda i: (i, 0))
                for x in xs_p]

    weights = list(p["w1s"]) + [p["b1"], p["w2"], p["b2"], p["w3"], p["b3"],
                                p["w4"], p["b4"]]
    if use_ln:
        weights += [p["gamma"], p["beta"]]
    for w in weights:
        ins.append(w)
        # Block index never changes -> weights stay VMEM-resident across tiles.
        in_specs.append(pl.BlockSpec(w.shape, lambda i: (0, 0)))

    dual_out = bool(out_raw and res_idx is not None)
    if dual_out:
        out_shape = (jax.ShapeDtypeStruct((n_pad, dout), raw_dtype),
                     jax.ShapeDtypeStruct((n_pad, dout), out_dtype))
        out_specs = (pl.BlockSpec((tm, dout), lambda i: (i, 0)),
                     pl.BlockSpec((tm, dout), lambda i: (i, 0)))
    else:
        out_shape = jax.ShapeDtypeStruct((n_pad, dout), out_dtype)
        out_specs = pl.BlockSpec((tm, dout), lambda i: (i, 0))

    # Advisory cost estimate: lets XLA overlap the surrounding index ops.
    h1, h2, h3 = p["w1s"][0].shape[1], p["w2"].shape[1], p["w3"].shape[1]
    flops = 2 * n_pad * (sum(x.shape[1] for x in xs) * h1
                         + h1 * h2 + h2 * h3 + h3 * dout)
    bytes_accessed = (sum(x.size * x.dtype.itemsize for x in xs_p)
                      + sum(w.size * w.dtype.itemsize for w in weights)
                      + (2 if dual_out else 1) * n_pad * dout * 4)
    cost = pl.CostEstimate(flops=int(flops),
                           transcendentals=int(n_pad if use_ln else 0),
                           bytes_accessed=int(bytes_accessed))

    kernel = functools.partial(_mlp4_kernel, n_in=len(xs), use_ln=use_ln,
                               res_idx=res_idx, out_raw=dual_out)

    result = pl.pallas_call(
        kernel,
        out_shape=out_shape,
        grid=(grid,),
        in_specs=in_specs,
        out_specs=out_specs,
        compiler_params=pltpu.CompilerParams(
            dimension_semantics=("parallel",),
            vmem_limit_bytes=VMEM_LIMIT_BYTES),
        cost_estimate=cost,
    )(*ins)

    if dual_out:
        return tuple(r[:n] for r in result)
    return result[:n]


# ---------------- parameter construction (deterministic, in-script) ---------

def _init_linear(key, din, dout):
    kw, kb = jax.random.split(key)
    bound = 1.0 / jnp.sqrt(jnp.float32(din))
    w = jax.random.uniform(kw, (din, dout), jnp.float32, -bound, bound)
    b = jax.random.uniform(kb, (1, dout), jnp.float32, -bound, bound)
    return w, b


def _init_mlp4(key, din, hidden, dout):
    keys = jax.random.split(key, 4)
    w1, b1 = _init_linear(keys[0], din, hidden)
    w2, b2 = _init_linear(keys[1], hidden, hidden)
    w3, b3 = _init_linear(keys[2], hidden, hidden)
    w4, b4 = _init_linear(keys[3], hidden, dout)
    gamma = jnp.ones((1, dout), jnp.float32)
    beta = jnp.zeros((1, dout), jnp.float32)
    return (w1, b1, w2, b2, w3, b3, w4, b4, gamma, beta)


def init_gns_params(key, v_dim, e_dim, hidden_dim, out_dim):
    ks = jax.random.split(key, 9)
    return {
        "enc_v": _init_mlp4(ks[0], v_dim, hidden_dim, hidden_dim),
        "enc_e": _init_mlp4(ks[1], e_dim, hidden_dim, hidden_dim),
        "p1_msg": _init_mlp4(ks[2], 3 * hidden_dim, hidden_dim, hidden_dim),
        "p1_upd": _init_mlp4(ks[3], 2 * hidden_dim, hidden_dim, hidden_dim),
        "p2_msg": _init_mlp4(ks[4], 3 * hidden_dim, hidden_dim, hidden_dim),
        "p2_upd": _init_mlp4(ks[5], 2 * hidden_dim, hidden_dim, hidden_dim),
        "p3_msg": _init_mlp4(ks[6], 3 * hidden_dim, hidden_dim, hidden_dim),
        "p3_upd": _init_mlp4(ks[7], 2 * hidden_dim, hidden_dim, hidden_dim),
        "dec": _init_mlp4(ks[8], hidden_dim, hidden_dim, out_dim),
    }


def prepare_params(raw_params, hidden_dim, out_pad=LANE):
    """bf16-cast matmul weights, pre-split w1 per concat operand, zero-pad the
    INTERNAL hidden widths (layers 1-3) to 128 lanes (numerically exact:
    LeakyReLU(0)=0 and zero rows contribute nothing), pad decoder output to a
    lane-dense width.  Biases / LN params stay f32; final width / LN keep the
    true dout."""
    bf = jnp.bfloat16
    hp = _round_up(hidden_dim, LANE)     # lane-dense internal hidden width

    def pad_cols(a, w):
        return jnp.pad(a, ((0, 0), (0, w - a.shape[1])))

    def pad_rows(a, h):
        return jnp.pad(a, ((0, h - a.shape[0]), (0, 0)))

    def prep(raw, splits=None, use_ln=True, pad_out_to=None):
        w1, b1, w2, b2, w3, b3, w4, b4, gamma, beta = raw
        if pad_out_to is not None and pad_out_to > w4.shape[1]:
            extra = pad_out_to - w4.shape[1]
            w4 = jnp.pad(w4, ((0, 0), (0, extra)))
            b4 = jnp.pad(b4, ((0, 0), (0, extra)))
        # lane-dense internal hidden widths (exact zero padding)
        w1 = pad_cols(w1, hp); b1 = pad_cols(b1, hp)
        w2 = pad_cols(pad_rows(w2, hp), hp); b2 = pad_cols(b2, hp)
        w3 = pad_cols(pad_rows(w3, hp), hp); b3 = pad_cols(b3, hp)
        w4 = pad_rows(w4, hp)
        if splits is None:
            w1s = (w1,)
        else:
            cuts, s = [], 0
            for width in splits[:-1]:
                s += width
                cuts.append(s)
            w1s = tuple(jnp.split(w1, cuts, axis=0))
        return {
            "w1s": tuple(w.astype(bf) for w in w1s),
            "b1": b1, "w2": w2.astype(bf), "b2": b2,
            "w3": w3.astype(bf), "b3": b3,
            "w4": w4.astype(bf), "b4": b4,
            "gamma": gamma if use_ln else None,
            "beta": beta if use_ln else None,
        }

    H = hidden_dim
    dec_out = raw_params["dec"][6].shape[1]
    prepped = {
        "enc_v": prep(raw_params["enc_v"]),
        "enc_e": prep(raw_params["enc_e"]),
        "dec": prep(raw_params["dec"], use_ln=False,
                    pad_out_to=_round_up(dec_out, out_pad)),
    }
    for name in ("p1", "p2", "p3"):
        prepped[name + "_msg"] = prep(raw_params[name + "_msg"],
                                      splits=[H, H, H])
        prepped[name + "_upd"] = prep(raw_params[name + "_upd"],
                                      splits=[H, H])
    return prepped


# ---------------- model forward ----------------------------------------------

def gns_forward(V, E, edge_index, params):
    n_nodes = V.shape[0]
    # TODO(synk): argsort / gather / segment-sum are data-dependent index ops
    # kept in plain XLA (Mosaic has no general in-kernel row gather); edges are
    # sorted by target ONCE so the add-aggregation is a streaming sorted
    # segment-sum instead of a serialized scatter-add.
    src, dst = edge_index[0], edge_index[1]
    order = jnp.argsort(dst)
    src = jnp.take(src, order)
    dst = jnp.take(dst, order)
    E = jnp.take(E, order, axis=0)   # permuting edges is semantics-preserving

    # Encoder (LayerNorm on).
    lv = fused_mlp4([V], params["enc_v"], use_ln=True)
    le = fused_mlp4([E], params["enc_e"], use_ln=True)

    # 3 processor steps; residual Graph addition (V and E) fused into kernels.
    for name in ("p1", "p2", "p3"):
        V_i = jnp.take(lv, dst, axis=0)   # target node features
        V_j = jnp.take(lv, src, axis=0)   # source node features
        # message MLP: dual output = (raw messages in f32, le + messages bf16).
        messages, le = fused_mlp4([V_i, V_j, le], params[name + "_msg"],
                                  use_ln=True, res_idx=2, out_raw=True,
                                  raw_dtype=jnp.float32)
        agg = jax.ops.segment_sum(messages, dst, num_segments=n_nodes,
                                  indices_are_sorted=True)
        # update MLP consumes f32 agg directly (bf16 cast inside the kernel),
        # with fused residual lv + update(...).
        lv = fused_mlp4([agg, lv], params[name + "_upd"], use_ln=True,
                        res_idx=1)

    # Decoder: no LayerNorm; lane-dense (128-wide) f32 output, caller slices.
    return fused_mlp4([lv], params["dec"], use_ln=False,
                      out_dtype=jnp.float32)


# ---------------- main --------------------------------------------------------

if __name__ == "__main__":
    V_DIM, E_DIM, HIDDEN, OUT_DIM = 8, 4, 32, 3
    N_NODES, N_EDGES = 16, 24

    key = jax.random.PRNGKey(0)
    k_v, k_e, k_idx, k_par = jax.random.split(key, 4)

    V = jax.random.normal(k_v, (N_NODES, V_DIM), jnp.float32)
    E = jax.random.normal(k_e, (N_EDGES, E_DIM), jnp.float32)
    edge_index = jax.random.randint(k_idx, (2, N_EDGES), 0, N_NODES,
                                    dtype=jnp.int32)

    raw = init_gns_params(k_par, V_DIM, E_DIM, HIDDEN, OUT_DIM)
    params = prepare_params(raw, HIDDEN)

    fwd = jax.jit(gns_forward)
    out_padded = jax.block_until_ready(fwd(V, E, edge_index, params))
    out = out_padded[:, :OUT_DIM]
    assert out.shape == (N_NODES, OUT_DIM)
    assert bool(jnp.all(jnp.isfinite(out)))
    print("KERNEL_OK")
</pallas_src>

<mosaic_0001>
module attributes {stable_mosaic.version = 11 : i64} {
  func.func @_mlp4_kernel(%arg0: i32, %arg1: memref<16x8xf32, #tpu.memory_space<vmem>>, %arg2: memref<8x128xbf16, #tpu.memory_space<vmem>>, %arg3: memref<1x128xf32, #tpu.memory_space<vmem>>, %arg4: memref<128x128xbf16, #tpu.memory_space<vmem>>, %arg5: memref<1x128xf32, #tpu.memory_space<vmem>>, %arg6: memref<128x128xbf16, #tpu.memory_space<vmem>>, %arg7: memref<1x128xf32, #tpu.memory_space<vmem>>, %arg8: memref<128x32xbf16, #tpu.memory_space<vmem>>, %arg9: memref<1x32xf32, #tpu.memory_space<vmem>>, %arg10: memref<1x32xf32, #tpu.memory_space<vmem>>, %arg11: memref<1x32xf32, #tpu.memory_space<vmem>>, %arg12: memref<16x32xbf16, #tpu.memory_space<vmem>>) attributes {dimension_semantics = [#tpu.dimension_semantics<parallel>], iteration_bounds = array<i64: 1>, scalar_prefetch = 0 : i64, scratch_operands = 0 : i64, tpu.core_type = #tpu.core_type<tc>, window_params = [{transform_indices = @transform_0, window_bounds = array<i64: 16, 8>}, {pipeline_mode = #tpu.pipeline_mode<synchronous>, transform_indices = @transform_1, window_bounds = array<i64: 8, 128>}, {pipeline_mode = #tpu.pipeline_mode<synchronous>, transform_indices = @transform_2, window_bounds = array<i64: 1, 128>}, {pipeline_mode = #tpu.pipeline_mode<synchronous>, transform_indices = @transform_3, window_bounds = array<i64: 128, 128>}, {pipeline_mode = #tpu.pipeline_mode<synchronous>, transform_indices = @transform_4, window_bounds = array<i64: 1, 128>}, {pipeline_mode = #tpu.pipeline_mode<synchronous>, transform_indices = @transform_5, window_bounds = array<i64: 128, 128>}, {pipeline_mode = #tpu.pipeline_mode<synchronous>, transform_indices = @transform_6, window_bounds = array<i64: 1, 128>}, {pipeline_mode = #tpu.pipeline_mode<synchronous>, transform_indices = @transform_7, window_bounds = array<i64: 128, 32>}, {pipeline_mode = #tpu.pipeline_mode<synchronous>, transform_indices = @transform_8, window_bounds = array<i64: 1, 32>}, {pipeline_mode = #tpu.pipeline_mode<synchronous>, transform_indices = @transform_9, window_bounds = array<i64: 1, 32>}, {pipeline_mode = #tpu.pipeline_mode<synchronous>, transform_indices = @transform_10, window_bounds = array<i64: 1, 32>}, {transform_indices = @transform_11, window_bounds = array<i64: 16, 32>}]} {
    %c0 = arith.constant 0 : index
    %c0_0 = arith.constant 0 : index
    %0 = vector.load %arg1[%c0, %c0_0] : memref<16x8xf32, #tpu.memory_space<vmem>>, vector<16x8xf32>
    %1 = arith.truncf %0 : vector<16x8xf32> to vector<16x8xbf16>
    %c0_1 = arith.constant 0 : index
    %c0_2 = arith.constant 0 : index
    %2 = vector.load %arg2[%c0_1, %c0_2] : memref<8x128xbf16, #tpu.memory_space<vmem>>, vector<8x128xbf16>
    %cst = arith.constant dense<0.000000e+00> : vector<16x128xf32>
    %3 = tpu.matmul %1, %2, %cst {dimension_numbers = #tpu.dot_dimension_numbers<[1], [0], [0], [1], [0, 0, 1, 1], [], []>} : vector<16x8xbf16>, vector<8x128xbf16>, vector<16x128xf32> -> vector<16x128xf32>
    %c0_3 = arith.constant 0 : index
    %c0_4 = arith.constant 0 : index
    %4 = vector.load %arg3[%c0_3, %c0_4] : memref<1x128xf32, #tpu.memory_space<vmem>>, vector<1x128xf32>
    %5 = vector.broadcast %4 : vector<1x128xf32> to vector<16x128xf32>
    %6 = arith.addf %3, %5 : vector<16x128xf32>
    %cst_5 = arith.constant 0.000000e+00 : f32
    %7 = vector.broadcast %cst_5 : f32 to vector<16x128xf32>
    %8 = arith.cmpf ogt, %6, %7 : vector<16x128xf32>
    %cst_6 = arith.constant 0.00999999977 : f32
    %9 = vector.broadcast %cst_6 : f32 to vector<16x128xf32>
    %10 = arith.mulf %9, %6 : vector<16x128xf32>
    %11 = arith.select %8, %6, %10 : vector<16x128xi1>, vector<16x128xf32>
    %12 = arith.truncf %11 : vector<16x128xf32> to vector<16x128xbf16>
    %c0_7 = arith.constant 0 : index
    %c0_8 = arith.constant 0 : index
    %13 = vector.load %arg4[%c0_7, %c0_8] : memref<128x128xbf16, #tpu.memory_space<vmem>>, vector<128x128xbf16>
    %cst_9 = arith.constant dense<0.000000e+00> : vector<16x128xf32>
    %14 = tpu.matmul %12, %13, %cst_9 {dimension_numbers = #tpu.dot_dimension_numbers<[1], [0], [0], [1], [0, 0, 1, 1], [], []>} : vector<16x128xbf16>, vector<128x128xbf16>, vector<16x128xf32> -> vector<16x128xf32>
    %c0_10 = arith.constant 0 : index
    %c0_11 = arith.constant 0 : index
    %15 = vector.load %arg5[%c0_10, %c0_11] : memref<1x128xf32, #tpu.memory_space<vmem>>, vector<1x128xf32>
    %16 = vector.broadcast %15 : vector<1x128xf32> to vector<16x128xf32>
    %17 = arith.addf %14, %16 : vector<16x128xf32>
    %cst_12 = arith.constant 0.000000e+00 : f32
    %18 = vector.broadcast %cst_12 : f32 to vector<16x128xf32>
    %19 = arith.cmpf ogt, %17, %18 : vector<16x128xf32>
    %cst_13 = arith.constant 0.00999999977 : f32
    %20 = vector.broadcast %cst_13 : f32 to vector<16x128xf32>
    %21 = arith.mulf %20, %17 : vector<16x128xf32>
    %22 = arith.select %19, %17, %21 : vector<16x128xi1>, vector<16x128xf32>
    %23 = arith.truncf %22 : vector<16x128xf32> to vector<16x128xbf16>
    %c0_14 = arith.constant 0 : index
    %c0_15 = arith.constant 0 : index
    %24 = vector.load %arg6[%c0_14, %c0_15] : memref<128x128xbf16, #tpu.memory_space<vmem>>, vector<128x128xbf16>
    %cst_16 = arith.constant dense<0.000000e+00> : vector<16x128xf32>
    %25 = tpu.matmul %23, %24, %cst_16 {dimension_numbers = #tpu.dot_dimension_numbers<[1], [0], [0], [1], [0, 0, 1, 1], [], []>} : vector<16x128xbf16>, vector<128x128xbf16>, vector<16x128xf32> -> vector<16x128xf32>
    %c0_17 = arith.constant 0 : index
    %c0_18 = arith.constant 0 : index
    %26 = vector.load %arg7[%c0_17, %c0_18] : memref<1x128xf32, #tpu.memory_space<vmem>>, vector<1x128xf32>
    %27 = vector.broadcast %26 : vector<1x128xf32> to vector<16x128xf32>
    %28 = arith.addf %25, %27 : vector<16x128xf32>
    %cst_19 = arith.constant 0.000000e+00 : f32
    %29 = vector.broadcast %cst_19 : f32 to vector<16x128xf32>
    %30 = arith.cmpf ogt, %28, %29 : vector<16x128xf32>
    %cst_20 = arith.constant 0.00999999977 : f32
    %31 = vector.broadcast %cst_20 : f32 to vector<16x128xf32>
    %32 = arith.mulf %31, %28 : vector<16x128xf32>
    %33 = arith.select %30, %28, %32 : vector<16x128xi1>, vector<16x128xf32>
    %34 = arith.truncf %33 : vector<16x128xf32> to vector<16x128xbf16>
    %c0_21 = arith.constant 0 : index
    %c0_22 = arith.constant 0 : index
    %35 = vector.load %arg8[%c0_21, %c0_22] : memref<128x32xbf16, #tpu.memory_space<vmem>>, vector<128x32xbf16>
    %cst_23 = arith.constant dense<0.000000e+00> : vector<16x32xf32>
    %36 = tpu.matmul %34, %35, %cst_23 {dimension_numbers = #tpu.dot_dimension_numbers<[1], [0], [0], [1], [0, 0, 1, 1], [], []>} : vector<16x128xbf16>, vector<128x32xbf16>, vector<16x32xf32> -> vector<16x32xf32>
    %c0_24 = arith.constant 0 : index
    %c0_25 = arith.constant 0 : index
    %37 = vector.load %arg9[%c0_24, %c0_25] : memref<1x32xf32, #tpu.memory_space<vmem>>, vector<1x32xf32>
    %38 = vector.broadcast %37 : vector<1x32xf32> to vector<16x32xf32>
    %39 = arith.addf %36, %38 : vector<16x32xf32>
    %cst_26 = arith.constant dense<0.000000e+00> : vector<16xf32>
    %40 = vector.multi_reduction <add>, %39, %cst_26 [1] : vector<16x32xf32> to vector<16xf32>
    %41 = vector.shape_cast %40 : vector<16xf32> to vector<16x1xf32>
    %cst_27 = arith.constant 3.200000e+01 : f32
    %42 = vector.broadcast %cst_27 : f32 to vector<16x1xf32>
    %43 = arith.divf %41, %42 : vector<16x1xf32>
    %44 = vector.broadcast %43 : vector<16x1xf32> to vector<16x32xf32>
    %45 = arith.subf %39, %44 : vector<16x32xf32>
    %46 = arith.mulf %45, %45 : vector<16x32xf32>
    %cst_28 = arith.constant dense<0.000000e+00> : vector<16xf32>
    %47 = vector.multi_reduction <add>, %46, %cst_28 [1] : vector<16x32xf32> to vector<16xf32>
    %48 = vector.shape_cast %47 : vector<16xf32> to vector<16x1xf32>
    %cst_29 = arith.constant 3.200000e+01 : f32
    %49 = vector.broadcast %cst_29 : f32 to vector<16x1xf32>
    %50 = arith.divf %48, %49 : vector<16x1xf32>
    %51 = vector.broadcast %43 : vector<16x1xf32> to vector<16x32xf32>
    %52 = arith.subf %39, %51 : vector<16x32xf32>
    %cst_30 = arith.constant 9.99999974E-6 : f32
    %53 = vector.broadcast %cst_30 : f32 to vector<16x1xf32>
    %54 = arith.addf %50, %53 : vector<16x1xf32>
    %55 = math.rsqrt %54 : vector<16x1xf32>
    %56 = vector.broadcast %55 : vector<16x1xf32> to vector<16x32xf32>
    %57 = arith.mulf %52, %56 : vector<16x32xf32>
    %c0_31 = arith.constant 0 : index
    %c0_32 = arith.constant 0 : index
    %58 = vector.load %arg10[%c0_31, %c0_32] : memref<1x32xf32, #tpu.memory_space<vmem>>, vector<1x32xf32>
    %59 = vector.broadcast %58 : vector<1x32xf32> to vector<16x32xf32>
    %60 = arith.mulf %57, %59 : vector<16x32xf32>
    %c0_33 = arith.constant 0 : index
    %c0_34 = arith.constant 0 : index
    %61 = vector.load %arg11[%c0_33, %c0_34] : memref<1x32xf32, #tpu.memory_space<vmem>>, vector<1x32xf32>
    %62 = vector.broadcast %61 : vector<1x32xf32> to vector<16x32xf32>
    %63 = arith.addf %60, %62 : vector<16x32xf32>
    %64 = arith.truncf %63 : vector<16x32xf32> to vector<16x32xbf16>
    %c0_35 = arith.constant 0 : index
    %c0_36 = arith.constant 0 : index
    %65 = vector.load %arg12[%c0_35, %c0_36] : memref<16x32xbf16, #tpu.memory_space<vmem>>, vector<16x32xbf16>
    tpu.vector_store %arg12[%c0_35, %c0_36], %64 {strides = array<i32>} : memref<16x32xbf16, #tpu.memory_space<vmem>>, vector<16x32xbf16>,
    return
  }
  func.func @transform_0(%arg0: i32) -> (i32, i32) {
    %c0_i32 = arith.constant 0 : i32
    %c0_i32_0 = arith.constant 0 : i32
    return %arg0, %c0_i32 : i32, i32
  }
  func.func @transform_1(%arg0: i32) -> (i32, i32) {
    %c0_i32 = arith.constant 0 : i32
    %c0_i32_0 = arith.constant 0 : i32
    %c0_i32_1 = arith.constant 0 : i32
    return %c0_i32, %c0_i32_0 : i32, i32
  }
  func.func @transform_2(%arg0: i32) -> (i32, i32) {
    %c0_i32 = arith.constant 0 : i32
    %c0_i32_0 = arith.constant 0 : i32
    %c0_i32_1 = arith.constant 0 : i32
    return %c0_i32, %c0_i32_0 : i32, i32
  }
  func.func @transform_3(%arg0: i32) -> (i32, i32) {
    %c0_i32 = arith.constant 0 : i32
    %c0_i32_0 = arith.constant 0 : i32
    %c0_i32_1 = arith.constant 0 : i32
    return %c0_i32, %c0_i32_0 : i32, i32
  }
  func.func @transform_4(%arg0: i32) -> (i32, i32) {
    %c0_i32 = arith.constant 0 : i32
    %c0_i32_0 = arith.constant 0 : i32
    %c0_i32_1 = arith.constant 0 : i32
    return %c0_i32, %c0_i32_0 : i32, i32
  }
  func.func @transform_5(%arg0: i32) -> (i32, i32) {
    %c0_i32 = arith.constant 0 : i32
    %c0_i32_0 = arith.constant 0 : i32
    %c0_i32_1 = arith.constant 0 : i32
    return %c0_i32, %c0_i32_0 : i32, i32
  }
  func.func @transform_6(%arg0: i32) -> (i32, i32) {
    %c0_i32 = arith.constant 0 : i32
    %c0_i32_0 = arith.constant 0 : i32
    %c0_i32_1 = arith.constant 0 : i32
    return %c0_i32, %c0_i32_0 : i32, i32
  }
  func.func @transform_7(%arg0: i32) -> (i32, i32) {
    %c0_i32 = arith.constant 0 : i32
    %c0_i32_0 = arith.constant 0 : i32
    %c0_i32_1 = arith.constant 0 : i32
    return %c0_i32, %c0_i32_0 : i32, i32
  }
  func.func @transform_8(%arg0: i32) -> (i32, i32) {
    %c0_i32 = arith.constant 0 : i32
    %c0_i32_0 = arith.constant 0 : i32
    %c0_i32_1 = arith.constant 0 : i32
    return %c0_i32, %c0_i32_0 : i32, i32
  }
  func.func @transform_9(%arg0: i32) -> (i32, i32) {
    %c0_i32 = arith.constant 0 : i32
    %c0_i32_0 = arith.constant 0 : i32
    %c0_i32_1 = arith.constant 0 : i32
    return %c0_i32, %c0_i32_0 : i32, i32
  }
  func.func @transform_10(%arg0: i32) -> (i32, i32) {
    %c0_i32 = arith.constant 0 : i32
    %c0_i32_0 = arith.constant 0 : i32
    %c0_i32_1 = arith.constant 0 : i32
    return %c0_i32, %c0_i32_0 : i32, i32
  }
  func.func @transform_11(%arg0: i32) -> (i32, i32) {
    %c0_i32 = arith.constant 0 : i32
    %c0_i32_0 = arith.constant 0 : i32
    return %arg0, %c0_i32 : i32, i32
  }
}

module attributes {stable_mosaic.version = 11 : i64} {
  func.func @_mlp4_kernel(%arg0: i32, %arg1: memref<16x4xf32, #tpu.memory_space<vmem>>, %arg2: memref<4x128xbf16, #tpu.memory_space<vmem>>, %arg3: memref<1x128xf32, #tpu.memory_space<vmem>>, %arg4: memref<128x128xbf16, #tpu.memory_space<vmem>>, %arg5: memref<1x128xf32, #tpu.memory_space<vmem>>, %arg6: memref<128x128xbf16, #tpu.memory_space<vmem>>, %arg7: memref<1x128xf32, #tpu.memory_space<vmem>>, %arg8: memref<128x32xbf16, #tpu.memory_space<vmem>>, %arg9: memref<1x32xf32, #tpu.memory_space<vmem>>, %arg10: memref<1x32xf32, #tpu.memory_space<vmem>>, %arg11: memref<1x32xf32, #tpu.memory_space<vmem>>, %arg12: memref<16x32xbf16, #tpu.memory_space<vmem>>) attributes {dimension_semantics = [#tpu.dimension_semantics<parallel>], iteration_bounds = array<i64: 2>, scalar_prefetch = 0 : i64, scratch_operands = 0 : i64, tpu.core_type = #tpu.core_type<tc>, window_params = [{transform_indices = @transform_0, window_bounds = array<i64: 16, 4>}, {pipeline_mode = #tpu.pipeline_mode<synchronous>, transform_indices = @transform_1, window_bounds = array<i64: 4, 128>}, {pipeline_mode = #tpu.pipeline_mode<synchronous>, transform_indices = @transform_2, window_bounds = array<i64: 1, 128>}, {pipeline_mode = #tpu.pipeline_mode<synchronous>, transform_indices = @transform_3, window_bounds = array<i64: 128, 128>}, {pipeline_mode = #tpu.pipeline_mode<synchronous>, transform_indices = @transform_4, window_bounds = array<i64: 1, 128>}, {pipeline_mode = #tpu.pipeline_mode<synchronous>, transform_indices = @transform_5, window_bounds = array<i64: 128, 128>}, {pipeline_mode = #tpu.pipeline_mode<synchronous>, transform_indices = @transform_6, window_bounds = array<i64: 1, 128>}, {pipeline_mode = #tpu.pipeline_mode<synchronous>, transform_indices = @transform_7, window_bounds = array<i64: 128, 32>}, {pipeline_mode = #tpu.pipeline_mode<synchronous>, transform_indices = @transform_8, window_bounds = array<i64: 1, 32>}, {pipeline_mode = #tpu.pipeline_mode<synchronous>, transform_indices = @transform_9, window_bounds = array<i64: 1, 32>}, {pipeline_mode = #tpu.pipeline_mode<synchronous>, transform_indices = @transform_10, window_bounds = array<i64: 1, 32>}, {transform_indices = @transform_11, window_bounds = array<i64: 16, 32>}]} {
    %c0 = arith.constant 0 : index
    %c0_0 = arith.constant 0 : index
    %0 = vector.load %arg1[%c0, %c0_0] : memref<16x4xf32, #tpu.memory_space<vmem>>, vector<16x4xf32>
    %1 = arith.truncf %0 : vector<16x4xf32> to vector<16x4xbf16>
    %c0_1 = arith.constant 0 : index
    %c0_2 = arith.constant 0 : index
    %2 = vector.load %arg2[%c0_1, %c0_2] : memref<4x128xbf16, #tpu.memory_space<vmem>>, vector<4x128xbf16>
    %cst = arith.constant dense<0.000000e+00> : vector<16x128xf32>
    %3 = tpu.matmul %1, %2, %cst {dimension_numbers = #tpu.dot_dimension_numbers<[1], [0], [0], [1], [0, 0, 1, 1], [], []>} : vector<16x4xbf16>, vector<4x128xbf16>, vector<16x128xf32> -> vector<16x128xf32>
    %c0_3 = arith.constant 0 : index
    %c0_4 = arith.constant 0 : index
    %4 = vector.load %arg3[%c0_3, %c0_4] : memref<1x128xf32, #tpu.memory_space<vmem>>, vector<1x128xf32>
    %5 = vector.broadcast %4 : vector<1x128xf32> to vector<16x128xf32>
    %6 = arith.addf %3, %5 : vector<16x128xf32>
    %cst_5 = arith.constant 0.000000e+00 : f32
    %7 = vector.broadcast %cst_5 : f32 to vector<16x128xf32>
    %8 = arith.cmpf ogt, %6, %7 : vector<16x128xf32>
    %cst_6 = arith.constant 0.00999999977 : f32
    %9 = vector.broadcast %cst_6 : f32 to vector<16x128xf32>
    %10 = arith.mulf %9, %6 : vector<16x128xf32>
    %11 = arith.select %8, %6, %10 : vector<16x128xi1>, vector<16x128xf32>
    %12 = arith.truncf %11 : vector<16x128xf32> to vector<16x128xbf16>
    %c0_7 = arith.constant 0 : index
    %c0_8 = arith.constant 0 : index
    %13 = vector.load %arg4[%c0_7, %c0_8] : memref<128x128xbf16, #tpu.memory_space<vmem>>, vector<128x128xbf16>
    %cst_9 = arith.constant dense<0.000000e+00> : vector<16x128xf32>
    %14 = tpu.matmul %12, %13, %cst_9 {dimension_numbers = #tpu.dot_dimension_numbers<[1], [0], [0], [1], [0, 0, 1, 1], [], []>} : vector<16x128xbf16>, vector<128x128xbf16>, vector<16x128xf32> -> vector<16x128xf32>
    %c0_10 = arith.constant 0 : index
    %c0_11 = arith.constant 0 : index
    %15 = vector.load %arg5[%c0_10, %c0_11] : memref<1x128xf32, #tpu.memory_space<vmem>>, vector<1x128xf32>
    %16 = vector.broadcast %15 : vector<1x128xf32> to vector<16x128xf32>
    %17 = arith.addf %14, %16 : vector<16x128xf32>
    %cst_12 = arith.constant 0.000000e+00 : f32
    %18 = vector.broadcast %cst_12 : f32 to vector<16x128xf32>
    %19 = arith.cmpf ogt, %17, %18 : vector<16x128xf32>
    %cst_13 = arith.constant 0.00999999977 : f32
    %20 = vector.broadcast %cst_13 : f32 to vector<16x128xf32>
    %21 = arith.mulf %20, %17 : vector<16x128xf32>
    %22 = arith.select %19, %17, %21 : vector<16x128xi1>, vector<16x128xf32>
    %23 = arith.truncf %22 : vector<16x128xf32> to vector<16x128xbf16>
    %c0_14 = arith.constant 0 : index
    %c0_15 = arith.constant 0 : index
    %24 = vector.load %arg6[%c0_14, %c0_15] : memref<128x128xbf16, #tpu.memory_space<vmem>>, vector<128x128xbf16>
    %cst_16 = arith.constant dense<0.000000e+00> : vector<16x128xf32>
    %25 = tpu.matmul %23, %24, %cst_16 {dimension_numbers = #tpu.dot_dimension_numbers<[1], [0], [0], [1], [0, 0, 1, 1], [], []>} : vector<16x128xbf16>, vector<128x128xbf16>, vector<16x128xf32> -> vector<16x128xf32>
    %c0_17 = arith.constant 0 : index
    %c0_18 = arith.constant 0 : index
    %26 = vector.load %arg7[%c0_17, %c0_18] : memref<1x128xf32, #tpu.memory_space<vmem>>, vector<1x128xf32>
    %27 = vector.broadcast %26 : vector<1x128xf32> to vector<16x128xf32>
    %28 = arith.addf %25, %27 : vector<16x128xf32>
    %cst_19 = arith.constant 0.000000e+00 : f32
    %29 = vector.broadcast %cst_19 : f32 to vector<16x128xf32>
    %30 = arith.cmpf ogt, %28, %29 : vector<16x128xf32>
    %cst_20 = arith.constant 0.00999999977 : f32
    %31 = vector.broadcast %cst_20 : f32 to vector<16x128xf32>
    %32 = arith.mulf %31, %28 : vector<16x128xf32>
    %33 = arith.select %30, %28, %32 : vector<16x128xi1>, vector<16x128xf32>
    %34 = arith.truncf %33 : vector<16x128xf32> to vector<16x128xbf16>
    %c0_21 = arith.constant 0 : index
    %c0_22 = arith.constant 0 : index
    %35 = vector.load %arg8[%c0_21, %c0_22] : memref<128x32xbf16, #tpu.memory_space<vmem>>, vector<128x32xbf16>
    %cst_23 = arith.constant dense<0.000000e+00> : vector<16x32xf32>
    %36 = tpu.matmul %34, %35, %cst_23 {dimension_numbers = #tpu.dot_dimension_numbers<[1], [0], [0], [1], [0, 0, 1, 1], [], []>} : vector<16x128xbf16>, vector<128x32xbf16>, vector<16x32xf32> -> vector<16x32xf32>
    %c0_24 = arith.constant 0 : index
    %c0_25 = arith.constant 0 : index
    %37 = vector.load %arg9[%c0_24, %c0_25] : memref<1x32xf32, #tpu.memory_space<vmem>>, vector<1x32xf32>
    %38 = vector.broadcast %37 : vector<1x32xf32> to vector<16x32xf32>
    %39 = arith.addf %36, %38 : vector<16x32xf32>
    %cst_26 = arith.constant dense<0.000000e+00> : vector<16xf32>
    %40 = vector.multi_reduction <add>, %39, %cst_26 [1] : vector<16x32xf32> to vector<16xf32>
    %41 = vector.shape_cast %40 : vector<16xf32> to vector<16x1xf32>
    %cst_27 = arith.constant 3.200000e+01 : f32
    %42 = vector.broadcast %cst_27 : f32 to vector<16x1xf32>
    %43 = arith.divf %41, %42 : vector<16x1xf32>
    %44 = vector.broadcast %43 : vector<16x1xf32> to vector<16x32xf32>
    %45 = arith.subf %39, %44 : vector<16x32xf32>
    %46 = arith.mulf %45, %45 : vector<16x32xf32>
    %cst_28 = arith.constant dense<0.000000e+00> : vector<16xf32>
    %47 = vector.multi_reduction <add>, %46, %cst_28 [1] : vector<16x32xf32> to vector<16xf32>
    %48 = vector.shape_cast %47 : vector<16xf32> to vector<16x1xf32>
    %cst_29 = arith.constant 3.200000e+01 : f32
    %49 = vector.broadcast %cst_29 : f32 to vector<16x1xf32>
    %50 = arith.divf %48, %49 : vector<16x1xf32>
    %51 = vector.broadcast %43 : vector<16x1xf32> to vector<16x32xf32>
    %52 = arith.subf %39, %51 : vector<16x32xf32>
    %cst_30 = arith.constant 9.99999974E-6 : f32
    %53 = vector.broadcast %cst_30 : f32 to vector<16x1xf32>
    %54 = arith.addf %50, %53 : vector<16x1xf32>
    %55 = math.rsqrt %54 : vector<16x1xf32>
    %56 = vector.broadcast %55 : vector<16x1xf32> to vector<16x32xf32>
    %57 = arith.mulf %52, %56 : vector<16x32xf32>
    %c0_31 = arith.constant 0 : index
    %c0_32 = arith.constant 0 : index
    %58 = vector.load %arg10[%c0_31, %c0_32] : memref<1x32xf32, #tpu.memory_space<vmem>>, vector<1x32xf32>
    %59 = vector.broadcast %58 : vector<1x32xf32> to vector<16x32xf32>
    %60 = arith.mulf %57, %59 : vector<16x32xf32>
    %c0_33 = arith.constant 0 : index
    %c0_34 = arith.constant 0 : index
    %61 = vector.load %arg11[%c0_33, %c0_34] : memref<1x32xf32, #tpu.memory_space<vmem>>, vector<1x32xf32>
    %62 = vector.broadcast %61 : vector<1x32xf32> to vector<16x32xf32>
    %63 = arith.addf %60, %62 : vector<16x32xf32>
    %64 = arith.truncf %63 : vector<16x32xf32> to vector<16x32xbf16>
    %c0_35 = arith.constant 0 : index
    %c0_36 = arith.constant 0 : index
    %65 = vector.load %arg12[%c0_35, %c0_36] : memref<16x32xbf16, #tpu.memory_space<vmem>>, vector<16x32xbf16>
    tpu.vector_store %arg12[%c0_35, %c0_36], %64 {strides = array<i32>} : memref<16x32xbf16, #tpu.memory_space<vmem>>, vector<16x32xbf16>,
    return
  }
  func.func @transform_0(%arg0: i32) -> (i32, i32) {
    %c0_i32 = arith.constant 0 : i32
    %c0_i32_0 = arith.constant 0 : i32
    return %arg0, %c0_i32 : i32, i32
  }
  func.func @transform_1(%arg0: i32) -> (i32, i32) {
    %c0_i32 = arith.constant 0 : i32
    %c0_i32_0 = arith.constant 0 : i32
    %c0_i32_1 = arith.constant 0 : i32
    return %c0_i32, %c0_i32_0 : i32, i32
  }
  func.func @transform_2(%arg0: i32) -> (i32, i32) {
    %c0_i32 = arith.constant 0 : i32
    %c0_i32_0 = arith.constant 0 : i32
    %c0_i32_1 = arith.constant 0 : i32
    return %c0_i32, %c0_i32_0 : i32, i32
  }
  func.func @transform_3(%arg0: i32) -> (i32, i32) {
    %c0_i32 = arith.constant 0 : i32
    %c0_i32_0 = arith.constant 0 : i32
    %c0_i32_1 = arith.constant 0 : i32
    return %c0_i32, %c0_i32_0 : i32, i32
  }
  func.func @transform_4(%arg0: i32) -> (i32, i32) {
    %c0_i32 = arith.constant 0 : i32
    %c0_i32_0 = arith.constant 0 : i32
    %c0_i32_1 = arith.constant 0 : i32
    return %c0_i32, %c0_i32_0 : i32, i32
  }
  func.func @transform_5(%arg0: i32) -> (i32, i32) {
    %c0_i32 = arith.constant 0 : i32
    %c0_i32_0 = arith.constant 0 : i32
    %c0_i32_1 = arith.constant 0 : i32
    return %c0_i32, %c0_i32_0 : i32, i32
  }
  func.func @transform_6(%arg0: i32) -> (i32, i32) {
    %c0_i32 = arith.constant 0 : i32
    %c0_i32_0 = arith.constant 0 : i32
    %c0_i32_1 = arith.constant 0 : i32
    return %c0_i32, %c0_i32_0 : i32, i32
  }
  func.func @transform_7(%arg0: i32) -> (i32, i32) {
    %c0_i32 = arith.constant 0 : i32
    %c0_i32_0 = arith.constant 0 : i32
    %c0_i32_1 = arith.constant 0 : i32
    return %c0_i32, %c0_i32_0 : i32, i32
  }
  func.func @transform_8(%arg0: i32) -> (i32, i32) {
    %c0_i32 = arith.constant 0 : i32
    %c0_i32_0 = arith.constant 0 : i32
    %c0_i32_1 = arith.constant 0 : i32
    return %c0_i32, %c0_i32_0 : i32, i32
  }
  func.func @transform_9(%arg0: i32) -> (i32, i32) {
    %c0_i32 = arith.constant 0 : i32
    %c0_i32_0 = arith.constant 0 : i32
    %c0_i32_1 = arith.constant 0 : i32
    return %c0_i32, %c0_i32_0 : i32, i32
  }
  func.func @transform_10(%arg0: i32) -> (i32, i32) {
    %c0_i32 = arith.constant 0 : i32
    %c0_i32_0 = arith.constant 0 : i32
    %c0_i32_1 = arith.constant 0 : i32
    return %c0_i32, %c0_i32_0 : i32, i32
  }
  func.func @transform_11(%arg0: i32) -> (i32, i32) {
    %c0_i32 = arith.constant 0 : i32
    %c0_i32_0 = arith.constant 0 : i32
    return %arg0, %c0_i32 : i32, i32
  }
}

module attributes {stable_mosaic.version = 11 : i64} {
  func.func @_mlp4_kernel(%arg0: i32, %arg1: memref<16x32xbf16, #tpu.memory_space<vmem>>, %arg2: memref<16x32xbf16, #tpu.memory_space<vmem>>, %arg3: memref<16x32xbf16, #tpu.memory_space<vmem>>, %arg4: memref<32x128xbf16, #tpu.memory_space<vmem>>, %arg5: memref<32x128xbf16, #tpu.memory_space<vmem>>, %arg6: memref<32x128xbf16, #tpu.memory_space<vmem>>, %arg7: memref<1x128xf32, #tpu.memory_space<vmem>>, %arg8: memref<128x128xbf16, #tpu.memory_space<vmem>>, %arg9: memref<1x128xf32, #tpu.memory_space<vmem>>, %arg10: memref<128x128xbf16, #tpu.memory_space<vmem>>, %arg11: memref<1x128xf32, #tpu.memory_space<vmem>>, %arg12: memref<128x32xbf16, #tpu.memory_space<vmem>>, %arg13: memref<1x32xf32, #tpu.memory_space<vmem>>, %arg14: memref<1x32xf32, #tpu.memory_space<vmem>>, %arg15: memref<1x32xf32, #tpu.memory_space<vmem>>, %arg16: memref<16x32xf32, #tpu.memory_space<vmem>>, %arg17: memref<16x32xbf16, #tpu.memory_space<vmem>>) attributes {dimension_semantics = [#tpu.dimension_semantics<parallel>], iteration_bounds = array<i64: 2>, scalar_prefetch = 0 : i64, scratch_operands = 0 : i64, tpu.core_type = #tpu.core_type<tc>, window_params = [{transform_indices = @transform_0, window_bounds = array<i64: 16, 32>}, {transform_indices = @transform_1, window_bounds = array<i64: 16, 32>}, {transform_indices = @transform_2, window_bounds = array<i64: 16, 32>}, {pipeline_mode = #tpu.pipeline_mode<synchronous>, transform_indices = @transform_3, window_bounds = array<i64: 32, 128>}, {pipeline_mode = #tpu.pipeline_mode<synchronous>, transform_indices = @transform_4, window_bounds = array<i64: 32, 128>}, {pipeline_mode = #tpu.pipeline_mode<synchronous>, transform_indices = @transform_5, window_bounds = array<i64: 32, 128>}, {pipeline_mode = #tpu.pipeline_mode<synchronous>, transform_indices = @transform_6, window_bounds = array<i64: 1, 128>}, {pipeline_mode = #tpu.pipeline_mode<synchronous>, transform_indices = @transform_7, window_bounds = array<i64: 128, 128>}, {pipeline_mode = #tpu.pipeline_mode<synchronous>, transform_indices = @transform_8, window_bounds = array<i64: 1, 128>}, {pipeline_mode = #tpu.pipeline_mode<synchronous>, transform_indices = @transform_9, window_bounds = array<i64: 128, 128>}, {pipeline_mode = #tpu.pipeline_mode<synchronous>, transform_indices = @transform_10, window_bounds = array<i64: 1, 128>}, {pipeline_mode = #tpu.pipeline_mode<synchronous>, transform_indices = @transform_11, window_bounds = array<i64: 128, 32>}, {pipeline_mode = #tpu.pipeline_mode<synchronous>, transform_indices = @transform_12, window_bounds = array<i64: 1, 32>}, {pipeline_mode = #tpu.pipeline_mode<synchronous>, transform_indices = @transform_13, window_bounds = array<i64: 1, 32>}, {pipeline_mode = #tpu.pipeline_mode<synchronous>, transform_indices = @transform_14, window_bounds = array<i64: 1, 32>}, {transform_indices = @transform_15, window_bounds = array<i64: 16, 32>}, {transform_indices = @transform_16, window_bounds = array<i64: 16, 32>}]} {
    %c0 = arith.constant 0 : index
    %c0_0 = arith.constant 0 : index
    %0 = vector.load %arg1[%c0, %c0_0] : memref<16x32xbf16, #tpu.memory_space<vmem>>, vector<16x32xbf16>
    %c0_1 = arith.constant 0 : index
    %c0_2 = arith.constant 0 : index
    %1 = vector.load %arg4[%c0_1, %c0_2] : memref<32x128xbf16, #tpu.memory_space<vmem>>, vector<32x128xbf16>
    %cst = arith.constant dense<0.000000e+00> : vector<16x128xf32>
    %2 = tpu.matmul %0, %1, %cst {dimension_numbers = #tpu.dot_dimension_numbers<[1], [0], [0], [1], [0, 0, 1, 1], [], []>} : vector<16x32xbf16>, vector<32x128xbf16>, vector<16x128xf32> -> vector<16x128xf32>
    %c0_3 = arith.constant 0 : index
    %c0_4 = arith.constant 0 : index
    %3 = vector.load %arg2[%c0_3, %c0_4] : memref<16x32xbf16, #tpu.memory_space<vmem>>, vector<16x32xbf16>
    %c0_5 = arith.constant 0 : index
    %c0_6 = arith.constant 0 : index
    %4 = vector.load %arg5[%c0_5, %c0_6] : memref<32x128xbf16, #tpu.memory_space<vmem>>, vector<32x128xbf16>
    %cst_7 = arith.constant dense<0.000000e+00> : vector<16x128xf32>
    %5 = tpu.matmul %3, %4, %cst_7 {dimension_numbers = #tpu.dot_dimension_numbers<[1], [0], [0], [1], [0, 0, 1, 1], [], []>} : vector<16x32xbf16>, vector<32x128xbf16>, vector<16x128xf32> -> vector<16x128xf32>
    %6 = arith.addf %2, %5 : vector<16x128xf32>
    %c0_8 = arith.constant 0 : index
    %c0_9 = arith.constant 0 : index
    %7 = vector.load %arg3[%c0_8, %c0_9] : memref<16x32xbf16, #tpu.memory_space<vmem>>, vector<16x32xbf16>
    %c0_10 = arith.constant 0 : index
    %c0_11 = arith.constant 0 : index
    %8 = vector.load %arg6[%c0_10, %c0_11] : memref<32x128xbf16, #tpu.memory_space<vmem>>, vector<32x128xbf16>
    %cst_12 = arith.constant dense<0.000000e+00> : vector<16x128xf32>
    %9 = tpu.matmul %7, %8, %cst_12 {dimension_numbers = #tpu.dot_dimension_numbers<[1], [0], [0], [1], [0, 0, 1, 1], [], []>} : vector<16x32xbf16>, vector<32x128xbf16>, vector<16x128xf32> -> vector<16x128xf32>
    %10 = arith.addf %6, %9 : vector<16x128xf32>
    %c0_13 = arith.constant 0 : index
    %c0_14 = arith.constant 0 : index
    %11 = vector.load %arg7[%c0_13, %c0_14] : memref<1x128xf32, #tpu.memory_space<vmem>>, vector<1x128xf32>
    %12 = vector.broadcast %11 : vector<1x128xf32> to vector<16x128xf32>
    %13 = arith.addf %10, %12 : vector<16x128xf32>
    %cst_15 = arith.constant 0.000000e+00 : f32
    %14 = vector.broadcast %cst_15 : f32 to vector<16x128xf32>
    %15 = arith.cmpf ogt, %13, %14 : vector<16x128xf32>
    %cst_16 = arith.constant 0.00999999977 : f32
    %16 = vector.broadcast %cst_16 : f32 to vector<16x128xf32>
    %17 = arith.mulf %16, %13 : vector<16x128xf32>
    %18 = arith.select %15, %13, %17 : vector<16x128xi1>, vector<16x128xf32>
    %19 = arith.truncf %18 : vector<16x128xf32> to vector<16x128xbf16>
    %c0_17 = arith.constant 0 : index
    %c0_18 = arith.constant 0 : index
    %20 = vector.load %arg8[%c0_17, %c0_18] : memref<128x128xbf16, #tpu.memory_space<vmem>>, vector<128x128xbf16>
    %cst_19 = arith.constant dense<0.000000e+00> : vector<16x128xf32>
    %21 = tpu.matmul %19, %20, %cst_19 {dimension_numbers = #tpu.dot_dimension_numbers<[1], [0], [0], [1], [0, 0, 1, 1], [], []>} : vector<16x128xbf16>, vector<128x128xbf16>, vector<16x128xf32> -> vector<16x128xf32>
    %c0_20 = arith.constant 0 : index
    %c0_21 = arith.constant 0 : index
    %22 = vector.load %arg9[%c0_20, %c0_21] : memref<1x128xf32, #tpu.memory_space<vmem>>, vector<1x128xf32>
    %23 = vector.broadcast %22 : vector<1x128xf32> to vector<16x128xf32>
    %24 = arith.addf %21, %23 : vector<16x128xf32>
    %cst_22 = arith.constant 0.000000e+00 : f32
    %25 = vector.broadcast %cst_22 : f32 to vector<16x128xf32>
    %26 = arith.cmpf ogt, %24, %25 : vector<16x128xf32>
    %cst_23 = arith.constant 0.00999999977 : f32
    %27 = vector.broadcast %cst_23 : f32 to vector<16x128xf32>
    %28 = arith.mulf %27, %24 : vector<16x128xf32>
    %29 = arith.select %26, %24, %28 : vector<16x128xi1>, vector<16x128xf32>
    %30 = arith.truncf %29 : vector<16x128xf32> to vector<16x128xbf16>
    %c0_24 = arith.constant 0 : index
    %c0_25 = arith.constant 0 : index
    %31 = vector.load %arg10[%c0_24, %c0_25] : memref<128x128xbf16, #tpu.memory_space<vmem>>, vector<128x128xbf16>
    %cst_26 = arith.constant dense<0.000000e+00> : vector<16x128xf32>
    %32 = tpu.matmul %30, %31, %cst_26 {dimension_numbers = #tpu.dot_dimension_numbers<[1], [0], [0], [1], [0, 0, 1, 1], [], []>} : vector<16x128xbf16>, vector<128x128xbf16>, vector<16x128xf32> -> vector<16x128xf32>
    %c0_27 = arith.constant 0 : index
    %c0_28 = arith.constant 0 : index
    %33 = vector.load %arg11[%c0_27, %c0_28] : memref<1x128xf32, #tpu.memory_space<vmem>>, vector<1x128xf32>
    %34 = vector.broadcast %33 : vector<1x128xf32> to vector<16x128xf32>
    %35 = arith.addf %32, %34 : vector<16x128xf32>
    %cst_29 = arith.constant 0.000000e+00 : f32
    %36 = vector.broadcast %cst_29 : f32 to vector<16x128xf32>
    %37 = arith.cmpf ogt, %35, %36 : vector<16x128xf32>
    %cst_30 = arith.constant 0.00999999977 : f32
    %38 = vector.broadcast %cst_30 : f32 to vector<16x128xf32>
    %39 = arith.mulf %38, %35 : vector<16x128xf32>
    %40 = arith.select %37, %35, %39 : vector<16x128xi1>, vector<16x128xf32>
    %41 = arith.truncf %40 : vector<16x128xf32> to vector<16x128xbf16>
    %c0_31 = arith.constant 0 : index
    %c0_32 = arith.constant 0 : index
    %42 = vector.load %arg12[%c0_31, %c0_32] : memref<128x32xbf16, #tpu.memory_space<vmem>>, vector<128x32xbf16>
    %cst_33 = arith.constant dense<0.000000e+00> : vector<16x32xf32>
    %43 = tpu.matmul %41, %42, %cst_33 {dimension_numbers = #tpu.dot_dimension_numbers<[1], [0], [0], [1], [0, 0, 1, 1], [], []>} : vector<16x128xbf16>, vector<128x32xbf16>, vector<16x32xf32> -> vector<16x32xf32>
    %c0_34 = arith.constant 0 : index
    %c0_35 = arith.constant 0 : index
    %44 = vector.load %arg13[%c0_34, %c0_35] : memref<1x32xf32, #tpu.memory_space<vmem>>, vector<1x32xf32>
    %45 = vector.broadcast %44 : vector<1x32xf32> to vector<16x32xf32>
    %46 = arith.addf %43, %45 : vector<16x32xf32>
    %cst_36 = arith.constant dense<0.000000e+00> : vector<16xf32>
    %47 = vector.multi_reduction <add>, %46, %cst_36 [1] : vector<16x32xf32> to vector<16xf32>
    %48 = vector.shape_cast %47 : vector<16xf32> to vector<16x1xf32>
    %cst_37 = arith.constant 3.200000e+01 : f32
    %49 = vector.broadcast %cst_37 : f32 to vector<16x1xf32>
    %50 = arith.divf %48, %49 : vector<16x1xf32>
    %51 = vector.broadcast %50 : vector<16x1xf32> to vector<16x32xf32>
    %52 = arith.subf %46, %51 : vector<16x32xf32>
    %53 = arith.mulf %52, %52 : vector<16x32xf32>
    %cst_38 = arith.constant dense<0.000000e+00> : vector<16xf32>
    %54 = vector.multi_reduction <add>, %53, %cst_38 [1] : vector<16x32xf32> to vector<16xf32>
    %55 = vector.shape_cast %54 : vector<16xf32> to vector<16x1xf32>
    %cst_39 = arith.constant 3.200000e+01 : f32
    %56 = vector.broadcast %cst_39 : f32 to vector<16x1xf32>
    %57 = arith.divf %55, %56 : vector<16x1xf32>
    %58 = vector.broadcast %50 : vector<16x1xf32> to vector<16x32xf32>
    %59 = arith.subf %46, %58 : vector<16x32xf32>
    %cst_40 = arith.constant 9.99999974E-6 : f32
    %60 = vector.broadcast %cst_40 : f32 to vector<16x1xf32>
    %61 = arith.addf %57, %60 : vector<16x1xf32>
    %62 = math.rsqrt %61 : vector<16x1xf32>
    %63 = vector.broadcast %62 : vector<16x1xf32> to vector<16x32xf32>
    %64 = arith.mulf %59, %63 : vector<16x32xf32>
    %c0_41 = arith.constant 0 : index
    %c0_42 = arith.constant 0 : index
    %65 = vector.load %arg14[%c0_41, %c0_42] : memref<1x32xf32, #tpu.memory_space<vmem>>, vector<1x32xf32>
    %66 = vector.broadcast %65 : vector<1x32xf32> to vector<16x32xf32>
    %67 = arith.mulf %64, %66 : vector<16x32xf32>
    %c0_43 = arith.constant 0 : index
    %c0_44 = arith.constant 0 : index
    %68 = vector.load %arg15[%c0_43, %c0_44] : memref<1x32xf32, #tpu.memory_space<vmem>>, vector<1x32xf32>
    %69 = vector.broadcast %68 : vector<1x32xf32> to vector<16x32xf32>
    %70 = arith.addf %67, %69 : vector<16x32xf32>
    %c0_45 = arith.constant 0 : index
    %c0_46 = arith.constant 0 : index
    %71 = vector.load %arg16[%c0_45, %c0_46] : memref<16x32xf32, #tpu.memory_space<vmem>>, vector<16x32xf32>
    tpu.vector_store %arg16[%c0_45, %c0_46], %70 {strides = array<i32>} : memref<16x32xf32, #tpu.memory_space<vmem>>, vector<16x32xf32>,
    %c0_47 = arith.constant 0 : index
    %c0_48 = arith.constant 0 : index
    %72 = vector.load %arg3[%c0_47, %c0_48] : memref<16x32xbf16, #tpu.memory_space<vmem>>, vector<16x32xbf16>
    %73 = arith.extf %72 : vector<16x32xbf16> to vector<16x32xf32>
    %74 = arith.addf %70, %73 : vector<16x32xf32>
    %75 = arith.truncf %74 : vector<16x32xf32> to vector<16x32xbf16>
    %c0_49 = arith.constant 0 : index
    %c0_50 = arith.constant 0 : index
    %76 = vector.load %arg17[%c0_49, %c0_50] : memref<16x32xbf16, #tpu.memory_space<vmem>>, vector<16x32xbf16>
    tpu.vector_store %arg17[%c0_49, %c0_50], %75 {strides = array<i32>} : memref<16x32xbf16, #tpu.memory_space<vmem>>, vector<16x32xbf16>,
    return
  }
  func.func @transform_0(%arg0: i32) -> (i32, i32) {
    %c0_i32 = arith.constant 0 : i32
    %c0_i32_0 = arith.constant 0 : i32
    return %arg0, %c0_i32 : i32, i32
  }
  func.func @transform_1(%arg0: i32) -> (i32, i32) {
    %c0_i32 = arith.constant 0 : i32
    %c0_i32_0 = arith.constant 0 : i32
    return %arg0, %c0_i32 : i32, i32
  }
  func.func @transform_2(%arg0: i32) -> (i32, i32) {
    %c0_i32 = arith.constant 0 : i32
    %c0_i32_0 = arith.constant 0 : i32
    return %arg0, %c0_i32 : i32, i32
  }
  func.func @transform_3(%arg0: i32) -> (i32, i32) {
    %c0_i32 = arith.constant 0 : i32
    %c0_i32_0 = arith.constant 0 : i32
    %c0_i32_1 = arith.constant 0 : i32
    return %c0_i32, %c0_i32_0 : i32, i32
  }
  func.func @transform_4(%arg0: i32) -> (i32, i32) {
    %c0_i32 = arith.constant 0 : i32
    %c0_i32_0 = arith.constant 0 : i32
    %c0_i32_1 = arith.constant 0 : i32
    return %c0_i32, %c0_i32_0 : i32, i32
  }
  func.func @transform_5(%arg0: i32) -> (i32, i32) {
    %c0_i32 = arith.constant 0 : i32
    %c0_i32_0 = arith.constant 0 : i32
    %c0_i32_1 = arith.constant 0 : i32
    return %c0_i32, %c0_i32_0 : i32, i32
  }
  func.func @transform_6(%arg0: i32) -> (i32, i32) {
    %c0_i32 = arith.constant 0 : i32
    %c0_i32_0 = arith.constant 0 : i32
    %c0_i32_1 = arith.constant 0 : i32
    return %c0_i32, %c0_i32_0 : i32, i32
  }
  func.func @transform_7(%arg0: i32) -> (i32, i32) {
    %c0_i32 = arith.constant 0 : i32
    %c0_i32_0 = arith.constant 0 : i32
    %c0_i32_1 = arith.constant 0 : i32
    return %c0_i32, %c0_i32_0 : i32, i32
  }
  func.func @transform_8(%arg0: i32) -> (i32, i32) {
    %c0_i32 = arith.constant 0 : i32
    %c0_i32_0 = arith.constant 0 : i32
    %c0_i32_1 = arith.constant 0 : i32
    return %c0_i32, %c0_i32_0 : i32, i32
  }
  func.func @transform_9(%arg0: i32) -> (i32, i32) {
    %c0_i32 = arith.constant 0 : i32
    %c0_i32_0 = arith.constant 0 : i32
    %c0_i32_1 = arith.constant 0 : i32
    return %c0_i32, %c0_i32_0 : i32, i32
  }
  func.func @transform_10(%arg0: i32) -> (i32, i32) {
    %c0_i32 = arith.constant 0 : i32
    %c0_i32_0 = arith.constant 0 : i32
    %c0_i32_1 = arith.constant 0 : i32
    return %c0_i32, %c0_i32_0 : i32, i32
  }
  func.func @transform_11(%arg0: i32) -> (i32, i32) {
    %c0_i32 = arith.constant 0 : i32
    %c0_i32_0 = arith.constant 0 : i32
    %c0_i32_1 = arith.constant 0 : i32
    return %c0_i32, %c0_i32_0 : i32, i32
  }
  func.func @transform_12(%arg0: i32) -> (i32, i32) {
    %c0_i32 = arith.constant 0 : i32
    %c0_i32_0 = arith.constant 0 : i32
    %c0_i32_1 = arith.constant 0 : i32
    return %c0_i32, %c0_i32_0 : i32, i32
  }
  func.func @transform_13(%arg0: i32) -> (i32, i32) {
    %c0_i32 = arith.constant 0 : i32
    %c0_i32_0 = arith.constant 0 : i32
    %c0_i32_1 = arith.constant 0 : i32
    return %c0_i32, %c0_i32_0 : i32, i32
  }
  func.func @transform_14(%arg0: i32) -> (i32, i32) {
    %c0_i32 = arith.constant 0 : i32
    %c0_i32_0 = arith.constant 0 : i32
    %c0_i32_1 = arith.constant 0 : i32
    return %c0_i32, %c0_i32_0 : i32, i32
  }
  func.func @transform_15(%arg0: i32) -> (i32, i32) {
    %c0_i32 = arith.constant 0 : i32
    %c0_i32_0 = arith.constant 0 : i32
    return %arg0, %c0_i32 : i32, i32
  }
  func.func @transform_16(%arg0: i32) -> (i32, i32) {
    %c0_i32 = arith.constant 0 : i32
    %c0_i32_0 = arith.constant 0 : i32
    return %arg0, %c0_i32 : i32, i32
  }
}

module attributes {stable_mosaic.version = 11 : i64} {
  func.func @_mlp4_kernel(%arg0: i32, %arg1: memref<16x32xf32, #tpu.memory_space<vmem>>, %arg2: memref<16x32xbf16, #tpu.memory_space<vmem>>, %arg3: memref<32x128xbf16, #tpu.memory_space<vmem>>, %arg4: memref<32x128xbf16, #tpu.memory_space<vmem>>, %arg5: memref<1x128xf32, #tpu.memory_space<vmem>>, %arg6: memref<128x128xbf16, #tpu.memory_space<vmem>>, %arg7: memref<1x128xf32, #tpu.memory_space<vmem>>, %arg8: memref<128x128xbf16, #tpu.memory_space<vmem>>, %arg9: memref<1x128xf32, #tpu.memory_space<vmem>>, %arg10: memref<128x32xbf16, #tpu.memory_space<vmem>>, %arg11: memref<1x32xf32, #tpu.memory_space<vmem>>, %arg12: memref<1x32xf32, #tpu.memory_space<vmem>>, %arg13: memref<1x32xf32, #tpu.memory_space<vmem>>, %arg14: memref<16x32xbf16, #tpu.memory_space<vmem>>) attributes {dimension_semantics = [#tpu.dimension_semantics<parallel>], iteration_bounds = array<i64: 1>, scalar_prefetch = 0 : i64, scratch_operands = 0 : i64, tpu.core_type = #tpu.core_type<tc>, window_params = [{transform_indices = @transform_0, window_bounds = array<i64: 16, 32>}, {transform_indices = @transform_1, window_bounds = array<i64: 16, 32>}, {pipeline_mode = #tpu.pipeline_mode<synchronous>, transform_indices = @transform_2, window_bounds = array<i64: 32, 128>}, {pipeline_mode = #tpu.pipeline_mode<synchronous>, transform_indices = @transform_3, window_bounds = array<i64: 32, 128>}, {pipeline_mode = #tpu.pipeline_mode<synchronous>, transform_indices = @transform_4, window_bounds = array<i64: 1, 128>}, {pipeline_mode = #tpu.pipeline_mode<synchronous>, transform_indices = @transform_5, window_bounds = array<i64: 128, 128>}, {pipeline_mode = #tpu.pipeline_mode<synchronous>, transform_indices = @transform_6, window_bounds = array<i64: 1, 128>}, {pipeline_mode = #tpu.pipeline_mode<synchronous>, transform_indices = @transform_7, window_bounds = array<i64: 128, 128>}, {pipeline_mode = #tpu.pipeline_mode<synchronous>, transform_indices = @transform_8, window_bounds = array<i64: 1, 128>}, {pipeline_mode = #tpu.pipeline_mode<synchronous>, transform_indices = @transform_9, window_bounds = array<i64: 128, 32>}, {pipeline_mode = #tpu.pipeline_mode<synchronous>, transform_indices = @transform_10, window_bounds = array<i64: 1, 32>}, {pipeline_mode = #tpu.pipeline_mode<synchronous>, transform_indices = @transform_11, window_bounds = array<i64: 1, 32>}, {pipeline_mode = #tpu.pipeline_mode<synchronous>, transform_indices = @transform_12, window_bounds = array<i64: 1, 32>}, {transform_indices = @transform_13, window_bounds = array<i64: 16, 32>}]} {
    %c0 = arith.constant 0 : index
    %c0_0 = arith.constant 0 : index
    %0 = vector.load %arg1[%c0, %c0_0] : memref<16x32xf32, #tpu.memory_space<vmem>>, vector<16x32xf32>
    %1 = arith.truncf %0 : vector<16x32xf32> to vector<16x32xbf16>
    %c0_1 = arith.constant 0 : index
    %c0_2 = arith.constant 0 : index
    %2 = vector.load %arg3[%c0_1, %c0_2] : memref<32x128xbf16, #tpu.memory_space<vmem>>, vector<32x128xbf16>
    %cst = arith.constant dense<0.000000e+00> : vector<16x128xf32>
    %3 = tpu.matmul %1, %2, %cst {dimension_numbers = #tpu.dot_dimension_numbers<[1], [0], [0], [1], [0, 0, 1, 1], [], []>} : vector<16x32xbf16>, vector<32x128xbf16>, vector<16x128xf32> -> vector<16x128xf32>
    %c0_3 = arith.constant 0 : index
    %c0_4 = arith.constant 0 : index
    %4 = vector.load %arg2[%c0_3, %c0_4] : memref<16x32xbf16, #tpu.memory_space<vmem>>, vector<16x32xbf16>
    %c0_5 = arith.constant 0 : index
    %c0_6 = arith.constant 0 : index
    %5 = vector.load %arg4[%c0_5, %c0_6] : memref<32x128xbf16, #tpu.memory_space<vmem>>, vector<32x128xbf16>
    %cst_7 = arith.constant dense<0.000000e+00> : vector<16x128xf32>
    %6 = tpu.matmul %4, %5, %cst_7 {dimension_numbers = #tpu.dot_dimension_numbers<[1], [0], [0], [1], [0, 0, 1, 1], [], []>} : vector<16x32xbf16>, vector<32x128xbf16>, vector<16x128xf32> -> vector<16x128xf32>
    %7 = arith.addf %3, %6 : vector<16x128xf32>
    %c0_8 = arith.constant 0 : index
    %c0_9 = arith.constant 0 : index
    %8 = vector.load %arg5[%c0_8, %c0_9] : memref<1x128xf32, #tpu.memory_space<vmem>>, vector<1x128xf32>
    %9 = vector.broadcast %8 : vector<1x128xf32> to vector<16x128xf32>
    %10 = arith.addf %7, %9 : vector<16x128xf32>
    %cst_10 = arith.constant 0.000000e+00 : f32
    %11 = vector.broadcast %cst_10 : f32 to vector<16x128xf32>
    %12 = arith.cmpf ogt, %10, %11 : vector<16x128xf32>
    %cst_11 = arith.constant 0.00999999977 : f32
    %13 = vector.broadcast %cst_11 : f32 to vector<16x128xf32>
    %14 = arith.mulf %13, %10 : vector<16x128xf32>
    %15 = arith.select %12, %10, %14 : vector<16x128xi1>, vector<16x128xf32>
    %16 = arith.truncf %15 : vector<16x128xf32> to vector<16x128xbf16>
    %c0_12 = arith.constant 0 : index
    %c0_13 = arith.constant 0 : index
    %17 = vector.load %arg6[%c0_12, %c0_13] : memref<128x128xbf16, #tpu.memory_space<vmem>>, vector<128x128xbf16>
    %cst_14 = arith.constant dense<0.000000e+00> : vector<16x128xf32>
    %18 = tpu.matmul %16, %17, %cst_14 {dimension_numbers = #tpu.dot_dimension_numbers<[1], [0], [0], [1], [0, 0, 1, 1], [], []>} : vector<16x128xbf16>, vector<128x128xbf16>, vector<16x128xf32> -> vector<16x128xf32>
    %c0_15 = arith.constant 0 : index
    %c0_16 = arith.constant 0 : index
    %19 = vector.load %arg7[%c0_15, %c0_16] : memref<1x128xf32, #tpu.memory_space<vmem>>, vector<1x128xf32>
    %20 = vector.broadcast %19 : vector<1x128xf32> to vector<16x128xf32>
    %21 = arith.addf %18, %20 : vector<16x128xf32>
    %cst_17 = arith.constant 0.000000e+00 : f32
    %22 = vector.broadcast %cst_17 : f32 to vector<16x128xf32>
    %23 = arith.cmpf ogt, %21, %22 : vector<16x128xf32>
    %cst_18 = arith.constant 0.00999999977 : f32
    %24 = vector.broadcast %cst_18 : f32 to vector<16x128xf32>
    %25 = arith.mulf %24, %21 : vector<16x128xf32>
    %26 = arith.select %23, %21, %25 : vector<16x128xi1>, vector<16x128xf32>
    %27 = arith.truncf %26 : vector<16x128xf32> to vector<16x128xbf16>
    %c0_19 = arith.constant 0 : index
    %c0_20 = arith.constant 0 : index
    %28 = vector.load %arg8[%c0_19, %c0_20] : memref<128x128xbf16, #tpu.memory_space<vmem>>, vector<128x128xbf16>
    %cst_21 = arith.constant dense<0.000000e+00> : vector<16x128xf32>
    %29 = tpu.matmul %27, %28, %cst_21 {dimension_numbers = #tpu.dot_dimension_numbers<[1], [0], [0], [1], [0, 0, 1, 1], [], []>} : vector<16x128xbf16>, vector<128x128xbf16>, vector<16x128xf32> -> vector<16x128xf32>
    %c0_22 = arith.constant 0 : index
    %c0_23 = arith.constant 0 : index
    %30 = vector.load %arg9[%c0_22, %c0_23] : memref<1x128xf32, #tpu.memory_space<vmem>>, vector<1x128xf32>
    %31 = vector.broadcast %30 : vector<1x128xf32> to vector<16x128xf32>
    %32 = arith.addf %29, %31 : vector<16x128xf32>
    %cst_24 = arith.constant 0.000000e+00 : f32
    %33 = vector.broadcast %cst_24 : f32 to vector<16x128xf32>
    %34 = arith.cmpf ogt, %32, %33 : vector<16x128xf32>
    %cst_25 = arith.constant 0.00999999977 : f32
    %35 = vector.broadcast %cst_25 : f32 to vector<16x128xf32>
    %36 = arith.mulf %35, %32 : vector<16x128xf32>
    %37 = arith.select %34, %32, %36 : vector<16x128xi1>, vector<16x128xf32>
    %38 = arith.truncf %37 : vector<16x128xf32> to vector<16x128xbf16>
    %c0_26 = arith.constant 0 : index
    %c0_27 = arith.constant 0 : index
    %39 = vector.load %arg10[%c0_26, %c0_27] : memref<128x32xbf16, #tpu.memory_space<vmem>>, vector<128x32xbf16>
    %cst_28 = arith.constant dense<0.000000e+00> : vector<16x32xf32>
    %40 = tpu.matmul %38, %39, %cst_28 {dimension_numbers = #tpu.dot_dimension_numbers<[1], [0], [0], [1], [0, 0, 1, 1], [], []>} : vector<16x128xbf16>, vector<128x32xbf16>, vector<16x32xf32> -> vector<16x32xf32>
    %c0_29 = arith.constant 0 : index
    %c0_30 = arith.constant 0 : index
    %41 = vector.load %arg11[%c0_29, %c0_30] : memref<1x32xf32, #tpu.memory_space<vmem>>, vector<1x32xf32>
    %42 = vector.broadcast %41 : vector<1x32xf32> to vector<16x32xf32>
    %43 = arith.addf %40, %42 : vector<16x32xf32>
    %cst_31 = arith.constant dense<0.000000e+00> : vector<16xf32>
    %44 = vector.multi_reduction <add>, %43, %cst_31 [1] : vector<16x32xf32> to vector<16xf32>
    %45 = vector.shape_cast %44 : vector<16xf32> to vector<16x1xf32>
    %cst_32 = arith.constant 3.200000e+01 : f32
    %46 = vector.broadcast %cst_32 : f32 to vector<16x1xf32>
    %47 = arith.divf %45, %46 : vector<16x1xf32>
    %48 = vector.broadcast %47 : vector<16x1xf32> to vector<16x32xf32>
    %49 = arith.subf %43, %48 : vector<16x32xf32>
    %50 = arith.mulf %49, %49 : vector<16x32xf32>
    %cst_33 = arith.constant dense<0.000000e+00> : vector<16xf32>
    %51 = vector.multi_reduction <add>, %50, %cst_33 [1] : vector<16x32xf32> to vector<16xf32>
    %52 = vector.shape_cast %51 : vector<16xf32> to vector<16x1xf32>
    %cst_34 = arith.constant 3.200000e+01 : f32
    %53 = vector.broadcast %cst_34 : f32 to vector<16x1xf32>
    %54 = arith.divf %52, %53 : vector<16x1xf32>
    %55 = vector.broadcast %47 : vector<16x1xf32> to vector<16x32xf32>
    %56 = arith.subf %43, %55 : vector<16x32xf32>
    %cst_35 = arith.constant 9.99999974E-6 : f32
    %57 = vector.broadcast %cst_35 : f32 to vector<16x1xf32>
    %58 = arith.addf %54, %57 : vector<16x1xf32>
    %59 = math.rsqrt %58 : vector<16x1xf32>
    %60 = vector.broadcast %59 : vector<16x1xf32> to vector<16x32xf32>
    %61 = arith.mulf %56, %60 : vector<16x32xf32>
    %c0_36 = arith.constant 0 : index
    %c0_37 = arith.constant 0 : index
    %62 = vector.load %arg12[%c0_36, %c0_37] : memref<1x32xf32, #tpu.memory_space<vmem>>, vector<1x32xf32>
    %63 = vector.broadcast %62 : vector<1x32xf32> to vector<16x32xf32>
    %64 = arith.mulf %61, %63 : vector<16x32xf32>
    %c0_38 = arith.constant 0 : index
    %c0_39 = arith.constant 0 : index
    %65 = vector.load %arg13[%c0_38, %c0_39] : memref<1x32xf32, #tpu.memory_space<vmem>>, vector<1x32xf32>
    %66 = vector.broadcast %65 : vector<1x32xf32> to vector<16x32xf32>
    %67 = arith.addf %64, %66 : vector<16x32xf32>
    %c0_40 = arith.constant 0 : index
    %c0_41 = arith.constant 0 : index
    %68 = vector.load %arg2[%c0_40, %c0_41] : memref<16x32xbf16, #tpu.memory_space<vmem>>, vector<16x32xbf16>
    %69 = arith.extf %68 : vector<16x32xbf16> to vector<16x32xf32>
    %70 = arith.addf %67, %69 : vector<16x32xf32>
    %71 = arith.truncf %70 : vector<16x32xf32> to vector<16x32xbf16>
    %c0_42 = arith.constant 0 : index
    %c0_43 = arith.constant 0 : index
    %72 = vector.load %arg14[%c0_42, %c0_43] : memref<16x32xbf16, #tpu.memory_space<vmem>>, vector<16x32xbf16>
    tpu.vector_store %arg14[%c0_42, %c0_43], %71 {strides = array<i32>} : memref<16x32xbf16, #tpu.memory_space<vmem>>, vector<16x32xbf16>,
    return
  }
  func.func @transform_0(%arg0: i32) -> (i32, i32) {
    %c0_i32 = arith.constant 0 : i32
    %c0_i32_0 = arith.constant 0 : i32
    return %arg0, %c0_i32 : i32, i32
  }
  func.func @transform_1(%arg0: i32) -> (i32, i32) {
    %c0_i32 = arith.constant 0 : i32
    %c0_i32_0 = arith.constant 0 : i32
    return %arg0, %c0_i32 : i32, i32
  }
  func.func @transform_2(%arg0: i32) -> (i32, i32) {
    %c0_i32 = arith.constant 0 : i32
    %c0_i32_0 = arith.constant 0 : i32
    %c0_i32_1 = arith.constant 0 : i32
    return %c0_i32, %c0_i32_0 : i32, i32
  }
  func.func @transform_3(%arg0: i32) -> (i32, i32) {
    %c0_i32 = arith.constant 0 : i32
    %c0_i32_0 = arith.constant 0 : i32
    %c0_i32_1 = arith.constant 0 : i32
    return %c0_i32, %c0_i32_0 : i32, i32
  }
  func.func @transform_4(%arg0: i32) -> (i32, i32) {
    %c0_i32 = arith.constant 0 : i32
    %c0_i32_0 = arith.constant 0 : i32
    %c0_i32_1 = arith.constant 0 : i32
    return %c0_i32, %c0_i32_0 : i32, i32
  }
  func.func @transform_5(%arg0: i32) -> (i32, i32) {
    %c0_i32 = arith.constant 0 : i32
    %c0_i32_0 = arith.constant 0 : i32
    %c0_i32_1 = arith.constant 0 : i32
    return %c0_i32, %c0_i32_0 : i32, i32
  }
  func.func @transform_6(%arg0: i32) -> (i32, i32) {
    %c0_i32 = arith.constant 0 : i32
    %c0_i32_0 = arith.constant 0 : i32
    %c0_i32_1 = arith.constant 0 : i32
    return %c0_i32, %c0_i32_0 : i32, i32
  }
  func.func @transform_7(%arg0: i32) -> (i32, i32) {
    %c0_i32 = arith.constant 0 : i32
    %c0_i32_0 = arith.constant 0 : i32
    %c0_i32_1 = arith.constant 0 : i32
    return %c0_i32, %c0_i32_0 : i32, i32
  }
  func.func @transform_8(%arg0: i32) -> (i32, i32) {
    %c0_i32 = arith.constant 0 : i32
    %c0_i32_0 = arith.constant 0 : i32
    %c0_i32_1 = arith.constant 0 : i32
    return %c0_i32, %c0_i32_0 : i32, i32
  }
  func.func @transform_9(%arg0: i32) -> (i32, i32) {
    %c0_i32 = arith.constant 0 : i32
    %c0_i32_0 = arith.constant 0 : i32
    %c0_i32_1 = arith.constant 0 : i32
    return %c0_i32, %c0_i32_0 : i32, i32
  }
  func.func @transform_10(%arg0: i32) -> (i32, i32) {
    %c0_i32 = arith.constant 0 : i32
    %c0_i32_0 = arith.constant 0 : i32
    %c0_i32_1 = arith.constant 0 : i32
    return %c0_i32, %c0_i32_0 : i32, i32
  }
  func.func @transform_11(%arg0: i32) -> (i32, i32) {
    %c0_i32 = arith.constant 0 : i32
    %c0_i32_0 = arith.constant 0 : i32
    %c0_i32_1 = arith.constant 0 : i32
    return %c0_i32, %c0_i32_0 : i32, i32
  }
  func.func @transform_12(%arg0: i32) -> (i32, i32) {
    %c0_i32 = arith.constant 0 : i32
    %c0_i32_0 = arith.constant 0 : i32
    %c0_i32_1 = arith.constant 0 : i32
    return %c0_i32, %c0_i32_0 : i32, i32
  }
  func.func @transform_13(%arg0: i32) -> (i32, i32) {
    %c0_i32 = arith.constant 0 : i32
    %c0_i32_0 = arith.constant 0 : i32
    return %arg0, %c0_i32 : i32, i32
  }
}

module attributes {stable_mosaic.version = 11 : i64} {
  func.func @_mlp4_kernel(%arg0: i32, %arg1: memref<16x32xbf16, #tpu.memory_space<vmem>>, %arg2: memref<16x32xbf16, #tpu.memory_space<vmem>>, %arg3: memref<16x32xbf16, #tpu.memory_space<vmem>>, %arg4: memref<32x128xbf16, #tpu.memory_space<vmem>>, %arg5: memref<32x128xbf16, #tpu.memory_space<vmem>>, %arg6: memref<32x128xbf16, #tpu.memory_space<vmem>>, %arg7: memref<1x128xf32, #tpu.memory_space<vmem>>, %arg8: memref<128x128xbf16, #tpu.memory_space<vmem>>, %arg9: memref<1x128xf32, #tpu.memory_space<vmem>>, %arg10: memref<128x128xbf16, #tpu.memory_space<vmem>>, %arg11: memref<1x128xf32, #tpu.memory_space<vmem>>, %arg12: memref<128x32xbf16, #tpu.memory_space<vmem>>, %arg13: memref<1x32xf32, #tpu.memory_space<vmem>>, %arg14: memref<1x32xf32, #tpu.memory_space<vmem>>, %arg15: memref<1x32xf32, #tpu.memory_space<vmem>>, %arg16: memref<16x32xf32, #tpu.memory_space<vmem>>, %arg17: memref<16x32xbf16, #tpu.memory_space<vmem>>) attributes {dimension_semantics = [#tpu.dimension_semantics<parallel>], iteration_bounds = array<i64: 2>, scalar_prefetch = 0 : i64, scratch_operands = 0 : i64, tpu.core_type = #tpu.core_type<tc>, window_params = [{transform_indices = @transform_0, window_bounds = array<i64: 16, 32>}, {transform_indices = @transform_1, window_bounds = array<i64: 16, 32>}, {transform_indices = @transform_2, window_bounds = array<i64: 16, 32>}, {pipeline_mode = #tpu.pipeline_mode<synchronous>, transform_indices = @transform_3, window_bounds = array<i64: 32, 128>}, {pipeline_mode = #tpu.pipeline_mode<synchronous>, transform_indices = @transform_4, window_bounds = array<i64: 32, 128>}, {pipeline_mode = #tpu.pipeline_mode<synchronous>, transform_indices = @transform_5, window_bounds = array<i64: 32, 128>}, {pipeline_mode = #tpu.pipeline_mode<synchronous>, transform_indices = @transform_6, window_bounds = array<i64: 1, 128>}, {pipeline_mode = #tpu.pipeline_mode<synchronous>, transform_indices = @transform_7, window_bounds = array<i64: 128, 128>}, {pipeline_mode = #tpu.pipeline_mode<synchronous>, transform_indices = @transform_8, window_bounds = array<i64: 1, 128>}, {pipeline_mode = #tpu.pipeline_mode<synchronous>, transform_indices = @transform_9, window_bounds = array<i64: 128, 128>}, {pipeline_mode = #tpu.pipeline_mode<synchronous>, transform_indices = @transform_10, window_bounds = array<i64: 1, 128>}, {pipeline_mode = #tpu.pipeline_mode<synchronous>, transform_indices = @transform_11, window_bounds = array<i64: 128, 32>}, {pipeline_mode = #tpu.pipeline_mode<synchronous>, transform_indices = @transform_12, window_bounds = array<i64: 1, 32>}, {pipeline_mode = #tpu.pipeline_mode<synchronous>, transform_indices = @transform_13, window_bounds = array<i64: 1, 32>}, {pipeline_mode = #tpu.pipeline_mode<synchronous>, transform_indices = @transform_14, window_bounds = array<i64: 1, 32>}, {transform_indices = @transform_15, window_bounds = array<i64: 16, 32>}, {transform_indices = @transform_16, window_bounds = array<i64: 16, 32>}]} {
    %c0 = arith.constant 0 : index
    %c0_0 = arith.constant 0 : index
    %0 = vector.load %arg1[%c0, %c0_0] : memref<16x32xbf16, #tpu.memory_space<vmem>>, vector<16x32xbf16>
    %c0_1 = arith.constant 0 : index
    %c0_2 = arith.constant 0 : index
    %1 = vector.load %arg4[%c0_1, %c0_2] : memref<32x128xbf16, #tpu.memory_space<vmem>>, vector<32x128xbf16>
    %cst = arith.constant dense<0.000000e+00> : vector<16x128xf32>
    %2 = tpu.matmul %0, %1, %cst {dimension_numbers = #tpu.dot_dimension_numbers<[1], [0], [0], [1], [0, 0, 1, 1], [], []>} : vector<16x32xbf16>, vector<32x128xbf16>, vector<16x128xf32> -> vector<16x128xf32>
    %c0_3 = arith.constant 0 : index
    %c0_4 = arith.constant 0 : index
    %3 = vector.load %arg2[%c0_3, %c0_4] : memref<16x32xbf16, #tpu.memory_space<vmem>>, vector<16x32xbf16>
    %c0_5 = arith.constant 0 : index
    %c0_6 = arith.constant 0 : index
    %4 = vector.load %arg5[%c0_5, %c0_6] : memref<32x128xbf16, #tpu.memory_space<vmem>>, vector<32x128xbf16>
    %cst_7 = arith.constant dense<0.000000e+00> : vector<16x128xf32>
    %5 = tpu.matmul %3, %4, %cst_7 {dimension_numbers = #tpu.dot_dimension_numbers<[1], [0], [0], [1], [0, 0, 1, 1], [], []>} : vector<16x32xbf16>, vector<32x128xbf16>, vector<16x128xf32> -> vector<16x128xf32>
    %6 = arith.addf %2, %5 : vector<16x128xf32>
    %c0_8 = arith.constant 0 : index
    %c0_9 = arith.constant 0 : index
    %7 = vector.load %arg3[%c0_8, %c0_9] : memref<16x32xbf16, #tpu.memory_space<vmem>>, vector<16x32xbf16>
    %c0_10 = arith.constant 0 : index
    %c0_11 = arith.constant 0 : index
    %8 = vector.load %arg6[%c0_10, %c0_11] : memref<32x128xbf16, #tpu.memory_space<vmem>>, vector<32x128xbf16>
    %cst_12 = arith.constant dense<0.000000e+00> : vector<16x128xf32>
    %9 = tpu.matmul %7, %8, %cst_12 {dimension_numbers = #tpu.dot_dimension_numbers<[1], [0], [0], [1], [0, 0, 1, 1], [], []>} : vector<16x32xbf16>, vector<32x128xbf16>, vector<16x128xf32> -> vector<16x128xf32>
    %10 = arith.addf %6, %9 : vector<16x128xf32>
    %c0_13 = arith.constant 0 : index
    %c0_14 = arith.constant 0 : index
    %11 = vector.load %arg7[%c0_13, %c0_14] : memref<1x128xf32, #tpu.memory_space<vmem>>, vector<1x128xf32>
    %12 = vector.broadcast %11 : vector<1x128xf32> to vector<16x128xf32>
    %13 = arith.addf %10, %12 : vector<16x128xf32>
    %cst_15 = arith.constant 0.000000e+00 : f32
    %14 = vector.broadcast %cst_15 : f32 to vector<16x128xf32>
    %15 = arith.cmpf ogt, %13, %14 : vector<16x128xf32>
    %cst_16 = arith.constant 0.00999999977 : f32
    %16 = vector.broadcast %cst_16 : f32 to vector<16x128xf32>
    %17 = arith.mulf %16, %13 : vector<16x128xf32>
    %18 = arith.select %15, %13, %17 : vector<16x128xi1>, vector<16x128xf32>
    %19 = arith.truncf %18 : vector<16x128xf32> to vector<16x128xbf16>
    %c0_17 = arith.constant 0 : index
    %c0_18 = arith.constant 0 : index
    %20 = vector.load %arg8[%c0_17, %c0_18] : memref<128x128xbf16, #tpu.memory_space<vmem>>, vector<128x128xbf16>
    %cst_19 = arith.constant dense<0.000000e+00> : vector<16x128xf32>
    %21 = tpu.matmul %19, %20, %cst_19 {dimension_numbers = #tpu.dot_dimension_numbers<[1], [0], [0], [1], [0, 0, 1, 1], [], []>} : vector<16x128xbf16>, vector<128x128xbf16>, vector<16x128xf32> -> vector<16x128xf32>
    %c0_20 = arith.constant 0 : index
    %c0_21 = arith.constant 0 : index
    %22 = vector.load %arg9[%c0_20, %c0_21] : memref<1x128xf32, #tpu.memory_space<vmem>>, vector<1x128xf32>
    %23 = vector.broadcast %22 : vector<1x128xf32> to vector<16x128xf32>
    %24 = arith.addf %21, %23 : vector<16x128xf32>
    %cst_22 = arith.constant 0.000000e+00 : f32
    %25 = vector.broadcast %cst_22 : f32 to vector<16x128xf32>
    %26 = arith.cmpf ogt, %24, %25 : vector<16x128xf32>
    %cst_23 = arith.constant 0.00999999977 : f32
    %27 = vector.broadcast %cst_23 : f32 to vector<16x128xf32>
    %28 = arith.mulf %27, %24 : vector<16x128xf32>
    %29 = arith.select %26, %24, %28 : vector<16x128xi1>, vector<16x128xf32>
    %30 = arith.truncf %29 : vector<16x128xf32> to vector<16x128xbf16>
    %c0_24 = arith.constant 0 : index
    %c0_25 = arith.constant 0 : index
    %31 = vector.load %arg10[%c0_24, %c0_25] : memref<128x128xbf16, #tpu.memory_space<vmem>>, vector<128x128xbf16>
    %cst_26 = arith.constant dense<0.000000e+00> : vector<16x128xf32>
    %32 = tpu.matmul %30, %31, %cst_26 {dimension_numbers = #tpu.dot_dimension_numbers<[1], [0], [0], [1], [0, 0, 1, 1], [], []>} : vector<16x128xbf16>, vector<128x128xbf16>, vector<16x128xf32> -> vector<16x128xf32>
    %c0_27 = arith.constant 0 : index
    %c0_28 = arith.constant 0 : index
    %33 = vector.load %arg11[%c0_27, %c0_28] : memref<1x128xf32, #tpu.memory_space<vmem>>, vector<1x128xf32>
    %34 = vector.broadcast %33 : vector<1x128xf32> to vector<16x128xf32>
    %35 = arith.addf %32, %34 : vector<16x128xf32>
    %cst_29 = arith.constant 0.000000e+00 : f32
    %36 = vector.broadcast %cst_29 : f32 to vector<16x128xf32>
    %37 = arith.cmpf ogt, %35, %36 : vector<16x128xf32>
    %cst_30 = arith.constant 0.00999999977 : f32
    %38 = vector.broadcast %cst_30 : f32 to vector<16x128xf32>
    %39 = arith.mulf %38, %35 : vector<16x128xf32>
    %40 = arith.select %37, %35, %39 : vector<16x128xi1>, vector<16x128xf32>
    %41 = arith.truncf %40 : vector<16x128xf32> to vector<16x128xbf16>
    %c0_31 = arith.constant 0 : index
    %c0_32 = arith.constant 0 : index
    %42 = vector.load %arg12[%c0_31, %c0_32] : memref<128x32xbf16, #tpu.memory_space<vmem>>, vector<128x32xbf16>
    %cst_33 = arith.constant dense<0.000000e+00> : vector<16x32xf32>
    %43 = tpu.matmul %41, %42, %cst_33 {dimension_numbers = #tpu.dot_dimension_numbers<[1], [0], [0], [1], [0, 0, 1, 1], [], []>} : vector<16x128xbf16>, vector<128x32xbf16>, vector<16x32xf32> -> vector<16x32xf32>
    %c0_34 = arith.constant 0 : index
    %c0_35 = arith.constant 0 : index
    %44 = vector.load %arg13[%c0_34, %c0_35] : memref<1x32xf32, #tpu.memory_space<vmem>>, vector<1x32xf32>
    %45 = vector.broadcast %44 : vector<1x32xf32> to vector<16x32xf32>
    %46 = arith.addf %43, %45 : vector<16x32xf32>
    %cst_36 = arith.constant dense<0.000000e+00> : vector<16xf32>
    %47 = vector.multi_reduction <add>, %46, %cst_36 [1] : vector<16x32xf32> to vector<16xf32>
    %48 = vector.shape_cast %47 : vector<16xf32> to vector<16x1xf32>
    %cst_37 = arith.constant 3.200000e+01 : f32
    %49 = vector.broadcast %cst_37 : f32 to vector<16x1xf32>
    %50 = arith.divf %48, %49 : vector<16x1xf32>
    %51 = vector.broadcast %50 : vector<16x1xf32> to vector<16x32xf32>
    %52 = arith.subf %46, %51 : vector<16x32xf32>
    %53 = arith.mulf %52, %52 : vector<16x32xf32>
    %cst_38 = arith.constant dense<0.000000e+00> : vector<16xf32>
    %54 = vector.multi_reduction <add>, %53, %cst_38 [1] : vector<16x32xf32> to vector<16xf32>
    %55 = vector.shape_cast %54 : vector<16xf32> to vector<16x1xf32>
    %cst_39 = arith.constant 3.200000e+01 : f32
    %56 = vector.broadcast %cst_39 : f32 to vector<16x1xf32>
    %57 = arith.divf %55, %56 : vector<16x1xf32>
    %58 = vector.broadcast %50 : vector<16x1xf32> to vector<16x32xf32>
    %59 = arith.subf %46, %58 : vector<16x32xf32>
    %cst_40 = arith.constant 9.99999974E-6 : f32
    %60 = vector.broadcast %cst_40 : f32 to vector<16x1xf32>
    %61 = arith.addf %57, %60 : vector<16x1xf32>
    %62 = math.rsqrt %61 : vector<16x1xf32>
    %63 = vector.broadcast %62 : vector<16x1xf32> to vector<16x32xf32>
    %64 = arith.mulf %59, %63 : vector<16x32xf32>
    %c0_41 = arith.constant 0 : index
    %c0_42 = arith.constant 0 : index
    %65 = vector.load %arg14[%c0_41, %c0_42] : memref<1x32xf32, #tpu.memory_space<vmem>>, vector<1x32xf32>
    %66 = vector.broadcast %65 : vector<1x32xf32> to vector<16x32xf32>
    %67 = arith.mulf %64, %66 : vector<16x32xf32>
    %c0_43 = arith.constant 0 : index
    %c0_44 = arith.constant 0 : index
    %68 = vector.load %arg15[%c0_43, %c0_44] : memref<1x32xf32, #tpu.memory_space<vmem>>, vector<1x32xf32>
    %69 = vector.broadcast %68 : vector<1x32xf32> to vector<16x32xf32>
    %70 = arith.addf %67, %69 : vector<16x32xf32>
    %c0_45 = arith.constant 0 : index
    %c0_46 = arith.constant 0 : index
    %71 = vector.load %arg16[%c0_45, %c0_46] : memref<16x32xf32, #tpu.memory_space<vmem>>, vector<16x32xf32>
    tpu.vector_store %arg16[%c0_45, %c0_46], %70 {strides = array<i32>} : memref<16x32xf32, #tpu.memory_space<vmem>>, vector<16x32xf32>,
    %c0_47 = arith.constant 0 : index
    %c0_48 = arith.constant 0 : index
    %72 = vector.load %arg3[%c0_47, %c0_48] : memref<16x32xbf16, #tpu.memory_space<vmem>>, vector<16x32xbf16>
    %73 = arith.extf %72 : vector<16x32xbf16> to vector<16x32xf32>
    %74 = arith.addf %70, %73 : vector<16x32xf32>
    %75 = arith.truncf %74 : vector<16x32xf32> to vector<16x32xbf16>
    %c0_49 = arith.constant 0 : index
    %c0_50 = arith.constant 0 : index
    %76 = vector.load %arg17[%c0_49, %c0_50] : memref<16x32xbf16, #tpu.memory_space<vmem>>, vector<16x32xbf16>
    tpu.vector_store %arg17[%c0_49, %c0_50], %75 {strides = array<i32>} : memref<16x32xbf16, #tpu.memory_space<vmem>>, vector<16x32xbf16>,
    return
  }
  func.func @transform_0(%arg0: i32) -> (i32, i32) {
    %c0_i32 = arith.constant 0 : i32
    %c0_i32_0 = arith.constant 0 : i32
    return %arg0, %c0_i32 : i32, i32
  }
  func.func @transform_1(%arg0: i32) -> (i32, i32) {
    %c0_i32 = arith.constant 0 : i32
    %c0_i32_0 = arith.constant 0 : i32
    return %arg0, %c0_i32 : i32, i32
  }
  func.func @transform_2(%arg0: i32) -> (i32, i32) {
    %c0_i32 = arith.constant 0 : i32
    %c0_i32_0 = arith.constant 0 : i32
    return %arg0, %c0_i32 : i32, i32
  }
  func.func @transform_3(%arg0: i32) -> (i32, i32) {
    %c0_i32 = arith.constant 0 : i32
    %c0_i32_0 = arith.constant 0 : i32
    %c0_i32_1 = arith.constant 0 : i32
    return %c0_i32, %c0_i32_0 : i32, i32
  }
  func.func @transform_4(%arg0: i32) -> (i32, i32) {
    %c0_i32 = arith.constant 0 : i32
    %c0_i32_0 = arith.constant 0 : i32
    %c0_i32_1 = arith.constant 0 : i32
    return %c0_i32, %c0_i32_0 : i32, i32
  }
  func.func @transform_5(%arg0: i32) -> (i32, i32) {
    %c0_i32 = arith.constant 0 : i32
    %c0_i32_0 = arith.constant 0 : i32
    %c0_i32_1 = arith.constant 0 : i32
    return %c0_i32, %c0_i32_0 : i32, i32
  }
  func.func @transform_6(%arg0: i32) -> (i32, i32) {
    %c0_i32 = arith.constant 0 : i32
    %c0_i32_0 = arith.constant 0 : i32
    %c0_i32_1 = arith.constant 0 : i32
    return %c0_i32, %c0_i32_0 : i32, i32
  }
  func.func @transform_7(%arg0: i32) -> (i32, i32) {
    %c0_i32 = arith.constant 0 : i32
    %c0_i32_0 = arith.constant 0 : i32
    %c0_i32_1 = arith.constant 0 : i32
    return %c0_i32, %c0_i32_0 : i32, i32
  }
  func.func @transform_8(%arg0: i32) -> (i32, i32) {
    %c0_i32 = arith.constant 0 : i32
    %c0_i32_0 = arith.constant 0 : i32
    %c0_i32_1 = arith.constant 0 : i32
    return %c0_i32, %c0_i32_0 : i32, i32
  }
  func.func @transform_9(%arg0: i32) -> (i32, i32) {
    %c0_i32 = arith.constant 0 : i32
    %c0_i32_0 = arith.constant 0 : i32
    %c0_i32_1 = arith.constant 0 : i32
    return %c0_i32, %c0_i32_0 : i32, i32
  }
  func.func @transform_10(%arg0: i32) -> (i32, i32) {
    %c0_i32 = arith.constant 0 : i32
    %c0_i32_0 = arith.constant 0 : i32
    %c0_i32_1 = arith.constant 0 : i32
    return %c0_i32, %c0_i32_0 : i32, i32
  }
  func.func @transform_11(%arg0: i32) -> (i32, i32) {
    %c0_i32 = arith.constant 0 : i32
    %c0_i32_0 = arith.constant 0 : i32
    %c0_i32_1 = arith.constant 0 : i32
    return %c0_i32, %c0_i32_0 : i32, i32
  }
  func.func @transform_12(%arg0: i32) -> (i32, i32) {
    %c0_i32 = arith.constant 0 : i32
    %c0_i32_0 = arith.constant 0 : i32
    %c0_i32_1 = arith.constant 0 : i32
    return %c0_i32, %c0_i32_0 : i32, i32
  }
  func.func @transform_13(%arg0: i32) -> (i32, i32) {
    %c0_i32 = arith.constant 0 : i32
    %c0_i32_0 = arith.constant 0 : i32
    %c0_i32_1 = arith.constant 0 : i32
    return %c0_i32, %c0_i32_0 : i32, i32
  }
  func.func @transform_14(%arg0: i32) -> (i32, i32) {
    %c0_i32 = arith.constant 0 : i32
    %c0_i32_0 = arith.constant 0 : i32
    %c0_i32_1 = arith.constant 0 : i32
    return %c0_i32, %c0_i32_0 : i32, i32
  }
  func.func @transform_15(%arg0: i32) -> (i32, i32) {
    %c0_i32 = arith.constant 0 : i32
    %c0_i32_0 = arith.constant 0 : i32
    return %arg0, %c0_i32 : i32, i32
  }
  func.func @transform_16(%arg0: i32) -> (i32, i32) {
    %c0_i32 = arith.constant 0 : i32
    %c0_i32_0 = arith.constant 0 : i32
    return %arg0, %c0_i32 : i32, i32
  }
}

module attributes {stable_mosaic.version = 11 : i64} {
  func.func @_mlp4_kernel(%arg0: i32, %arg1: memref<16x32xbf16, #tpu.memory_space<vmem>>, %arg2: memref<32x128xbf16, #tpu.memory_space<vmem>>, %arg3: memref<1x128xf32, #tpu.memory_space<vmem>>, %arg4: memref<128x128xbf16, #tpu.memory_space<vmem>>, %arg5: memref<1x128xf32, #tpu.memory_space<vmem>>, %arg6: memref<128x128xbf16, #tpu.memory_space<vmem>>, %arg7: memref<1x128xf32, #tpu.memory_space<vmem>>, %arg8: memref<128x128xbf16, #tpu.memory_space<vmem>>, %arg9: memref<1x128xf32, #tpu.memory_space<vmem>>, %arg10: memref<16x128xf32, #tpu.memory_space<vmem>>) attributes {dimension_semantics = [#tpu.dimension_semantics<parallel>], iteration_bounds = array<i64: 1>, scalar_prefetch = 0 : i64, scratch_operands = 0 : i64, tpu.core_type = #tpu.core_type<tc>, window_params = [{transform_indices = @transform_0, window_bounds = array<i64: 16, 32>}, {pipeline_mode = #tpu.pipeline_mode<synchronous>, transform_indices = @transform_1, window_bounds = array<i64: 32, 128>}, {pipeline_mode = #tpu.pipeline_mode<synchronous>, transform_indices = @transform_2, window_bounds = array<i64: 1, 128>}, {pipeline_mode = #tpu.pipeline_mode<synchronous>, transform_indices = @transform_3, window_bounds = array<i64: 128, 128>}, {pipeline_mode = #tpu.pipeline_mode<synchronous>, transform_indices = @transform_4, window_bounds = array<i64: 1, 128>}, {pipeline_mode = #tpu.pipeline_mode<synchronous>, transform_indices = @transform_5, window_bounds = array<i64: 128, 128>}, {pipeline_mode = #tpu.pipeline_mode<synchronous>, transform_indices = @transform_6, window_bounds = array<i64: 1, 128>}, {pipeline_mode = #tpu.pipeline_mode<synchronous>, transform_indices = @transform_7, window_bounds = array<i64: 128, 128>}, {pipeline_mode = #tpu.pipeline_mode<synchronous>, transform_indices = @transform_8, window_bounds = array<i64: 1, 128>}, {transform_indices = @transform_9, window_bounds = array<i64: 16, 128>}]} {
    %c0 = arith.constant 0 : index
    %c0_0 = arith.constant 0 : index
    %0 = vector.load %arg1[%c0, %c0_0] : memref<16x32xbf16, #tpu.memory_space<vmem>>, vector<16x32xbf16>
    %c0_1 = arith.constant 0 : index
    %c0_2 = arith.constant 0 : index
    %1 = vector.load %arg2[%c0_1, %c0_2] : memref<32x128xbf16, #tpu.memory_space<vmem>>, vector<32x128xbf16>
    %cst = arith.constant dense<0.000000e+00> : vector<16x128xf32>
    %2 = tpu.matmul %0, %1, %cst {dimension_numbers = #tpu.dot_dimension_numbers<[1], [0], [0], [1], [0, 0, 1, 1], [], []>} : vector<16x32xbf16>, vector<32x128xbf16>, vector<16x128xf32> -> vector<16x128xf32>
    %c0_3 = arith.constant 0 : index
    %c0_4 = arith.constant 0 : index
    %3 = vector.load %arg3[%c0_3, %c0_4] : memref<1x128xf32, #tpu.memory_space<vmem>>, vector<1x128xf32>
    %4 = vector.broadcast %3 : vector<1x128xf32> to vector<16x128xf32>
    %5 = arith.addf %2, %4 : vector<16x128xf32>
    %cst_5 = arith.constant 0.000000e+00 : f32
    %6 = vector.broadcast %cst_5 : f32 to vector<16x128xf32>
    %7 = arith.cmpf ogt, %5, %6 : vector<16x128xf32>
    %cst_6 = arith.constant 0.00999999977 : f32
    %8 = vector.broadcast %cst_6 : f32 to vector<16x128xf32>
    %9 = arith.mulf %8, %5 : vector<16x128xf32>
    %10 = arith.select %7, %5, %9 : vector<16x128xi1>, vector<16x128xf32>
    %11 = arith.truncf %10 : vector<16x128xf32> to vector<16x128xbf16>
    %c0_7 = arith.constant 0 : index
    %c0_8 = arith.constant 0 : index
    %12 = vector.load %arg4[%c0_7, %c0_8] : memref<128x128xbf16, #tpu.memory_space<vmem>>, vector<128x128xbf16>
    %cst_9 = arith.constant dense<0.000000e+00> : vector<16x128xf32>
    %13 = tpu.matmul %11, %12, %cst_9 {dimension_numbers = #tpu.dot_dimension_numbers<[1], [0], [0], [1], [0, 0, 1, 1], [], []>} : vector<16x128xbf16>, vector<128x128xbf16>, vector<16x128xf32> -> vector<16x128xf32>
    %c0_10 = arith.constant 0 : index
    %c0_11 = arith.constant 0 : index
    %14 = vector.load %arg5[%c0_10, %c0_11] : memref<1x128xf32, #tpu.memory_space<vmem>>, vector<1x128xf32>
    %15 = vector.broadcast %14 : vector<1x128xf32> to vector<16x128xf32>
    %16 = arith.addf %13, %15 : vector<16x128xf32>
    %cst_12 = arith.constant 0.000000e+00 : f32
    %17 = vector.broadcast %cst_12 : f32 to vector<16x128xf32>
    %18 = arith.cmpf ogt, %16, %17 : vector<16x128xf32>
    %cst_13 = arith.constant 0.00999999977 : f32
    %19 = vector.broadcast %cst_13 : f32 to vector<16x128xf32>
    %20 = arith.mulf %19, %16 : vector<16x128xf32>
    %21 = arith.select %18, %16, %20 : vector<16x128xi1>, vector<16x128xf32>
    %22 = arith.truncf %21 : vector<16x128xf32> to vector<16x128xbf16>
    %c0_14 = arith.constant 0 : index
    %c0_15 = arith.constant 0 : index
    %23 = vector.load %arg6[%c0_14, %c0_15] : memref<128x128xbf16, #tpu.memory_space<vmem>>, vector<128x128xbf16>
    %cst_16 = arith.constant dense<0.000000e+00> : vector<16x128xf32>
    %24 = tpu.matmul %22, %23, %cst_16 {dimension_numbers = #tpu.dot_dimension_numbers<[1], [0], [0], [1], [0, 0, 1, 1], [], []>} : vector<16x128xbf16>, vector<128x128xbf16>, vector<16x128xf32> -> vector<16x128xf32>
    %c0_17 = arith.constant 0 : index
    %c0_18 = arith.constant 0 : index
    %25 = vector.load %arg7[%c0_17, %c0_18] : memref<1x128xf32, #tpu.memory_space<vmem>>, vector<1x128xf32>
    %26 = vector.broadcast %25 : vector<1x128xf32> to vector<16x128xf32>
    %27 = arith.addf %24, %26 : vector<16x128xf32>
    %cst_19 = arith.constant 0.000000e+00 : f32
    %28 = vector.broadcast %cst_19 : f32 to vector<16x128xf32>
    %29 = arith.cmpf ogt, %27, %28 : vector<16x128xf32>
    %cst_20 = arith.constant 0.00999999977 : f32
    %30 = vector.broadcast %cst_20 : f32 to vector<16x128xf32>
    %31 = arith.mulf %30, %27 : vector<16x128xf32>
    %32 = arith.select %29, %27, %31 : vector<16x128xi1>, vector<16x128xf32>
    %33 = arith.truncf %32 : vector<16x128xf32> to vector<16x128xbf16>
    %c0_21 = arith.constant 0 : index
    %c0_22 = arith.constant 0 : index
    %34 = vector.load %arg8[%c0_21, %c0_22] : memref<128x128xbf16, #tpu.memory_space<vmem>>, vector<128x128xbf16>
    %cst_23 = arith.constant dense<0.000000e+00> : vector<16x128xf32>
    %35 = tpu.matmul %33, %34, %cst_23 {dimension_numbers = #tpu.dot_dimension_numbers<[1], [0], [0], [1], [0, 0, 1, 1], [], []>} : vector<16x128xbf16>, vector<128x128xbf16>, vector<16x128xf32> -> vector<16x128xf32>
    %c0_24 = arith.constant 0 : index
    %c0_25 = arith.constant 0 : index
    %36 = vector.load %arg9[%c0_24, %c0_25] : memref<1x128xf32, #tpu.memory_space<vmem>>, vector<1x128xf32>
    %37 = vector.broadcast %36 : vector<1x128xf32> to vector<16x128xf32>
    %38 = arith.addf %35, %37 : vector<16x128xf32>
    %c0_26 = arith.constant 0 : index
    %c0_27 = arith.constant 0 : index
    %39 = vector.load %arg10[%c0_26, %c0_27] : memref<16x128xf32, #tpu.memory_space<vmem>>, vector<16x128xf32>
    tpu.vector_store %arg10[%c0_26, %c0_27], %38 {strides = array<i32>} : memref<16x128xf32, #tpu.memory_space<vmem>>, vector<16x128xf32>,
    return
  }
  func.func @transform_0(%arg0: i32) -> (i32, i32) {
    %c0_i32 = arith.constant 0 : i32
    %c0_i32_0 = arith.constant 0 : i32
    return %arg0, %c0_i32 : i32, i32
  }
  func.func @transform_1(%arg0: i32) -> (i32, i32) {
    %c0_i32 = arith.constant 0 : i32
    %c0_i32_0 = arith.constant 0 : i32
    %c0_i32_1 = arith.constant 0 : i32
    return %c0_i32, %c0_i32_0 : i32, i32
  }
  func.func @transform_2(%arg0: i32) -> (i32, i32) {
    %c0_i32 = arith.constant 0 : i32
    %c0_i32_0 = arith.constant 0 : i32
    %c0_i32_1 = arith.constant 0 : i32
    return %c0_i32, %c0_i32_0 : i32, i32
  }
  func.func @transform_3(%arg0: i32) -> (i32, i32) {
    %c0_i32 = arith.constant 0 : i32
    %c0_i32_0 = arith.constant 0 : i32
    %c0_i32_1 = arith.constant 0 : i32
    return %c0_i32, %c0_i32_0 : i32, i32
  }
  func.func @transform_4(%arg0: i32) -> (i32, i32) {
    %c0_i32 = arith.constant 0 : i32
    %c0_i32_0 = arith.constant 0 : i32
    %c0_i32_1 = arith.constant 0 : i32
    return %c0_i32, %c0_i32_0 : i32, i32
  }
  func.func @transform_5(%arg0: i32) -> (i32, i32) {
    %c0_i32 = arith.constant 0 : i32
    %c0_i32_0 = arith.constant 0 : i32
    %c0_i32_1 = arith.constant 0 : i32
    return %c0_i32, %c0_i32_0 : i32, i32
  }
  func.func @transform_6(%arg0: i32) -> (i32, i32) {
    %c0_i32 = arith.constant 0 : i32
    %c0_i32_0 = arith.constant 0 : i32
    %c0_i32_1 = arith.constant 0 : i32
    return %c0_i32, %c0_i32_0 : i32, i32
  }
  func.func @transform_7(%arg0: i32) -> (i32, i32) {
    %c0_i32 = arith.constant 0 : i32
    %c0_i32_0 = arith.constant 0 : i32
    %c0_i32_1 = arith.constant 0 : i32
    return %c0_i32, %c0_i32_0 : i32, i32
  }
  func.func @transform_8(%arg0: i32) -> (i32, i32) {
    %c0_i32 = arith.constant 0 : i32
    %c0_i32_0 = arith.constant 0 : i32
    %c0_i32_1 = arith.constant 0 : i32
    return %c0_i32, %c0_i32_0 : i32, i32
  }
  func.func @transform_9(%arg0: i32) -> (i32, i32) {
    %c0_i32 = arith.constant 0 : i32
    %c0_i32_0 = arith.constant 0 : i32
    return %arg0, %c0_i32 : i32, i32
  }
}

</mosaic_0001>

<llo_original>
// kernel: gns_forward.9
$region0: #{gns_forward.9}
  #allocation0 [shape = 'u32[]', space=smem, size = 0x4, offset = 0x4, fixed_abs, tag = 'smem constant byte address 0x4 - core index']
  #allocation1 [shape = 'u32[144,128]{1,0:T(1,128)}', space=vmem, size = 0x12000, scoped, tag = 'internal scratch']
  %s0 = inlined_call_operand.vmem [shape: f32[16,8], index: 0, kind: input, shape index: {}]
  %s1 = inlined_call_operand.vmem [shape: bf16[8,128], index: 1, kind: input, shape index: {}]
  %s2 = inlined_call_operand.vmem [shape: f32[1,128], index: 2, kind: input, shape index: {}]
  %s3 = inlined_call_operand.vmem [shape: bf16[128,128], index: 3, kind: input, shape index: {}]
  %s4 = inlined_call_operand.vmem [shape: f32[1,128], index: 4, kind: input, shape index: {}]
  %s5 = inlined_call_operand.vmem [shape: bf16[128,128], index: 5, kind: input, shape index: {}]
  %s6 = inlined_call_operand.vmem [shape: f32[1,128], index: 6, kind: input, shape index: {}]
  %s7 = inlined_call_operand.vmem [shape: bf16[128,32], index: 7, kind: input, shape index: {}]
  %s8 = inlined_call_operand.vmem [shape: f32[1,32], index: 8, kind: input, shape index: {}]
  %s9 = inlined_call_operand.vmem [shape: f32[1,32], index: 9, kind: input, shape index: {}]
  %s10 = inlined_call_operand.vmem [shape: f32[1,32], index: 10, kind: input, shape index: {}]
  %s11 = inlined_call_operand.vmem [shape: bf16[16,32], index: 11, kind: output, shape index: {}]
  %s12 = sld [smem:[#allocation0]]
  $region54: #{gns_forward.9} parent=0
    _
  %s14 = ssub.s32 1, %s12
  %s15 = scalar_select 0, %s14, %s12
  // Predicated region
  $region2: #{gns_forward.9} parent=0 // pred_check
    _
  $region3: #{gns_forward.9} parent=0 // pred_check_branch
    %17 = sbr.rel (0) target = $region5
  $region4: #{gns_forward.9} parent=0 // pred_region
    _
  $region5: #{gns_forward.9} parent=0 // pred_fallthru
    _
  // Predicated region
  $region6: #{gns_forward.9} parent=0 // pred_check
    _
  $region7: #{gns_forward.9} parent=0 // pred_check_branch
    %19 = sbr.rel (0) target = $region9
  $region8: #{gns_forward.9} parent=0 // pred_region
    _
  $region9: #{gns_forward.9} parent=0 // pred_fallthru
    _
  // Predicated region
  $region10: #{gns_forward.9} parent=0 // pred_check
    _
  $region11: #{gns_forward.9} parent=0 // pred_check_branch
    %21 = sbr.rel (0) target = $region13
  $region12: #{gns_forward.9} parent=0 // pred_region
    _
  $region13: #{gns_forward.9} parent=0 // pred_fallthru
    _
  // Predicated region
  $region14: #{gns_forward.9} parent=0 // pred_check
    _
  $region15: #{gns_forward.9} parent=0 // pred_check_branch
    %23 = sbr.rel (0) target = $region17
  $region16: #{gns_forward.9} parent=0 // pred_region
    _
  $region17: #{gns_forward.9} parent=0 // pred_fallthru
    _
  // Predicated region
  $region18: #{gns_forward.9} parent=0 // pred_check
    _
  $region19: #{gns_forward.9} parent=0 // pred_check_branch
    %25 = sbr.rel (0) target = $region21
  $region20: #{gns_forward.9} parent=0 // pred_region
    _
  $region21: #{gns_forward.9} parent=0 // pred_fallthru
    _
  // Predicated region
  $region22: #{gns_forward.9} parent=0 // pred_check
    _
  $region23: #{gns_forward.9} parent=0 // pred_check_branch
    %27 = sbr.rel (0) target = $region25
  $region24: #{gns_forward.9} parent=0 // pred_region
    _
  $region25: #{gns_forward.9} parent=0 // pred_fallthru
    _
  // Predicated region
  $region26: #{gns_forward.9} parent=0 // pred_check
    _
  $region27: #{gns_forward.9} parent=0 // pred_check_branch
    %29 = sbr.rel (0) target = $region29
  $region28: #{gns_forward.9} parent=0 // pred_region
    _
  $region29: #{gns_forward.9} parent=0 // pred_fallthru
    _
  // Predicated region
  $region30: #{gns_forward.9} parent=0 // pred_check
    _
  $region31: #{gns_forward.9} parent=0 // pred_check_branch
    %31 = sbr.rel (0) target = $region33
  $region32: #{gns_forward.9} parent=0 // pred_region
    _
  $region33: #{gns_forward.9} parent=0 // pred_fallthru
    _
  // Predicated region
  $region34: #{gns_forward.9} parent=0 // pred_check
    _
  $region35: #{gns_forward.9} parent=0 // pred_check_branch
    %33 = sbr.rel (0) target = $region37
  $region36: #{gns_forward.9} parent=0 // pred_region
    _
  $region37: #{gns_forward.9} parent=0 // pred_fallthru
    _
  // Predicated region
  $region38: #{gns_forward.9} parent=0 // pred_check
    _
  $region39: #{gns_forward.9} parent=0 // pred_check_branch
    %35 = sbr.rel (0) target = $region41
  $region40: #{gns_forward.9} parent=0 // pred_region
    _
  $region41: #{gns_forward.9} parent=0 // pred_fallthru
    _
  // Predicated region
  $region42: #{gns_forward.9} parent=0 // pred_check
    _
  $region43: #{gns_forward.9} parent=0 // pred_check_branch
    %37 = sbr.rel (0) target = $region45
  $region44: #{gns_forward.9} parent=0 // pred_region
    _
  $region45: #{gns_forward.9} parent=0 // pred_fallthru
    _
  %v39 = vld [vmem:[%s0] sm:$0xff]
  %v40 = vld [vmem:[%s0 + $0x8] sm:$0xff]
  %v41 = vpack.c.bf16 %v40, %v39
  %v42 = vld [vmem:[%s1] sm:$0xf]
  %v43 = vld [vmem:[%s2] sm:$0x1]
  %v45 = vlaneseq
  %v46 = vshrl.u32 %v45, 7
  %v47 = vsub.s32 0, %v46
  %v48 = vrot.slane %v43, %v47
  %vm50 = vcmask 64512
  %v52 = vsel %vm50, %v41, 0
  %vm54 = vcmask 1043456
  %v56 = vsel %vm54, %v42, 0
  %58 = vmatprep.subr.bf16.mxu0 0
  %59 = vmatpush1.bf16.msra.mxu0 %v56
  %60 = vmatprep.subr.bf16.mxu0 0
  %61 = vmatpush1.bf16.msra.mxu0 0
  %62 = vmatprep.subr.bf16.mxu0 0
  %63 = vmatpush1.bf16.msra.mxu0 0
  %64 = vmatprep.subr.bf16.mxu0 0
  %65 = vmatpush1.bf16.msra.mxu0 0
  %66 = vmatprep.subr.bf16.mxu0 0
  %67 = vmatpush1.bf16.msra.mxu0 0
  %68 = vmatprep.subr.bf16.mxu0 0
  %69 = vmatpush1.bf16.msra.mxu0 0
  %70 = vmatprep.subr.bf16.mxu0 0
  %71 = vmatpush1.bf16.msra.mxu0 0
  %72 = vmatprep.subr.bf16.mxu0 0
  %73 = vmatpush1.bf16.msra.mxu0 0
  %74 = vmatprep.subr.bf16.mxu0 0
  %75 = vmatpush1.bf16.msra.mxu0 0
  %76 = vmatprep.subr.bf16.mxu0 0
  %77 = vmatpush1.bf16.msra.mxu0 0
  %78 = vmatprep.subr.bf16.mxu0 0
  %79 = vmatpush1.bf16.msra.mxu0 0
  %80 = vmatprep.subr.bf16.mxu0 0
  %81 = vmatpush1.bf16.msra.mxu0 0
  %82 = vmatprep.subr.bf16.mxu0 0
  %83 = vmatpush1.bf16.msra.mxu0 0
  %84 = vmatprep.subr.bf16.mxu0 0
  %85 = vmatpush1.bf16.msra.mxu0 0
  %86 = vmatprep.subr.bf16.mxu0 0
  %87 = vmatpush1.bf16.msra.mxu0 0
  %88 = vmatprep.subr.bf16.mxu0 0
  %89 = vmatpush1.bf16.msra.mxu0 0
  %90 = vmatprep.mubr.bf16.mxu0 0
  %91 = vmatmul.mubr.bf16.gmra.mrb[0].mxu0 %v52
  %v92 = vpop.f32.mrb[0].mxu0
  %v93 = vadd.f32 %v48, %v92
  %v94 = vpop.f32.mrb[0].mxu0
  %v95 = vpop.f32.mrb[0].mxu0
  %v96 = vadd.f32 %v48, %v95
  %v97 = vpop.f32.mrb[0].mxu0
  %98 = vdwg.mxu0
  %vm99 = vcmp.gt.f32.partialorder %v93, 0.0
  %vm100 = vcmp.gt.f32.partialorder %v96, 0.0
  %v101 = vmul.f32 %v93, 0.01
  %v102 = vmul.f32 %v96, 0.01
  %v103 = vsel %vm99, %v93, %v101
  %v104 = vsel %vm100, %v96, %v102
  %v105 = vpack.c.bf16 %v104, %v103
  %v106 = vld [vmem:[%s3] sm:$0xf]
  %v107 = vld [vmem:[%s3 + $0x4] sm:$0xf]
  %v108 = vld [vmem:[%s3 + $0x8] sm:$0xf]
  %v109 = vld [vmem:[%s3 + $0xc] sm:$0xf]
  %v110 = vld [vmem:[%s3 + $0x10] sm:$0xf]
  %v111 = vld [vmem:[%s3 + $0x14] sm:$0xf]
  %v112 = vld [vmem:[%s3 + $0x18] sm:$0xf]
  %v113 = vld [vmem:[%s3 + $0x1c] sm:$0xf]
  %v114 = vld [vmem:[%s3 + $0x20] sm:$0xf]
  %v115 = vld [vmem:[%s3 + $0x24] sm:$0xf]
  %v116 = vld [vmem:[%s3 + $0x28] sm:$0xf]
  %v117 = vld [vmem:[%s3 + $0x2c] sm:$0xf]
  %v118 = vld [vmem:[%s3 + $0x30] sm:$0xf]
  %v119 = vld [vmem:[%s3 + $0x34] sm:$0xf]
  %v120 = vld [vmem:[%s3 + $0x38] sm:$0xf]
  %v121 = vld [vmem:[%s3 + $0x3c] sm:$0xf]
  %v122 = vld [vmem:[%s4] sm:$0x1]
  %v124 = vlaneseq
  %v125 = vshrl.u32 %v124, 7
  %v126 = vsub.s32 0, %v125
  %v127 = vrot.slane %v122, %v126
  %v145 = vunpack.c.l.b16 %v106
  %v146 = vunpack.c.l.b16 %v107
  %v147 = vunpack.c.l.b16 %v108
  %v148 = vunpack.c.l.b16 %v109
  %v149 = vunpack.c.l.b16 %v110
  %v150 = vunpack.c.l.b16 %v111
  %v151 = vunpack.c.l.b16 %v112
  %v152 = vunpack.c.l.b16 %v113
  %v153 = vunpack.c.l.b16 %v114
  %v154 = vunpack.c.l.b16 %v115
  %v155 = vunpack.c.l.b16 %v116
  %v156 = vunpack.c.l.b16 %v117
  %v157 = vunpack.c.l.b16 %v118
  %v158 = vunpack.c.l.b16 %v119
  %v159 = vunpack.c.l.b16 %v120
  %v160 = vunpack.c.l.b16 %v121
  %v161 = vpack.c.b16 %v146, %v145
  %v162 = vpack.c.b16 %v148, %v147
  %v163 = vpack.c.b16 %v150, %v149
  %v164 = vpack.c.b16 %v152, %v151
  %v165 = vpack.c.b16 %v154, %v153
  %v166 = vpack.c.b16 %v156, %v155
  %v167 = vpack.c.b16 %v158, %v157
  %v168 = vpack.c.b16 %v160, %v159
  %177 = vmatprep.subr.bf16.mxu0 0
  %178 = vmatpush1.bf16.msra.mxu0 %v161
  %179 = vmatprep.subr.bf16.mxu0 0
  %180 = vmatpush1.bf16.msra.mxu0 %v162
  %181 = vmatprep.subr.bf16.mxu0 0
  %182 = vmatpush1.bf16.msra.mxu0 %v163
  %183 = vmatprep.subr.bf16.mxu0 0
  %184 = vmatpush1.bf16.msra.mxu0 %v164
  %185 = vmatprep.subr.bf16.mxu0 0
  %186 = vmatpush1.bf16.msra.mxu0 %v165
  %187 = vmatprep.subr.bf16.mxu0 0
  %188 = vmatpush1.bf16.msra.mxu0 %v166
  %189 = vmatprep.subr.bf16.mxu0 0
  %190 = vmatpush1.bf16.msra.mxu0 %v167
  %191 = vmatprep.subr.bf16.mxu0 0
  %192 = vmatpush1.bf16.msra.mxu0 %v168
  %193 = vmatprep.subr.bf16.mxu0 0
  %194 = vmatpush1.bf16.msra.mxu0 0
  %195 = vmatprep.subr.bf16.mxu0 0
  %196 = vmatpush1.bf16.msra.mxu0 0
  %197 = vmatprep.subr.bf16.mxu0 0
  %198 = vmatpush1.bf16.msra.mxu0 0
  %199 = vmatprep.subr.bf16.mxu0 0
  %200 = vmatpush1.bf16.msra.mxu0 0
  %201 = vmatprep.subr.bf16.mxu0 0
  %202 = vmatpush1.bf16.msra.mxu0 0
  %203 = vmatprep.subr.bf16.mxu0 0
  %204 = vmatpush1.bf16.msra.mxu0 0
  %205 = vmatprep.subr.bf16.mxu0 0
  %206 = vmatpush1.bf16.msra.mxu0 0
  %207 = vmatprep.subr.bf16.mxu0 0
  %208 = vmatpush1.bf16.msra.mxu0 0
  %209 = vmatprep.mubr.bf16.mxu0 0
  %210 = vmatmul.mubr.bf16.gmra.mrb[0].mxu0 %v105
  %v211 = vpop.f32.mrb[0].mxu0
  %v212 = vadd.f32 %v127, %v211
  %v213 = vpop.f32.mrb[0].mxu0
  %v214 = vpop.f32.mrb[0].mxu0
  %v215 = vadd.f32 %v127, %v214
  %v216 = vpop.f32.mrb[0].mxu0
  %217 = vdwg.mxu0
  %vm218 = vcmp.gt.f32.partialorder %v212, 0.0
  %vm219 = vcmp.gt.f32.partialorder %v215, 0.0
  %v220 = vmul.f32 %v212, 0.01
  %v221 = vmul.f32 %v215, 0.01
  %v222 = vsel %vm218, %v212, %v220
  %v223 = vsel %vm219, %v215, %v221
  %v224 = vpack.c.bf16 %v223, %v222
  %v225 = vld [vmem:[%s5] sm:$0xf]
  %v226 = vld [vmem:[%s5 + $0x4] sm:$0xf]
  %v227 = vld [vmem:[%s5 + $0x8] sm:$0xf]
  %v228 = vld [vmem:[%s5 + $0xc] sm:$0xf]
  %v229 = vld [vmem:[%s5 + $0x10] sm:$0xf]
  %v230 = vld [vmem:[%s5 + $0x14] sm:$0xf]
  %v231 = vld [vmem:[%s5 + $0x18] sm:$0xf]
  %v232 = vld [vmem:[%s5 + $0x1c] sm:$0xf]
  %v233 = vld [vmem:[%s5 + $0x20] sm:$0xf]
  %v234 = vld [vmem:[%s5 + $0x24] sm:$0xf]
  %v235 = vld [vmem:[%s5 + $0x28] sm:$0xf]
  %v236 = vld [vmem:[%s5 + $0x2c] sm:$0xf]
  %v237 = vld [vmem:[%s5 + $0x30] sm:$0xf]
  %v238 = vld [vmem:[%s5 + $0x34] sm:$0xf]
  %v239 = vld [vmem:[%s5 + $0x38] sm:$0xf]
  %v240 = vld [vmem:[%s5 + $0x3c] sm:$0xf]
  %v241 = vld [vmem:[%s6] sm:$0x1]
  %v243 = vlaneseq
  %v244 = vshrl.u32 %v243, 7
  %v245 = vsub.s32 0, %v244
  %v246 = vrot.slane %v241, %v245
  %v264 = vunpack.c.l.b16 %v225
  %v265 = vunpack.c.l.b16 %v226
  %v266 = vunpack.c.l.b16 %v227
  %v267 = vunpack.c.l.b16 %v228
  %v268 = vunpack.c.l.b16 %v229
  %v269 = vunpack.c.l.b16 %v230
  %v270 = vunpack.c.l.b16 %v231
  %v271 = vunpack.c.l.b16 %v232
  %v272 = vunpack.c.l.b16 %v233
  %v273 = vunpack.c.l.b16 %v234
  %v274 = vunpack.c.l.b16 %v235
  %v275 = vunpack.c.l.b16 %v236
  %v276 = vunpack.c.l.b16 %v237
  %v277 = vunpack.c.l.b16 %v238
  %v278 = vunpack.c.l.b16 %v239
  %v279 = vunpack.c.l.b16 %v240
  %v280 = vpack.c.b16 %v265, %v264
  %v281 = vpack.c.b16 %v267, %v266
  %v282 = vpack.c.b16 %v269, %v268
  %v283 = vpack.c.b16 %v271, %v270
  %v284 = vpack.c.b16 %v273, %v272
  %v285 = vpack.c.b16 %v275, %v274
  %v286 = vpack.c.b16 %v277, %v276
  %v287 = vpack.c.b16 %v279, %v278
  %296 = vmatprep.subr.bf16.mxu0 0
  %297 = vmatpush1.bf16.msra.mxu0 %v280
  %298 = vmatprep.subr.bf16.mxu0 0
  %299 = vmatpush1.bf16.msra.mxu0 %v281
  %300 = vmatprep.subr.bf16.mxu0 0
  %301 = vmatpush1.bf16.msra.mxu0 %v282
  %302 = vmatprep.subr.bf16.mxu0 0
  %303 = vmatpush1.bf16.msra.mxu0 %v283
  %304 = vmatprep.subr.bf16.mxu0 0
  %305 = vmatpush1.bf16.msra.mxu0 %v284
  %306 = vmatprep.subr.bf16.mxu0 0
  %307 = vmatpush1.bf16.msra.mxu0 %v285
  %308 = vmatprep.subr.bf16.mxu0 0
  %309 = vmatpush1.bf16.msra.mxu0 %v286
  %310 = vmatprep.subr.bf16.mxu0 0
  %311 = vmatpush1.bf16.msra.mxu0 %v287
  %312 = vmatprep.subr.bf16.mxu0 0
  %313 = vmatpush1.bf16.msra.mxu0 0
  %314 = vmatprep.subr.bf16.mxu0 0
  %315 = vmatpush1.bf16.msra.mxu0 0
  %316 = vmatprep.subr.bf16.mxu0 0
  %317 = vmatpush1.bf16.msra.mxu0 0
  %318 = vmatprep.subr.bf16.mxu0 0
  %319 = vmatpush1.bf16.msra.mxu0 0
  %320 = vmatprep.subr.bf16.mxu0 0
  %321 = vmatpush1.bf16.msra.mxu0 0
  %322 = vmatprep.subr.bf16.mxu0 0
  %323 = vmatpush1.bf16.msra.mxu0 0
  %324 = vmatprep.subr.bf16.mxu0 0
  %325 = vmatpush1.bf16.msra.mxu0 0
  %326 = vmatprep.subr.bf16.mxu0 0
  %327 = vmatpush1.bf16.msra.mxu0 0
  %328 = vmatprep.mubr.bf16.mxu0 0
  %329 = vmatmul.mubr.bf16.gmra.mrb[0].mxu0 %v224
  %v330 = vpop.f32.mrb[0].mxu0
  %v331 = vadd.f32 %v246, %v330
  %v332 = vpop.f32.mrb[0].mxu0
  %v333 = vpop.f32.mrb[0].mxu0
  %v334 = vadd.f32 %v246, %v333
  %v335 = vpop.f32.mrb[0].mxu0
  %336 = vdwg.mxu0
  %vm337 = vcmp.gt.f32.partialorder %v331, 0.0
  %vm338 = vcmp.gt.f32.partialorder %v334, 0.0
  %v339 = vmul.f32 %v331, 0.01
  %v340 = vmul.f32 %v334, 0.01
  %v341 = vsel %vm337, %v331, %v339
  %v342 = vsel %vm338, %v334, %v340
  %v343 = vpack.c.bf16 %v342, %v341
  %v344 = vld [vmem:[%s7] sm:$0xf]
  %v345 = vld [vmem:[%s7 + $0x4] sm:$0xf]
  %v346 = vld [vmem:[%s7 + $0x8] sm:$0xf]
  %v347 = vld [vmem:[%s7 + $0xc] sm:$0xf]
  %v348 = vld [vmem:[%s7 + $0x10] sm:$0xf]
  %v349 = vld [vmem:[%s7 + $0x14] sm:$0xf]
  %v350 = vld [vmem:[%s7 + $0x18] sm:$0xf]
  %v351 = vld [vmem:[%s7 + $0x1c] sm:$0xf]
  %v352 = vld [vmem:[%s7 + $0x20] sm:$0xf]
  %v353 = vld [vmem:[%s7 + $0x24] sm:$0xf]
  %v354 = vld [vmem:[%s7 + $0x28] sm:$0xf]
  %v355 = vld [vmem:[%s7 + $0x2c] sm:$0xf]
  %v356 = vld [vmem:[%s7 + $0x30] sm:$0xf]
  %v357 = vld [vmem:[%s7 + $0x34] sm:$0xf]
  %v358 = vld [vmem:[%s7 + $0x38] sm:$0xf]
  %v359 = vld [vmem:[%s7 + $0x3c] sm:$0xf]
  %v360 = vld [vmem:[%s8] sm:$0x1]
  %v362 = vlaneseq
  %v363 = vshrl.u32 %v362, 7
  %v364 = vsub.s32 0, %v363
  %v365 = vrot.slane %v360, %v364
  %v383 = vunpack.c.l.b16 %v344
  %v384 = vunpack.c.l.b16 %v345
  %v385 = vunpack.c.l.b16 %v346
  %v386 = vunpack.c.l.b16 %v347
  %v387 = vunpack.c.l.b16 %v348
  %v388 = vunpack.c.l.b16 %v349
  %v389 = vunpack.c.l.b16 %v350
  %v390 = vunpack.c.l.b16 %v351
  %v391 = vunpack.c.l.b16 %v352
  %v392 = vunpack.c.l.b16 %v353
  %v393 = vunpack.c.l.b16 %v354
  %v394 = vunpack.c.l.b16 %v355
  %v395 = vunpack.c.l.b16 %v356
  %v396 = vunpack.c.l.b16 %v357
  %v397 = vunpack.c.l.b16 %v358
  %v398 = vunpack.c.l.b16 %v359
  %v399 = vpack.c.b16 %v384, %v383
  %v400 = vpack.c.b16 %v386, %v385
  %v401 = vpack.c.b16 %v388, %v387
  %v402 = vpack.c.b16 %v390, %v389
  %v403 = vpack.c.b16 %v392, %v391
  %v404 = vpack.c.b16 %v394, %v393
  %v405 = vpack.c.b16 %v396, %v395
  %v406 = vpack.c.b16 %v398, %v397
  %415 = vmatprep.subr.bf16.mxu0 0
  %416 = vmatpush1.bf16.msra.mxu0 %v399
  %417 = vmatprep.subr.bf16.mxu0 0
  %418 = vmatpush1.bf16.msra.mxu0 %v400
  %419 = vmatprep.subr.bf16.mxu0 0
  %420 = vmatpush1.bf16.msra.mxu0 %v401
  %421 = vmatprep.subr.bf16.mxu0 0
  %422 = vmatpush1.bf16.msra.mxu0 %v402
  %423 = vmatprep.subr.bf16.mxu0 0
  %424 = vmatpush1.bf16.msra.mxu0 %v403
  %425 = vmatprep.subr.bf16.mxu0 0
  %426 = vmatpush1.bf16.msra.mxu0 %v404
  %427 = vmatprep.subr.bf16.mxu0 0
  %428 = vmatpush1.bf16.msra.mxu0 %v405
  %429 = vmatprep.subr.bf16.mxu0 0
  %430 = vmatpush1.bf16.msra.mxu0 %v406
  %431 = vmatprep.subr.bf16.mxu0 0
  %432 = vmatpush1.bf16.msra.mxu0 0
  %433 = vmatprep.subr.bf16.mxu0 0
  %434 = vmatpush1.bf16.msra.mxu0 0
  %435 = vmatprep.subr.bf16.mxu0 0
  %436 = vmatpush1.bf16.msra.mxu0 0
  %437 = vmatprep.subr.bf16.mxu0 0
  %438 = vmatpush1.bf16.msra.mxu0 0
  %439 = vmatprep.subr.bf16.mxu0 0
  %440 = vmatpush1.bf16.msra.mxu0 0
  %441 = vmatprep.subr.bf16.mxu0 0
  %442 = vmatpush1.bf16.msra.mxu0 0
  %443 = vmatprep.subr.bf16.mxu0 0
  %444 = vmatpush1.bf16.msra.mxu0 0
  %445 = vmatprep.subr.bf16.mxu0 0
  %446 = vmatpush1.bf16.msra.mxu0 0
  %447 = vmatprep.mubr.bf16.mxu0 0
  %448 = vmatmul.mubr.bf16.gmra.mrb[0].mxu0 %v343
  %v449 = vpop.f32.mrb[0].mxu0
  %v450 = vadd.f32 %v365, %v449
  %v451 = vpop.f32.mrb[0].mxu0
  %v452 = vpop.f32.mrb[0].mxu0
  %v453 = vadd.f32 %v365, %v452
  %v454 = vpop.f32.mrb[0].mxu0
  %455 = vdwg.mxu0
  %vm456 = vcmask 261120
  %v457 = vsel %vm456, %v450, 0.0
  %458 = vadd.xlane.f32.xlu0 %v457
  %v459 = vpop.xlane.xlu0 %458
  %v460 = vsel %vm456, %v453, 0.0
  %461 = vadd.xlane.f32.xlu0 %v460
  %v462 = vpop.xlane.xlu0 %461
  %v463 = vrcp.pop 32.0
  %v464 = vmul.f32 %v459, %v463
  %v465 = vmul.f32 %v462, %v463
  %v466 = vsub.f32 %v450, %v464
  %v467 = vsub.f32 %v453, %v465
  %v468 = vmul.f32 %v466, %v466
  %v469 = vmul.f32 %v467, %v467
  %v470 = vsel %vm456, %v468, 0.0
  %471 = vadd.xlane.f32.xlu0 %v470
  %v472 = vpop.xlane.xlu0 %471
  %v473 = vsel %vm456, %v469, 0.0
  %474 = vadd.xlane.f32.xlu0 %v473
  %v475 = vpop.xlane.xlu0 %474
  %v476 = vmul.f32 %v472, %v463
  %v477 = vmul.f32 %v475, %v463
  %v478 = vadd.f32 %v476, 1e-05
  %v479 = vadd.f32 %v477, 1e-05
  %v480 = vrsqrt.pop %v478
  %v481 = vrsqrt.pop %v479
  %v482 = vmul.f32 %v466, %v480
  %v483 = vmul.f32 %v467, %v481
  %v484 = vld [vmem:[%s9] sm:$0x1]
  %v486 = vlaneseq
  %v487 = vshrl.u32 %v486, 7
  %v488 = vsub.s32 0, %v487
  %v489 = vrot.slane %v484, %v488
  %v491 = vmul.f32 %v482, %v489
  %v492 = vmul.f32 %v483, %v489
  %v493 = vld [vmem:[%s10] sm:$0x1]
  %v495 = vlaneseq
  %v496 = vshrl.u32 %v495, 7
  %v497 = vsub.s32 0, %v496
  %v498 = vrot.slane %v493, %v497
  %v500 = vadd.f32 %v491, %v498
  %v501 = vadd.f32 %v492, %v498
  %v502 = vpack.c.bf16 %v501, %v500
  %v504 = vunpack.c.l.b16 %v502
  %v505 = vunpack.c.h.b16 %v502
  %v506 = vpack.c.b16 %v504, %v504
  %v507 = vpack.c.b16 %v505, %v505
  %vm510 = vcmask 257024
  %511 = vst.msk [vmem:[%s11] sm:$0xf] %vm510, %v506
  %512 = vst.msk [vmem:[%s11 + $0x4] sm:$0xf] %vm510, %v507
  // Predicated region
  $region46: #{gns_forward.9} parent=0 // pred_check
    _
  $region47: #{gns_forward.9} parent=0 // pred_check_branch
    %514 = sbr.rel (0) target = $region49
  $region48: #{gns_forward.9} parent=0 // pred_region
    _
  $region49: #{gns_forward.9} parent=0 // pred_fallthru
    _
  // Predicated region
  $region50: #{gns_forward.9} parent=0 // pred_check
    _
  $region51: #{gns_forward.9} parent=0 // pred_check_branch
    %516 = sbr.rel (0) target = $region53
  $region52: #{gns_forward.9} parent=0 // pred_region
    _
  $region53: #{gns_forward.9} parent=0 // pred_fallthru
    _

// kernel: gns_forward.10
$region0: #{gns_forward.10}
  #allocation0 [shape = 'u32[]', space=smem, size = 0x4, offset = 0x4, fixed_abs, tag = 'smem constant byte address 0x4 - core index']
  #allocation1 [shape = 'u32[144,128]{1,0:T(1,128)}', space=vmem, size = 0x12000, scoped, tag = 'internal scratch']
  %s0 = inlined_call_operand.vmem [shape: f32[32,4], index: 0, kind: input, shape index: {}]
  %s1 = inlined_call_operand.vmem [shape: bf16[4,128], index: 1, kind: input, shape index: {}]
  %s2 = inlined_call_operand.vmem [shape: f32[1,128], index: 2, kind: input, shape index: {}]
  %s3 = inlined_call_operand.vmem [shape: bf16[128,128], index: 3, kind: input, shape index: {}]
  %s4 = inlined_call_operand.vmem [shape: f32[1,128], index: 4, kind: input, shape index: {}]
  %s5 = inlined_call_operand.vmem [shape: bf16[128,128], index: 5, kind: input, shape index: {}]
  %s6 = inlined_call_operand.vmem [shape: f32[1,128], index: 6, kind: input, shape index: {}]
  %s7 = inlined_call_operand.vmem [shape: bf16[128,32], index: 7, kind: input, shape index: {}]
  %s8 = inlined_call_operand.vmem [shape: f32[1,32], index: 8, kind: input, shape index: {}]
  %s9 = inlined_call_operand.vmem [shape: f32[1,32], index: 9, kind: input, shape index: {}]
  %s10 = inlined_call_operand.vmem [shape: f32[1,32], index: 10, kind: input, shape index: {}]
  %s11 = inlined_call_operand.vmem [shape: bf16[32,32], index: 11, kind: output, shape index: {}]
  %s12 = sld [smem:[#allocation0]]
  $region77: #{gns_forward.10} parent=0
    _
  %s14 = ssub.s32 1, %s12
  %s15 = scalar_select 0, %s14, %s12
  loop: start=0, step=1, limit=4
  $region2: #{gns_forward.10} parent=0 // loop_pre_header
    _
  $region3: #{gns_forward.10} parent=0 // loop_header
    %s17 = sphi 0, %s21
    %p18 = scmp.ge.s32.totalorder %s17, 4
    %s27 = sphi 0, %s29
    %s30 = sphi 0, %s27
    %s31 = sphi 0, %s30
    %s47 = sphi 0, %s31
    %s51 = sphi 0, %s51
    %s53 = sphi 0, %s51
    %s54 = sphi 0, %s53
    %s68 = sphi 0, %s54
    %s72 = sphi 0, %s72
    %s74 = sphi 0, %s72
    %s75 = sphi 0, %s74
    %s89 = sphi 0, %s75
    %s93 = sphi 0, %s93
    %s95 = sphi 0, %s93
    %s96 = sphi 0, %s95
    %s110 = sphi 0, %s96
    %s114 = sphi 0, %s114
    %s116 = sphi 0, %s114
    %s117 = sphi 0, %s116
    %s131 = sphi 0, %s117
    %s135 = sphi 0, %s135
    %s137 = sphi 0, %s135
    %s138 = sphi 0, %s137
    %s152 = sphi 0, %s138
    %s156 = sphi 0, %s156
    %s158 = sphi 0, %s156
    %s159 = sphi 0, %s158
    %s173 = sphi 0, %s159
    %s177 = sphi 0, %s177
    %s179 = sphi 0, %s177
    %s180 = sphi 0, %s179
    %s194 = sphi 0, %s180
    %s198 = sphi 0, %s198
    %s200 = sphi 0, %s198
    %s201 = sphi 0, %s200
    %s215 = sphi 0, %s201
    %s219 = sphi 0, %s219
    %s221 = sphi 0, %s219
    %s222 = sphi 0, %s221
    %s236 = sphi 0, %s222
    %s240 = sphi 0, %s240
    %s242 = sphi 0, %s240
    %s243 = sphi 0, %s242
    %s257 = sphi 0, %s243
    %s263 = sphi 0, %s265
    %s266 = sphi 0, %s263
    %s267 = sphi 0, %s266
    %s283 = sphi 0, %s267
  $region4: #{gns_forward.10} parent=0 // loop_header_branch
    %20 = sbr.rel (%p18) target = $region8
  $region5: #{gns_forward.10} parent=0 // loop_body
    %s22 = ssub.s32 %s17, 1
    %s23 = ssub.s32 %s17, 2
    %s24 = sadd.s32 %s17, 1
    %s25 = ssub.s32 %s17, %s24
    %p26 = scmp.eq.s32.totalorder %s25, 0
    %s28 = sadd.s32 %s27, 1
    %s29 = scalar_select %p26, %s27, %s28
    %p32 = pneg %p26
    %p33 = scmp.eq.s32.totalorder %s17, 1
    %p34 = por %p32, %p33
    %p35 = scmp.ne.s32.totalorder %s27, %s30
    %p36 = scmp.eq.s32.totalorder %s17, 0
    %p37 = por %p35, %p36
    %p38 = scmp.ne.s32.totalorder %s27, %s30
    %p39 = scmp.eq.s32.totalorder %s22, 1
    %p40 = por %p38, %p39
    %p41 = scmp.ne.s32.totalorder %s30, %s31
    %p42 = scmp.eq.s32.totalorder %s22, 0
    %p43 = por %p41, %p42
    %p44 = scmp.ne.s32.totalorder %s30, %s31
    %p45 = scmp.eq.s32.totalorder %s23, 1
    %p46 = por %p44, %p45
    %p48 = scmp.ne.s32.totalorder %s31, %s47
    %p49 = scmp.eq.s32.totalorder %s23, 0
    %p50 = por %p48, %p49
    %s52 = sadd.s32 %s51, 1
    %p55 = scmp.eq.s32.totalorder %s17, 1
    %p56 = scmp.ne.s32.totalorder %s51, %s53
    %p57 = scmp.eq.s32.totalorder %s17, 0
    %p58 = por %p56, %p57
    %p59 = scmp.ne.s32.totalorder %s51, %s53
    %p60 = scmp.eq.s32.totalorder %s22, 1
    %p61 = por %p59, %p60
    %p62 = scmp.ne.s32.totalorder %s53, %s54
    %p63 = scmp.eq.s32.totalorder %s22, 0
    %p64 = por %p62, %p63
    %p65 = scmp.ne.s32.totalorder %s53, %s54
    %p66 = scmp.eq.s32.totalorder %s23, 1
    %p67 = por %p65, %p66
    %p69 = scmp.ne.s32.totalorder %s54, %s68
    %p70 = scmp.eq.s32.totalorder %s23, 0
    %p71 = por %p69, %p70
    %s73 = sadd.s32 %s72, 1
    %p76 = scmp.eq.s32.totalorder %s17, 1
    %p77 = scmp.ne.s32.totalorder %s72, %s74
    %p78 = scmp.eq.s32.totalorder %s17, 0
    %p79 = por %p77, %p78
    %p80 = scmp.ne.s32.totalorder %s72, %s74
    %p81 = scmp.eq.s32.totalorder %s22, 1
    %p82 = por %p80, %p81
    %p83 = scmp.ne.s32.totalorder %s74, %s75
    %p84 = scmp.eq.s32.totalorder %s22, 0
    %p85 = por %p83, %p84
    %p86 = scmp.ne.s32.totalorder %s74, %s75
    %p87 = scmp.eq.s32.totalorder %s23, 1
    %p88 = por %p86, %p87
    %p90 = scmp.ne.s32.totalorder %s75, %s89
    %p91 = scmp.eq.s32.totalorder %s23, 0
    %p92 = por %p90, %p91
    %s94 = sadd.s32 %s93, 1
    %p97 = scmp.eq.s32.totalorder %s17, 1
    %p98 = scmp.ne.s32.totalorder %s93, %s95
    %p99 = scmp.eq.s32.totalorder %s17, 0
    %p100 = por %p98, %p99
    %p101 = scmp.ne.s32.totalorder %s93, %s95
    %p102 = scmp.eq.s32.totalorder %s22, 1
    %p103 = por %p101, %p102
    %p104 = scmp.ne.s32.totalorder %s95, %s96
    %p105 = scmp.eq.s32.totalorder %s22, 0
    %p106 = por %p104, %p105
    %p107 = scmp.ne.s32.totalorder %s95, %s96
    %p108 = scmp.eq.s32.totalorder %s23, 1
    %p109 = por %p107, %p108
    %p111 = scmp.ne.s32.totalorder %s96, %s110
    %p112 = scmp.eq.s32.totalorder %s23, 0
    %p113 = por %p111, %p112
    %s115 = sadd.s32 %s114, 1
    %p118 = scmp.eq.s32.totalorder %s17, 1
    %p119 = scmp.ne.s32.totalorder %s114, %s116
    %p120 = scmp.eq.s32.totalorder %s17, 0
    %p121 = por %p119, %p120
    %p122 = scmp.ne.s32.totalorder %s114, %s116
    %p123 = scmp.eq.s32.totalorder %s22, 1
    %p124 = por %p122, %p123
    %p125 = scmp.ne.s32.totalorder %s116, %s117
    %p126 = scmp.eq.s32.totalorder %s22, 0
    %p127 = por %p125, %p126
    %p128 = scmp.ne.s32.totalorder %s116, %s117
    %p129 = scmp.eq.s32.totalorder %s23, 1
    %p130 = por %p128, %p129
    %p132 = scmp.ne.s32.totalorder %s117, %s131
    %p133 = scmp.eq.s32.totalorder %s23, 0
    %p134 = por %p132, %p133
    %s136 = sadd.s32 %s135, 1
    %p139 = scmp.eq.s32.totalorder %s17, 1
    %p140 = scmp.ne.s32.totalorder %s135, %s137
    %p141 = scmp.eq.s32.totalorder %s17, 0
    %p142 = por %p140, %p141
    %p143 = scmp.ne.s32.totalorder %s135, %s137
    %p144 = scmp.eq.s32.totalorder %s22, 1
    %p145 = por %p143, %p144
    %p146 = scmp.ne.s32.totalorder %s137, %s138
    %p147 = scmp.eq.s32.totalorder %s22, 0
    %p148 = por %p146, %p147
    %p149 = scmp.ne.s32.totalorder %s137, %s138
    %p150 = scmp.eq.s32.totalorder %s23, 1
    %p151 = por %p149, %p150
    %p153 = scmp.ne.s32.totalorder %s138, %s152
    %p154 = scmp.eq.s32.totalorder %s23, 0
    %p155 = por %p153, %p154
    %s157 = sadd.s32 %s156, 1
    %p160 = scmp.eq.s32.totalorder %s17, 1
    %p161 = scmp.ne.s32.totalorder %s156, %s158
    %p162 = scmp.eq.s32.totalorder %s17, 0
    %p163 = por %p161, %p162
    %p164 = scmp.ne.s32.totalorder %s156, %s158
    %p165 = scmp.eq.s32.totalorder %s22, 1
    %p166 = por %p164, %p165
    %p167 = scmp.ne.s32.totalorder %s158, %s159
    %p168 = scmp.eq.s32.totalorder %s22, 0
    %p169 = por %p167, %p168
    %p170 = scmp.ne.s32.totalorder %s158, %s159
    %p171 = scmp.eq.s32.totalorder %s23, 1
    %p172 = por %p170, %p171
    %p174 = scmp.ne.s32.totalorder %s159, %s173
    %p175 = scmp.eq.s32.totalorder %s23, 0
    %p176 = por %p174, %p175
    %s178 = sadd.s32 %s177, 1
    %p181 = scmp.eq.s32.totalorder %s17, 1
    %p182 = scmp.ne.s32.totalorder %s177, %s179
    %p183 = scmp.eq.s32.totalorder %s17, 0
    %p184 = por %p182, %p183
    %p185 = scmp.ne.s32.totalorder %s177, %s179
    %p186 = scmp.eq.s32.totalorder %s22, 1
    %p187 = por %p185, %p186
    %p188 = scmp.ne.s32.totalorder %s179, %s180
    %p189 = scmp.eq.s32.totalorder %s22, 0
    %p190 = por %p188, %p189
    %p191 = scmp.ne.s32.totalorder %s179, %s180
    %p192 = scmp.eq.s32.totalorder %s23, 1
    %p193 = por %p191, %p192
    %p195 = scmp.ne.s32.totalorder %s180, %s194
    %p196 = scmp.eq.s32.totalorder %s23, 0
    %p197 = por %p195, %p196
    %s199 = sadd.s32 %s198, 1
    %p202 = scmp.eq.s32.totalorder %s17, 1
    %p203 = scmp.ne.s32.totalorder %s198, %s200
    %p204 = scmp.eq.s32.totalorder %s17, 0
    %p205 = por %p203, %p204
    %p206 = scmp.ne.s32.totalorder %s198, %s200
    %p207 = scmp.eq.s32.totalorder %s22, 1
    %p208 = por %p206, %p207
    %p209 = scmp.ne.s32.totalorder %s200, %s201
    %p210 = scmp.eq.s32.totalorder %s22, 0
    %p211 = por %p209, %p210
    %p212 = scmp.ne.s32.totalorder %s200, %s201
    %p213 = scmp.eq.s32.totalorder %s23, 1
    %p214 = por %p212, %p213
    %p216 = scmp.ne.s32.totalorder %s201, %s215
    %p217 = scmp.eq.s32.totalorder %s23, 0
    %p218 = por %p216, %p217
    %s220 = sadd.s32 %s219, 1
    %p223 = scmp.eq.s32.totalorder %s17, 1
    %p224 = scmp.ne.s32.totalorder %s219, %s221
    %p225 = scmp.eq.s32.totalorder %s17, 0
    %p226 = por %p224, %p225
    %p227 = scmp.ne.s32.totalorder %s219, %s221
    %p228 = scmp.eq.s32.totalorder %s22, 1
    %p229 = por %p227, %p228
    %p230 = scmp.ne.s32.totalorder %s221, %s222
    %p231 = scmp.eq.s32.totalorder %s22, 0
    %p232 = por %p230, %p231
    %p233 = scmp.ne.s32.totalorder %s221, %s222
    %p234 = scmp.eq.s32.totalorder %s23, 1
    %p235 = por %p233, %p234
    %p237 = scmp.ne.s32.totalorder %s222, %s236
    %p238 = scmp.eq.s32.totalorder %s23, 0
    %p239 = por %p237, %p238
    %s241 = sadd.s32 %s240, 1
    %p244 = scmp.eq.s32.totalorder %s17, 1
    %p245 = scmp.ne.s32.totalorder %s240, %s242
    %p246 = scmp.eq.s32.totalorder %s17, 0
    %p247 = por %p245, %p246
    %p248 = scmp.ne.s32.totalorder %s240, %s242
    %p249 = scmp.eq.s32.totalorder %s22, 1
    %p250 = por %p248, %p249
    %p251 = scmp.ne.s32.totalorder %s242, %s243
    %p252 = scmp.eq.s32.totalorder %s22, 0
    %p253 = por %p251, %p252
    %p254 = scmp.ne.s32.totalorder %s242, %s243
    %p255 = scmp.eq.s32.totalorder %s23, 1
    %p256 = por %p254, %p255
    %p258 = scmp.ne.s32.totalorder %s243, %s257
    %p259 = scmp.eq.s32.totalorder %s23, 0
    %p260 = por %p258, %p259
    %s261 = ssub.s32 %s17, %s24
    %p262 = scmp.eq.s32.totalorder %s261, 0
    %s264 = sadd.s32 %s263, 1
    %s265 = scalar_select %p262, %s263, %s264
    %p268 = pneg %p262
    %p269 = scmp.eq.s32.totalorder %s17, 1
    %p270 = por %p268, %p269
    %p271 = scmp.ne.s32.totalorder %s263, %s266
    %p272 = scmp.eq.s32.totalorder %s17, 0
    %p273 = por %p271, %p272
    %p274 = scmp.ne.s32.totalorder %s263, %s266
    %p275 = scmp.eq.s32.totalorder %s22, 1
    %p276 = por %p274, %p275
    %p277 = scmp.ne.s32.totalorder %s266, %s267
    %p278 = scmp.eq.s32.totalorder %s22, 0
    %p279 = por %p277, %p278
    %p280 = scmp.ne.s32.totalorder %s266, %s267
    %p281 = scmp.eq.s32.totalorder %s23, 1
    %p282 = por %p280, %p281
    %p284 = scmp.ne.s32.totalorder %s267, %s283
    %p285 = scmp.eq.s32.totalorder %s23, 0
    %p286 = por %p284, %p285
    %p287 = scmp.le.s32.totalorder 1, %s17
    %p288 = scmp.lt.s32.totalorder %s17, 3
    %p289 = pnand %p287, %p288
    %p290 = pneg %p289
    // Predicated region
    $region9: #{gns_forward.10} parent=5 // pred_check
      _
    $region10: #{gns_forward.10} parent=5 // pred_check_branch
      %292 = sbr.rel (%p289) target = $region12
    $region11: #{gns_forward.10} parent=5 // pred_region
      %s293 = ssub.s32 %s17, 1
      // Predicated region
      $region13: #{gns_forward.10} parent=11 // pred_check
        %p294 = pneg %p64
      $region14: #{gns_forward.10} parent=11 // pred_check_branch
        %296 = sbr.rel (%p294) target = $region16
      $region15: #{gns_forward.10} parent=11 // pred_region
        _
      $region16: #{gns_forward.10} parent=11 // pred_fallthru
        _
      // Predicated region
      $region17: #{gns_forward.10} parent=11 // pred_check
        %p297 = pneg %p85
      $region18: #{gns_forward.10} parent=11 // pred_check_branch
        %299 = sbr.rel (%p297) target = $region20
      $region19: #{gns_forward.10} parent=11 // pred_region
        _
      $region20: #{gns_forward.10} parent=11 // pred_fallthru
        _
      // Predicated region
      $region21: #{gns_forward.10} parent=11 // pred_check
        %p300 = pneg %p106
      $region22: #{gns_forward.10} parent=11 // pred_check_branch
        %302 = sbr.rel (%p300) target = $region24
      $region23: #{gns_forward.10} parent=11 // pred_region
        _
      $region24: #{gns_forward.10} parent=11 // pred_fallthru
        _
      // Predicated region
      $region25: #{gns_forward.10} parent=11 // pred_check
        %p303 = pneg %p127
      $region26: #{gns_forward.10} parent=11 // pred_check_branch
        %305 = sbr.rel (%p303) target = $region28
      $region27: #{gns_forward.10} parent=11 // pred_region
        _
      $region28: #{gns_forward.10} parent=11 // pred_fallthru
        _
      // Predicated region
      $region29: #{gns_forward.10} parent=11 // pred_check
        %p306 = pneg %p148
      $region30: #{gns_forward.10} parent=11 // pred_check_branch
        %308 = sbr.rel (%p306) target = $region32
      $region31: #{gns_forward.10} parent=11 // pred_region
        _
      $region32: #{gns_forward.10} parent=11 // pred_fallthru
        _
      // Predicated region
      $region33: #{gns_forward.10} parent=11 // pred_check
        %p309 = pneg %p169
      $region34: #{gns_forward.10} parent=11 // pred_check_branch
        %311 = sbr.rel (%p309) target = $region36
      $region35: #{gns_forward.10} parent=11 // pred_region
        _
      $region36: #{gns_forward.10} parent=11 // pred_fallthru
        _
      // Predicated region
      $region37: #{gns_forward.10} parent=11 // pred_check
        %p312 = pneg %p190
      $region38: #{gns_forward.10} parent=11 // pred_check_branch
        %314 = sbr.rel (%p312) target = $region40
      $region39: #{gns_forward.10} parent=11 // pred_region
        _
      $region40: #{gns_forward.10} parent=11 // pred_fallthru
        _
      // Predicated region
      $region41: #{gns_forward.10} parent=11 // pred_check
        %p315 = pneg %p211
      $region42: #{gns_forward.10} parent=11 // pred_check_branch
        %317 = sbr.rel (%p315) target = $region44
      $region43: #{gns_forward.10} parent=11 // pred_region
        _
      $region44: #{gns_forward.10} parent=11 // pred_fallthru
        _
      // Predicated region
      $region45: #{gns_forward.10} parent=11 // pred_check
        %p318 = pneg %p232
      $region46: #{gns_forward.10} parent=11 // pred_check_branch
        %320 = sbr.rel (%p318) target = $region48
      $region47: #{gns_forward.10} parent=11 // pred_region
        _
      $region48: #{gns_forward.10} parent=11 // pred_fallthru
        _
      // Predicated region
      $region49: #{gns_forward.10} parent=11 // pred_check
        %p321 = pneg %p253
      $region50: #{gns_forward.10} parent=11 // pred_check_branch
        %323 = sbr.rel (%p321) target = $region52
      $region51: #{gns_forward.10} parent=11 // pred_region
        _
      $region52: #{gns_forward.10} parent=11 // pred_fallthru
        _
    $region12: #{gns_forward.10} parent=5 // pred_fallthru
      _
    %p324 = scmp.lt.s32.totalorder %s17, 2
    // Predicated region
    $region53: #{gns_forward.10} parent=5 // pred_check
      %p325 = pneg %p324
    $region54: #{gns_forward.10} parent=5 // pred_check_branch
      %327 = sbr.rel (%p325) target = $region56
    $region55: #{gns_forward.10} parent=5 // pred_region
      // Predicated region
      $region57: #{gns_forward.10} parent=55 // pred_check
        %p328 = pneg %p37
      $region58: #{gns_forward.10} parent=55 // pred_check_branch
        %330 = sbr.rel (%p328) target = $region60
      $region59: #{gns_forward.10} parent=55 // pred_region
        %s331 = smul.u32 2, %s17
        %p332 = scmp.lt.s32.totalorder %s331, 3
        %s333 = scalar_select %p332, %s331, 3
        %s334 = smul.addr %s333, 8
        %s335 = scalar_lea.vmem %s0, %s334
        %s336 = smul.u32 2, %s17
      $region60: #{gns_forward.10} parent=55 // pred_fallthru
        _
    $region56: #{gns_forward.10} parent=5 // pred_fallthru
      _
    %p337 = scmp.le.s32.totalorder 1, %s17
    %p338 = scmp.lt.s32.totalorder %s17, 3
    %p339 = pnand %p337, %p338
    %p340 = pneg %p339
    // Predicated region
    $region61: #{gns_forward.10} parent=5 // pred_check
      _
    $region62: #{gns_forward.10} parent=5 // pred_check_branch
      %342 = sbr.rel (%p339) target = $region64
    $region63: #{gns_forward.10} parent=5 // pred_region
      %s343 = ssub.s32 %s17, 1
      %s344 = smul.u32 2, %s22
      %p345 = scmp.lt.s32.totalorder %s344, 3
      %s346 = scalar_select %p345, %s344, 3
      %s347 = smul.addr %s346, 8
      %s348 = scalar_lea.vmem %s0, %s347
      %p349 = pneg %p43
      %p350 = pneg %p40
      %p351 = pneg %p64
      %p352 = pneg %p61
      %p353 = pneg %p85
      %p354 = pneg %p82
      %p355 = pneg %p106
      %p356 = pneg %p103
      %p357 = pneg %p127
      %p358 = pneg %p124
      %p359 = pneg %p148
      %p360 = pneg %p145
      %p361 = pneg %p169
      %p362 = pneg %p166
      %p363 = pneg %p190
      %p364 = pneg %p187
      %p365 = pneg %p211
      %p366 = pneg %p208
      %p367 = pneg %p232
      %p368 = pneg %p229
      %p369 = pneg %p253
      %p370 = pneg %p250
      %p371 = pneg %p279
      %p372 = pneg %p276
      %s373 = smul.u32 2, %s22
      %p374 = scmp.lt.s32.totalorder %s373, 3
      %s375 = scalar_select %p374, %s373, 3
      %s376 = smul.addr %s375, 4
      %s377 = scalar_lea.vmem %s11, %s376
      %s378 = smul.u32 2, %s22
      %p379 = scmp.lt.s32.totalorder %s378, 3
      %s380 = scalar_select %p379, %s378, 3
      %s381 = smul.addr %s380, 8
      %s382 = scalar_lea.vmem %s0, %s381
      %s383 = smul.u32 2, %s22
      %s384 = smul.u32 2, %s22
      %p385 = scmp.lt.s32.totalorder %s384, 3
      %s386 = scalar_select %p385, %s384, 3
      %s387 = smul.addr %s386, 4
      %s388 = scalar_lea.vmem %s11, %s387
      %s389 = smul.u32 2, %s22
      %v391 = vld [vmem:[%s382] sm:$0xff]
      %v392 = vld [vmem:[%s382 + $0x8] sm:$0xff]
      %v393 = vpack.c.bf16 %v392, %v391
      %v394 = vld [vmem:[%s1] sm:$0x3]
      %v395 = vld [vmem:[%s2] sm:$0x1]
      %v397 = vlaneseq
      %v398 = vshrl.u32 %v397, 7
      %v399 = vsub.s32 0, %v398
      %v400 = vrot.slane %v395, %v399
      %vm402 = vcmask 31744
      %v404 = vsel %vm402, %v393, 0
      %vm406 = vcmask 1041408
      %v408 = vsel %vm406, %v394, 0
      %410 = vmatprep.subr.bf16.mxu0 0
      %411 = vmatpush1.bf16.msra.mxu0 %v408
      %412 = vmatprep.subr.bf16.mxu0 0
      %413 = vmatpush1.bf16.msra.mxu0 0
      %414 = vmatprep.subr.bf16.mxu0 0
      %415 = vmatpush1.bf16.msra.mxu0 0
      %416 = vmatprep.subr.bf16.mxu0 0
      %417 = vmatpush1.bf16.msra.mxu0 0
      %418 = vmatprep.subr.bf16.mxu0 0
      %419 = vmatpush1.bf16.msra.mxu0 0
      %420 = vmatprep.subr.bf16.mxu0 0
      %421 = vmatpush1.bf16.msra.mxu0 0
      %422 = vmatprep.subr.bf16.mxu0 0
      %423 = vmatpush1.bf16.msra.mxu0 0
      %424 = vmatprep.subr.bf16.mxu0 0
      %425 = vmatpush1.bf16.msra.mxu0 0
      %426 = vmatprep.subr.bf16.mxu0 0
      %427 = vmatpush1.bf16.msra.mxu0 0
      %428 = vmatprep.subr.bf16.mxu0 0
      %429 = vmatpush1.bf16.msra.mxu0 0
      %430 = vmatprep.subr.bf16.mxu0 0
      %431 = vmatpush1.bf16.msra.mxu0 0
      %432 = vmatprep.subr.bf16.mxu0 0
      %433 = vmatpush1.bf16.msra.mxu0 0
      %434 = vmatprep.subr.bf16.mxu0 0
      %435 = vmatpush1.bf16.msra.mxu0 0
      %436 = vmatprep.subr.bf16.mxu0 0
      %437 = vmatpush1.bf16.msra.mxu0 0
      %438 = vmatprep.subr.bf16.mxu0 0
      %439 = vmatpush1.bf16.msra.mxu0 0
      %440 = vmatprep.subr.bf16.mxu0 0
      %441 = vmatpush1.bf16.msra.mxu0 0
      %442 = vmatprep.mubr.bf16.mxu0 0
      %443 = vmatmul.mubr.bf16.gmra.mrb[0].mxu0 %v404
      %v444 = vpop.f32.mrb[0].mxu0
      %v445 = vadd.f32 %v400, %v444
      %v446 = vpop.f32.mrb[0].mxu0
      %v447 = vpop.f32.mrb[0].mxu0
      %v448 = vadd.f32 %v400, %v447
      %v449 = vpop.f32.mrb[0].mxu0
      %450 = vdwg.mxu0
      %vm451 = vcmp.gt.f32.partialorder %v445, 0.0
      %vm452 = vcmp.gt.f32.partialorder %v448, 0.0
      %v453 = vmul.f32 %v445, 0.01
      %v454 = vmul.f32 %v448, 0.01
      %v455 = vsel %vm451, %v445, %v453
      %v456 = vsel %vm452, %v448, %v454
      %v457 = vpack.c.bf16 %v456, %v455
      %v458 = vld [vmem:[%s3] sm:$0xf]
      %v459 = vld [vmem:[%s3 + $0x4] sm:$0xf]
      %v460 = vld [vmem:[%s3 + $0x8] sm:$0xf]
      %v461 = vld [vmem:[%s3 + $0xc] sm:$0xf]
      %v462 = vld [vmem:[%s3 + $0x10] sm:$0xf]
      %v463 = vld [vmem:[%s3 + $0x14] sm:$0xf]
      %v464 = vld [vmem:[%s3 + $0x18] sm:$0xf]
      %v465 = vld [vmem:[%s3 + $0x1c] sm:$0xf]
      %v466 = vld [vmem:[%s3 + $0x20] sm:$0xf]
      %v467 = vld [vmem:[%s3 + $0x24] sm:$0xf]
      %v468 = vld [vmem:[%s3 + $0x28] sm:$0xf]
      %v469 = vld [vmem:[%s3 + $0x2c] sm:$0xf]
      %v470 = vld [vmem:[%s3 + $0x30] sm:$0xf]
      %v471 = vld [vmem:[%s3 + $0x34] sm:$0xf]
      %v472 = vld [vmem:[%s3 + $0x38] sm:$0xf]
      %v473 = vld [vmem:[%s3 + $0x3c] sm:$0xf]
      %v474 = vld [vmem:[%s4] sm:$0x1]
      %v476 = vlaneseq
      %v477 = vshrl.u32 %v476, 7
      %v478 = vsub.s32 0, %v477
      %v479 = vrot.slane %v474, %v478
      %v497 = vunpack.c.l.b16 %v458
      %v498 = vunpack.c.l.b16 %v459
      %v499 = vunpack.c.l.b16 %v460
      %v500 = vunpack.c.l.b16 %v461
      %v501 = vunpack.c.l.b16 %v462
      %v502 = vunpack.c.l.b16 %v463
      %v503 = vunpack.c.l.b16 %v464
      %v504 = vunpack.c.l.b16 %v465
      %v505 = vunpack.c.l.b16 %v466
      %v506 = vunpack.c.l.b16 %v467
      %v507 = vunpack.c.l.b16 %v468
      %v508 = vunpack.c.l.b16 %v469
      %v509 = vunpack.c.l.b16 %v470
      %v510 = vunpack.c.l.b16 %v471
      %v511 = vunpack.c.l.b16 %v472
      %v512 = vunpack.c.l.b16 %v473
      %v513 = vpack.c.b16 %v498, %v497
      %v514 = vpack.c.b16 %v500, %v499
      %v515 = vpack.c.b16 %v502, %v501
      %v516 = vpack.c.b16 %v504, %v503
      %v517 = vpack.c.b16 %v506, %v505
      %v518 = vpack.c.b16 %v508, %v507
      %v519 = vpack.c.b16 %v510, %v509
      %v520 = vpack.c.b16 %v512, %v511
      %529 = vmatprep.subr.bf16.mxu0 0
      %530 = vmatpush1.bf16.msra.mxu0 %v513
      %531 = vmatprep.subr.bf16.mxu0 0
      %532 = vmatpush1.bf16.msra.mxu0 %v514
      %533 = vmatprep.subr.bf16.mxu0 0
      %534 = vmatpush1.bf16.msra.mxu0 %v515
      %535 = vmatprep.subr.bf16.mxu0 0
      %536 = vmatpush1.bf16.msra.mxu0 %v516
      %537 = vmatprep.subr.bf16.mxu0 0
      %538 = vmatpush1.bf16.msra.mxu0 %v517
      %539 = vmatprep.subr.bf16.mxu0 0
      %540 = vmatpush1.bf16.msra.mxu0 %v518
      %541 = vmatprep.subr.bf16.mxu0 0
      %542 = vmatpush1.bf16.msra.mxu0 %v519
      %543 = vmatprep.subr.bf16.mxu0 0
      %544 = vmatpush1.bf16.msra.mxu0 %v520
      %545 = vmatprep.subr.bf16.mxu0 0
      %546 = vmatpush1.bf16.msra.mxu0 0
      %547 = vmatprep.subr.bf16.mxu0 0
      %548 = vmatpush1.bf16.msra.mxu0 0
      %549 = vmatprep.subr.bf16.mxu0 0
      %550 = vmatpush1.bf16.msra.mxu0 0
      %551 = vmatprep.subr.bf16.mxu0 0
      %552 = vmatpush1.bf16.msra.mxu0 0
      %553 = vmatprep.subr.bf16.mxu0 0
      %554 = vmatpush1.bf16.msra.mxu0 0
      %555 = vmatprep.subr.bf16.mxu0 0
      %556 = vmatpush1.bf16.msra.mxu0 0
      %557 = vmatprep.subr.bf16.mxu0 0
      %558 = vmatpush1.bf16.msra.mxu0 0
      %559 = vmatprep.subr.bf16.mxu0 0
      %560 = vmatpush1.bf16.msra.mxu0 0
      %561 = vmatprep.mubr.bf16.mxu0 0
      %562 = vmatmul.mubr.bf16.gmra.mrb[0].mxu0 %v457
      %v563 = vpop.f32.mrb[0].mxu0
      %v564 = vadd.f32 %v479, %v563
      %v565 = vpop.f32.mrb[0].mxu0
      %v566 = vpop.f32.mrb[0].mxu0
      %v567 = vadd.f32 %v479, %v566
      %v568 = vpop.f32.mrb[0].mxu0
      %569 = vdwg.mxu0
      %vm570 = vcmp.gt.f32.partialorder %v564, 0.0
      %vm571 = vcmp.gt.f32.partialorder %v567, 0.0
      %v572 = vmul.f32 %v564, 0.01
      %v573 = vmul.f32 %v567, 0.01
      %v574 = vsel %vm570, %v564, %v572
      %v575 = vsel %vm571, %v567, %v573
      %v576 = vpack.c.bf16 %v575, %v574
      %v577 = vld [vmem:[%s5] sm:$0xf]
      %v578 = vld [vmem:[%s5 + $0x4] sm:$0xf]
      %v579 = vld [vmem:[%s5 + $0x8] sm:$0xf]
      %v580 = vld [vmem:[%s5 + $0xc] sm:$0xf]
      %v581 = vld [vmem:[%s5 + $0x10] sm:$0xf]
      %v582 = vld [vmem:[%s5 + $0x14] sm:$0xf]
      %v583 = vld [vmem:[%s5 + $0x18] sm:$0xf]
      %v584 = vld [vmem:[%s5 + $0x1c] sm:$0xf]
      %v585 = vld [vmem:[%s5 + $0x20] sm:$0xf]
      %v586 = vld [vmem:[%s5 + $0x24] sm:$0xf]
      %v587 = vld [vmem:[%s5 + $0x28] sm:$0xf]
      %v588 = vld [vmem:[%s5 + $0x2c] sm:$0xf]
      %v589 = vld [vmem:[%s5 + $0x30] sm:$0xf]
      %v590 = vld [vmem:[%s5 + $0x34] sm:$0xf]
      %v591 = vld [vmem:[%s5 + $0x38] sm:$0xf]
      %v592 = vld [vmem:[%s5 + $0x3c] sm:$0xf]
      %v593 = vld [vmem:[%s6] sm:$0x1]
      %v595 = vlaneseq
      %v596 = vshrl.u32 %v595, 7
      %v597 = vsub.s32 0, %v596
      %v598 = vrot.slane %v593, %v597
      %v616 = vunpack.c.l.b16 %v577
      %v617 = vunpack.c.l.b16 %v578
      %v618 = vunpack.c.l.b16 %v579
      %v619 = vunpack.c.l.b16 %v580
      %v620 = vunpack.c.l.b16 %v581
      %v621 = vunpack.c.l.b16 %v582
      %v622 = vunpack.c.l.b16 %v583
      %v623 = vunpack.c.l.b16 %v584
      %v624 = vunpack.c.l.b16 %v585
      %v625 = vunpack.c.l.b16 %v586
      %v626 = vunpack.c.l.b16 %v587
      %v627 = vunpack.c.l.b16 %v588
      %v628 = vunpack.c.l.b16 %v589
      %v629 = vunpack.c.l.b16 %v590
      %v630 = vunpack.c.l.b16 %v591
      %v631 = vunpack.c.l.b16 %v592
      %v632 = vpack.c.b16 %v617, %v616
      %v633 = vpack.c.b16 %v619, %v618
      %v634 = vpack.c.b16 %v621, %v620
      %v635 = vpack.c.b16 %v623, %v622
      %v636 = vpack.c.b16 %v625, %v624
      %v637 = vpack.c.b16 %v627, %v626
      %v638 = vpack.c.b16 %v629, %v628
      %v639 = vpack.c.b16 %v631, %v630
      %648 = vmatprep.subr.bf16.mxu0 0
      %649 = vmatpush1.bf16.msra.mxu0 %v632
      %650 = vmatprep.subr.bf16.mxu0 0
      %651 = vmatpush1.bf16.msra.mxu0 %v633
      %652 = vmatprep.subr.bf16.mxu0 0
      %653 = vmatpush1.bf16.msra.mxu0 %v634
      %654 = vmatprep.subr.bf16.mxu0 0
      %655 = vmatpush1.bf16.msra.mxu0 %v635
      %656 = vmatprep.subr.bf16.mxu0 0
      %657 = vmatpush1.bf16.msra.mxu0 %v636
      %658 = vmatprep.subr.bf16.mxu0 0
      %659 = vmatpush1.bf16.msra.mxu0 %v637
      %660 = vmatprep.subr.bf16.mxu0 0
      %661 = vmatpush1.bf16.msra.mxu0 %v638
      %662 = vmatprep.subr.bf16.mxu0 0
      %663 = vmatpush1.bf16.msra.mxu0 %v639
      %664 = vmatprep.subr.bf16.mxu0 0
      %665 = vmatpush1.bf16.msra.mxu0 0
      %666 = vmatprep.subr.bf16.mxu0 0
      %667 = vmatpush1.bf16.msra.mxu0 0
      %668 = vmatprep.subr.bf16.mxu0 0
      %669 = vmatpush1.bf16.msra.mxu0 0
      %670 = vmatprep.subr.bf16.mxu0 0
      %671 = vmatpush1.bf16.msra.mxu0 0
      %672 = vmatprep.subr.bf16.mxu0 0
      %673 = vmatpush1.bf16.msra.mxu0 0
      %674 = vmatprep.subr.bf16.mxu0 0
      %675 = vmatpush1.bf16.msra.mxu0 0
      %676 = vmatprep.subr.bf16.mxu0 0
      %677 = vmatpush1.bf16.msra.mxu0 0
      %678 = vmatprep.subr.bf16.mxu0 0
      %679 = vmatpush1.bf16.msra.mxu0 0
      %680 = vmatprep.mubr.bf16.mxu0 0
      %681 = vmatmul.mubr.bf16.gmra.mrb[0].mxu0 %v576
      %v682 = vpop.f32.mrb[0].mxu0
      %v683 = vadd.f32 %v598, %v682
      %v684 = vpop.f32.mrb[0].mxu0
      %v685 = vpop.f32.mrb[0].mxu0
      %v686 = vadd.f32 %v598, %v685
      %v687 = vpop.f32.mrb[0].mxu0
      %688 = vdwg.mxu0
      %vm689 = vcmp.gt.f32.partialorder %v683, 0.0
      %vm690 = vcmp.gt.f32.partialorder %v686, 0.0
      %v691 = vmul.f32 %v683, 0.01
      %v692 = vmul.f32 %v686, 0.01
      %v693 = vsel %vm689, %v683, %v691
      %v694 = vsel %vm690, %v686, %v692
      %v695 = vpack.c.bf16 %v694, %v693
      %v696 = vld [vmem:[%s7] sm:$0xf]
      %v697 = vld [vmem:[%s7 + $0x4] sm:$0xf]
      %v698 = vld [vmem:[%s7 + $0x8] sm:$0xf]
      %v699 = vld [vmem:[%s7 + $0xc] sm:$0xf]
      %v700 = vld [vmem:[%s7 + $0x10] sm:$0xf]
      %v701 = vld [vmem:[%s7 + $0x14] sm:$0xf]
      %v702 = vld [vmem:[%s7 + $0x18] sm:$0xf]
      %v703 = vld [vmem:[%s7 + $0x1c] sm:$0xf]
      %v704 = vld [vmem:[%s7 + $0x20] sm:$0xf]
      %v705 = vld [vmem:[%s7 + $0x24] sm:$0xf]
      %v706 = vld [vmem:[%s7 + $0x28] sm:$0xf]
      %v707 = vld [vmem:[%s7 + $0x2c] sm:$0xf]
      %v708 = vld [vmem:[%s7 + $0x30] sm:$0xf]
      %v709 = vld [vmem:[%s7 + $0x34] sm:$0xf]
      %v710 = vld [vmem:[%s7 + $0x38] sm:$0xf]
      %v711 = vld [vmem:[%s7 + $0x3c] sm:$0xf]
      %v712 = vld [vmem:[%s8] sm:$0x1]
      %v714 = vlaneseq
      %v715 = vshrl.u32 %v714, 7
      %v716 = vsub.s32 0, %v715
      %v717 = vrot.slane %v712, %v716
      %v735 = vunpack.c.l.b16 %v696
      %v736 = vunpack.c.l.b16 %v697
      %v737 = vunpack.c.l.b16 %v698
      %v738 = vunpack.c.l.b16 %v699
      %v739 = vunpack.c.l.b16 %v700
      %v740 = vunpack.c.l.b16 %v701
      %v741 = vunpack.c.l.b16 %v702
      %v742 = vunpack.c.l.b16 %v703
      %v743 = vunpack.c.l.b16 %v704
      %v744 = vunpack.c.l.b16 %v705
      %v745 = vunpack.c.l.b16 %v706
      %v746 = vunpack.c.l.b16 %v707
      %v747 = vunpack.c.l.b16 %v708
      %v748 = vunpack.c.l.b16 %v709
      %v749 = vunpack.c.l.b16 %v710
      %v750 = vunpack.c.l.b16 %v711
      %v751 = vpack.c.b16 %v736, %v735
      %v752 = vpack.c.b16 %v738, %v737
      %v753 = vpack.c.b16 %v740, %v739
      %v754 = vpack.c.b16 %v742, %v741
      %v755 = vpack.c.b16 %v744, %v743
      %v756 = vpack.c.b16 %v746, %v745
      %v757 = vpack.c.b16 %v748, %v747
      %v758 = vpack.c.b16 %v750, %v749
      %767 = vmatprep.subr.bf16.mxu0 0
      %768 = vmatpush1.bf16.msra.mxu0 %v751
      %769 = vmatprep.subr.bf16.mxu0 0
      %770 = vmatpush1.bf16.msra.mxu0 %v752
      %771 = vmatprep.subr.bf16.mxu0 0
      %772 = vmatpush1.bf16.msra.mxu0 %v753
      %773 = vmatprep.subr.bf16.mxu0 0
      %774 = vmatpush1.bf16.msra.mxu0 %v754
      %775 = vmatprep.subr.bf16.mxu0 0
      %776 = vmatpush1.bf16.msra.mxu0 %v755
      %777 = vmatprep.subr.bf16.mxu0 0
      %778 = vmatpush1.bf16.msra.mxu0 %v756
      %779 = vmatprep.subr.bf16.mxu0 0
      %780 = vmatpush1.bf16.msra.mxu0 %v757
      %781 = vmatprep.subr.bf16.mxu0 0
      %782 = vmatpush1.bf16.msra.mxu0 %v758
      %783 = vmatprep.subr.bf16.mxu0 0
      %784 = vmatpush1.bf16.msra.mxu0 0
      %785 = vmatprep.subr.bf16.mxu0 0
      %786 = vmatpush1.bf16.msra.mxu0 0
      %787 = vmatprep.subr.bf16.mxu0 0
      %788 = vmatpush1.bf16.msra.mxu0 0
      %789 = vmatprep.subr.bf16.mxu0 0
      %790 = vmatpush1.bf16.msra.mxu0 0
      %791 = vmatprep.subr.bf16.mxu0 0
      %792 = vmatpush1.bf16.msra.mxu0 0
      %793 = vmatprep.subr.bf16.mxu0 0
      %794 = vmatpush1.bf16.msra.mxu0 0
      %795 = vmatprep.subr.bf16.mxu0 0
      %796 = vmatpush1.bf16.msra.mxu0 0
      %797 = vmatprep.subr.bf16.mxu0 0
      %798 = vmatpush1.bf16.msra.mxu0 0
      %799 = vmatprep.mubr.bf16.mxu0 0
      %800 = vmatmul.mubr.bf16.gmra.mrb[0].mxu0 %v695
      %v801 = vpop.f32.mrb[0].mxu0
      %v802 = vadd.f32 %v717, %v801
      %v803 = vpop.f32.mrb[0].mxu0
      %v804 = vpop.f32.mrb[0].mxu0
      %v805 = vadd.f32 %v717, %v804
      %v806 = vpop.f32.mrb[0].mxu0
      %807 = vdwg.mxu0
      %vm808 = vcmask 261120
      %v809 = vsel %vm808, %v802, 0.0
      %810 = vadd.xlane.f32.xlu0 %v809
      %v811 = vpop.xlane.xlu0 %810
      %v812 = vsel %vm808, %v805, 0.0
      %813 = vadd.xlane.f32.xlu0 %v812
      %v814 = vpop.xlane.xlu0 %813
      %v815 = vrcp.pop 32.0
      %v816 = vmul.f32 %v811, %v815
      %v817 = vmul.f32 %v814, %v815
      %v818 = vsub.f32 %v802, %v816
      %v819 = vsub.f32 %v805, %v817
      %v820 = vmul.f32 %v818, %v818
      %v821 = vmul.f32 %v819, %v819
      %v822 = vsel %vm808, %v820, 0.0
      %823 = vadd.xlane.f32.xlu0 %v822
      %v824 = vpop.xlane.xlu0 %823
      %v825 = vsel %vm808, %v821, 0.0
      %826 = vadd.xlane.f32.xlu0 %v825
      %v827 = vpop.xlane.xlu0 %826
      %v828 = vmul.f32 %v824, %v815
      %v829 = vmul.f32 %v827, %v815
      %v830 = vadd.f32 %v828, 1e-05
      %v831 = vadd.f32 %v829, 1e-05
      %v832 = vrsqrt.pop %v830
      %v833 = vrsqrt.pop %v831
      %v834 = vmul.f32 %v818, %v832
      %v835 = vmul.f32 %v819, %v833
      %v836 = vld [vmem:[%s9] sm:$0x1]
      %v838 = vlaneseq
      %v839 = vshrl.u32 %v838, 7
      %v840 = vsub.s32 0, %v839
      %v841 = vrot.slane %v836, %v840
      %v843 = vmul.f32 %v834, %v841
      %v844 = vmul.f32 %v835, %v841
      %v845 = vld [vmem:[%s10] sm:$0x1]
      %v847 = vlaneseq
      %v848 = vshrl.u32 %v847, 7
      %v849 = vsub.s32 0, %v848
      %v850 = vrot.slane %v845, %v849
      %v852 = vadd.f32 %v843, %v850
      %v853 = vadd.f32 %v844, %v850
      %v854 = vpack.c.bf16 %v853, %v852
      %v856 = vunpack.c.l.b16 %v854
      %v857 = vunpack.c.h.b16 %v854
      %v858 = vpack.c.b16 %v856, %v856
      %v859 = vpack.c.b16 %v857, %v857
      %vm862 = vcmask 257024
      %863 = vst.msk [vmem:[%s388] sm:$0xf] %vm862, %v858
      %864 = vst.msk [vmem:[%s388 + $0x4] sm:$0xf] %vm862, %v859
      %s865 = smul.u32 2, %s22
      %p866 = scmp.lt.s32.totalorder %s865, 3
      %s867 = scalar_select %p866, %s865, 3
      %s868 = smul.addr %s867, 4
      %s869 = scalar_lea.vmem %s11, %s868
      // Predicated region
      $region65: #{gns_forward.10} parent=63 // pred_check
        %p870 = pneg %p276
      $region66: #{gns_forward.10} parent=63 // pred_check_branch
        %872 = sbr.rel (%p870) target = $region68
      $region67: #{gns_forward.10} parent=63 // pred_region
        %s873 = smul.u32 2, %s22
      $region68: #{gns_forward.10} parent=63 // pred_fallthru
        _
    $region64: #{gns_forward.10} parent=5 // pred_fallthru
      _
    %p874 = scmp.le.s32.totalorder 2, %s17
    // Predicated region
    $region69: #{gns_forward.10} parent=5 // pred_check
      %p875 = pneg %p874
    $region70: #{gns_forward.10} parent=5 // pred_check_branch
      %877 = sbr.rel (%p875) target = $region72
    $region71: #{gns_forward.10} parent=5 // pred_region
      %s878 = ssub.s32 %s17, 2
      // Predicated region
      $region73: #{gns_forward.10} parent=71 // pred_check
        %p879 = pneg %p282
      $region74: #{gns_forward.10} parent=71 // pred_check_branch
        %881 = sbr.rel (%p879) target = $region76
      $region75: #{gns_forward.10} parent=71 // pred_region
        %s882 = smul.u32 2, %s23
        %p883 = scmp.lt.s32.totalorder %s882, 3
        %s884 = scalar_select %p883, %s882, 3
        %s885 = smul.addr %s884, 4
        %s886 = scalar_lea.vmem %s11, %s885
      $region76: #{gns_forward.10} parent=71 // pred_fallthru
        _
    $region72: #{gns_forward.10} parent=5 // pred_fallthru
      _
  $region6: #{gns_forward.10} parent=0 // loop_footer
    %s21 = sadd.s32 1, %s17
  $region7: #{gns_forward.10} parent=0 // loop_footer_branch
    %16 = sbr.rel target = $region3
  $region8: #{gns_forward.10} parent=0 // loop_exit
    _

// kernel: gns_forward.11
$region0: #{gns_forward.11}
  #allocation0 [shape = 'u32[]', space=smem, size = 0x4, offset = 0x4, fixed_abs, tag = 'smem constant byte address 0x4 - core index']
  #allocation1 [shape = 'u32[144,128]{1,0:T(1,128)}', space=vmem, size = 0x12000, scoped, tag = 'internal scratch']
  %s0 = inlined_call_operand.vmem [shape: bf16[32,32], index: 0, kind: input, shape index: {}]
  %s1 = inlined_call_operand.vmem [shape: bf16[32,32], index: 1, kind: input, shape index: {}]
  %s2 = inlined_call_operand.vmem [shape: bf16[32,32], index: 2, kind: input, shape index: {}]
  %s3 = inlined_call_operand.vmem [shape: bf16[32,128], index: 3, kind: input, shape index: {}]
  %s4 = inlined_call_operand.vmem [shape: bf16[32,128], index: 4, kind: input, shape index: {}]
  %s5 = inlined_call_operand.vmem [shape: bf16[32,128], index: 5, kind: input, shape index: {}]
  %s6 = inlined_call_operand.vmem [shape: f32[1,128], index: 6, kind: input, shape index: {}]
  %s7 = inlined_call_operand.vmem [shape: bf16[128,128], index: 7, kind: input, shape index: {}]
  %s8 = inlined_call_operand.vmem [shape: f32[1,128], index: 8, kind: input, shape index: {}]
  %s9 = inlined_call_operand.vmem [shape: bf16[128,128], index: 9, kind: input, shape index: {}]
  %s10 = inlined_call_operand.vmem [shape: f32[1,128], index: 10, kind: input, shape index: {}]
  %s11 = inlined_call_operand.vmem [shape: bf16[128,32], index: 11, kind: input, shape index: {}]
  %s12 = inlined_call_operand.vmem [shape: f32[1,32], index: 12, kind: input, shape index: {}]
  %s13 = inlined_call_operand.vmem [shape: f32[1,32], index: 13, kind: input, shape index: {}]
  %s14 = inlined_call_operand.vmem [shape: f32[1,32], index: 14, kind: input, shape index: {}]
  %s15 = inlined_call_operand.vmem [shape: f32[32,32], index: 15, kind: output, shape index: {0}]
  %s16 = inlined_call_operand.vmem [shape: bf16[32,32], index: 16, kind: output, shape index: {1}]
  %17 = xla_tuple %s15, %s16
  %s18 = sld [smem:[#allocation0]]
  $region101: #{gns_forward.11} parent=0
    _
  %s20 = ssub.s32 1, %s18
  %s21 = scalar_select 0, %s20, %s18
  loop: start=0, step=1, limit=4
  $region2: #{gns_forward.11} parent=0 // loop_pre_header
    _
  $region3: #{gns_forward.11} parent=0 // loop_header
    %s23 = sphi 0, %s27
    %p24 = scmp.ge.s32.totalorder %s23, 4
    %s33 = sphi 0, %s35
    %s36 = sphi 0, %s33
    %s37 = sphi 0, %s36
    %s53 = sphi 0, %s37
    %s59 = sphi 0, %s61
    %s62 = sphi 0, %s59
    %s63 = sphi 0, %s62
    %s79 = sphi 0, %s63
    %s85 = sphi 0, %s87
    %s88 = sphi 0, %s85
    %s89 = sphi 0, %s88
    %s105 = sphi 0, %s89
    %s109 = sphi 0, %s109
    %s111 = sphi 0, %s109
    %s112 = sphi 0, %s111
    %s126 = sphi 0, %s112
    %s130 = sphi 0, %s130
    %s132 = sphi 0, %s130
    %s133 = sphi 0, %s132
    %s147 = sphi 0, %s133
    %s151 = sphi 0, %s151
    %s153 = sphi 0, %s151
    %s154 = sphi 0, %s153
    %s168 = sphi 0, %s154
    %s172 = sphi 0, %s172
    %s174 = sphi 0, %s172
    %s175 = sphi 0, %s174
    %s189 = sphi 0, %s175
    %s193 = sphi 0, %s193
    %s195 = sphi 0, %s193
    %s196 = sphi 0, %s195
    %s210 = sphi 0, %s196
    %s214 = sphi 0, %s214
    %s216 = sphi 0, %s214
    %s217 = sphi 0, %s216
    %s231 = sphi 0, %s217
    %s235 = sphi 0, %s235
    %s237 = sphi 0, %s235
    %s238 = sphi 0, %s237
    %s252 = sphi 0, %s238
    %s256 = sphi 0, %s256
    %s258 = sphi 0, %s256
    %s259 = sphi 0, %s258
    %s273 = sphi 0, %s259
    %s277 = sphi 0, %s277
    %s279 = sphi 0, %s277
    %s280 = sphi 0, %s279
    %s294 = sphi 0, %s280
    %s298 = sphi 0, %s298
    %s300 = sphi 0, %s298
    %s301 = sphi 0, %s300
    %s315 = sphi 0, %s301
    %s319 = sphi 0, %s319
    %s321 = sphi 0, %s319
    %s322 = sphi 0, %s321
    %s336 = sphi 0, %s322
    %s340 = sphi 0, %s340
    %s342 = sphi 0, %s340
    %s343 = sphi 0, %s342
    %s357 = sphi 0, %s343
    %s363 = sphi 0, %s365
    %s366 = sphi 0, %s363
    %s367 = sphi 0, %s366
    %s383 = sphi 0, %s367
    %s389 = sphi 0, %s391
    %s392 = sphi 0, %s389
    %s393 = sphi 0, %s392
    %s409 = sphi 0, %s393
  $region4: #{gns_forward.11} parent=0 // loop_header_branch
    %26 = sbr.rel (%p24) target = $region8
  $region5: #{gns_forward.11} parent=0 // loop_body
    %s28 = ssub.s32 %s23, 1
    %s29 = ssub.s32 %s23, 2
    %s30 = sadd.s32 %s23, 1
    %s31 = ssub.s32 %s23, %s30
    %p32 = scmp.eq.s32.totalorder %s31, 0
    %s34 = sadd.s32 %s33, 1
    %s35 = scalar_select %p32, %s33, %s34
    %p38 = pneg %p32
    %p39 = scmp.eq.s32.totalorder %s23, 1
    %p40 = por %p38, %p39
    %p41 = scmp.ne.s32.totalorder %s33, %s36
    %p42 = scmp.eq.s32.totalorder %s23, 0
    %p43 = por %p41, %p42
    %p44 = scmp.ne.s32.totalorder %s33, %s36
    %p45 = scmp.eq.s32.totalorder %s28, 1
    %p46 = por %p44, %p45
    %p47 = scmp.ne.s32.totalorder %s36, %s37
    %p48 = scmp.eq.s32.totalorder %s28, 0
    %p49 = por %p47, %p48
    %p50 = scmp.ne.s32.totalorder %s36, %s37
    %p51 = scmp.eq.s32.totalorder %s29, 1
    %p52 = por %p50, %p51
    %p54 = scmp.ne.s32.totalorder %s37, %s53
    %p55 = scmp.eq.s32.totalorder %s29, 0
    %p56 = por %p54, %p55
    %s57 = ssub.s32 %s23, %s30
    %p58 = scmp.eq.s32.totalorder %s57, 0
    %s60 = sadd.s32 %s59, 1
    %s61 = scalar_select %p58, %s59, %s60
    %p64 = pneg %p58
    %p65 = scmp.eq.s32.totalorder %s23, 1
    %p66 = por %p64, %p65
    %p67 = scmp.ne.s32.totalorder %s59, %s62
    %p68 = scmp.eq.s32.totalorder %s23, 0
    %p69 = por %p67, %p68
    %p70 = scmp.ne.s32.totalorder %s59, %s62
    %p71 = scmp.eq.s32.totalorder %s28, 1
    %p72 = por %p70, %p71
    %p73 = scmp.ne.s32.totalorder %s62, %s63
    %p74 = scmp.eq.s32.totalorder %s28, 0
    %p75 = por %p73, %p74
    %p76 = scmp.ne.s32.totalorder %s62, %s63
    %p77 = scmp.eq.s32.totalorder %s29, 1
    %p78 = por %p76, %p77
    %p80 = scmp.ne.s32.totalorder %s63, %s79
    %p81 = scmp.eq.s32.totalorder %s29, 0
    %p82 = por %p80, %p81
    %s83 = ssub.s32 %s23, %s30
    %p84 = scmp.eq.s32.totalorder %s83, 0
    %s86 = sadd.s32 %s85, 1
    %s87 = scalar_select %p84, %s85, %s86
    %p90 = pneg %p84
    %p91 = scmp.eq.s32.totalorder %s23, 1
    %p92 = por %p90, %p91
    %p93 = scmp.ne.s32.totalorder %s85, %s88
    %p94 = scmp.eq.s32.totalorder %s23, 0
    %p95 = por %p93, %p94
    %p96 = scmp.ne.s32.totalorder %s85, %s88
    %p97 = scmp.eq.s32.totalorder %s28, 1
    %p98 = por %p96, %p97
    %p99 = scmp.ne.s32.totalorder %s88, %s89
    %p100 = scmp.eq.s32.totalorder %s28, 0
    %p101 = por %p99, %p100
    %p102 = scmp.ne.s32.totalorder %s88, %s89
    %p103 = scmp.eq.s32.totalorder %s29, 1
    %p104 = por %p102, %p103
    %p106 = scmp.ne.s32.totalorder %s89, %s105
    %p107 = scmp.eq.s32.totalorder %s29, 0
    %p108 = por %p106, %p107
    %s110 = sadd.s32 %s109, 1
    %p113 = scmp.eq.s32.totalorder %s23, 1
    %p114 = scmp.ne.s32.totalorder %s109, %s111
    %p115 = scmp.eq.s32.totalorder %s23, 0
    %p116 = por %p114, %p115
    %p117 = scmp.ne.s32.totalorder %s109, %s111
    %p118 = scmp.eq.s32.totalorder %s28, 1
    %p119 = por %p117, %p118
    %p120 = scmp.ne.s32.totalorder %s111, %s112
    %p121 = scmp.eq.s32.totalorder %s28, 0
    %p122 = por %p120, %p121
    %p123 = scmp.ne.s32.totalorder %s111, %s112
    %p124 = scmp.eq.s32.totalorder %s29, 1
    %p125 = por %p123, %p124
    %p127 = scmp.ne.s32.totalorder %s112, %s126
    %p128 = scmp.eq.s32.totalorder %s29, 0
    %p129 = por %p127, %p128
    %s131 = sadd.s32 %s130, 1
    %p134 = scmp.eq.s32.totalorder %s23, 1
    %p135 = scmp.ne.s32.totalorder %s130, %s132
    %p136 = scmp.eq.s32.totalorder %s23, 0
    %p137 = por %p135, %p136
    %p138 = scmp.ne.s32.totalorder %s130, %s132
    %p139 = scmp.eq.s32.totalorder %s28, 1
    %p140 = por %p138, %p139
    %p141 = scmp.ne.s32.totalorder %s132, %s133
    %p142 = scmp.eq.s32.totalorder %s28, 0
    %p143 = por %p141, %p142
    %p144 = scmp.ne.s32.totalorder %s132, %s133
    %p145 = scmp.eq.s32.totalorder %s29, 1
    %p146 = por %p144, %p145
    %p148 = scmp.ne.s32.totalorder %s133, %s147
    %p149 = scmp.eq.s32.totalorder %s29, 0
    %p150 = por %p148, %p149
    %s152 = sadd.s32 %s151, 1
    %p155 = scmp.eq.s32.totalorder %s23, 1
    %p156 = scmp.ne.s32.totalorder %s151, %s153
    %p157 = scmp.eq.s32.totalorder %s23, 0
    %p158 = por %p156, %p157
    %p159 = scmp.ne.s32.totalorder %s151, %s153
    %p160 = scmp.eq.s32.totalorder %s28, 1
    %p161 = por %p159, %p160
    %p162 = scmp.ne.s32.totalorder %s153, %s154
    %p163 = scmp.eq.s32.totalorder %s28, 0
    %p164 = por %p162, %p163
    %p165 = scmp.ne.s32.totalorder %s153, %s154
    %p166 = scmp.eq.s32.totalorder %s29, 1
    %p167 = por %p165, %p166
    %p169 = scmp.ne.s32.totalorder %s154, %s168
    %p170 = scmp.eq.s32.totalorder %s29, 0
    %p171 = por %p169, %p170
    %s173 = sadd.s32 %s172, 1
    %p176 = scmp.eq.s32.totalorder %s23, 1
    %p177 = scmp.ne.s32.totalorder %s172, %s174
    %p178 = scmp.eq.s32.totalorder %s23, 0
    %p179 = por %p177, %p178
    %p180 = scmp.ne.s32.totalorder %s172, %s174
    %p181 = scmp.eq.s32.totalorder %s28, 1
    %p182 = por %p180, %p181
    %p183 = scmp.ne.s32.totalorder %s174, %s175
    %p184 = scmp.eq.s32.totalorder %s28, 0
    %p185 = por %p183, %p184
    %p186 = scmp.ne.s32.totalorder %s174, %s175
    %p187 = scmp.eq.s32.totalorder %s29, 1
    %p188 = por %p186, %p187
    %p190 = scmp.ne.s32.totalorder %s175, %s189
    %p191 = scmp.eq.s32.totalorder %s29, 0
    %p192 = por %p190, %p191
    %s194 = sadd.s32 %s193, 1
    %p197 = scmp.eq.s32.totalorder %s23, 1
    %p198 = scmp.ne.s32.totalorder %s193, %s195
    %p199 = scmp.eq.s32.totalorder %s23, 0
    %p200 = por %p198, %p199
    %p201 = scmp.ne.s32.totalorder %s193, %s195
    %p202 = scmp.eq.s32.totalorder %s28, 1
    %p203 = por %p201, %p202
    %p204 = scmp.ne.s32.totalorder %s195, %s196
    %p205 = scmp.eq.s32.totalorder %s28, 0
    %p206 = por %p204, %p205
    %p207 = scmp.ne.s32.totalorder %s195, %s196
    %p208 = scmp.eq.s32.totalorder %s29, 1
    %p209 = por %p207, %p208
    %p211 = scmp.ne.s32.totalorder %s196, %s210
    %p212 = scmp.eq.s32.totalorder %s29, 0
    %p213 = por %p211, %p212
    %s215 = sadd.s32 %s214, 1
    %p218 = scmp.eq.s32.totalorder %s23, 1
    %p219 = scmp.ne.s32.totalorder %s214, %s216
    %p220 = scmp.eq.s32.totalorder %s23, 0
    %p221 = por %p219, %p220
    %p222 = scmp.ne.s32.totalorder %s214, %s216
    %p223 = scmp.eq.s32.totalorder %s28, 1
    %p224 = por %p222, %p223
    %p225 = scmp.ne.s32.totalorder %s216, %s217
    %p226 = scmp.eq.s32.totalorder %s28, 0
    %p227 = por %p225, %p226
    %p228 = scmp.ne.s32.totalorder %s216, %s217
    %p229 = scmp.eq.s32.totalorder %s29, 1
    %p230 = por %p228, %p229
    %p232 = scmp.ne.s32.totalorder %s217, %s231
    %p233 = scmp.eq.s32.totalorder %s29, 0
    %p234 = por %p232, %p233
    %s236 = sadd.s32 %s235, 1
    %p239 = scmp.eq.s32.totalorder %s23, 1
    %p240 = scmp.ne.s32.totalorder %s235, %s237
    %p241 = scmp.eq.s32.totalorder %s23, 0
    %p242 = por %p240, %p241
    %p243 = scmp.ne.s32.totalorder %s235, %s237
    %p244 = scmp.eq.s32.totalorder %s28, 1
    %p245 = por %p243, %p244
    %p246 = scmp.ne.s32.totalorder %s237, %s238
    %p247 = scmp.eq.s32.totalorder %s28, 0
    %p248 = por %p246, %p247
    %p249 = scmp.ne.s32.totalorder %s237, %s238
    %p250 = scmp.eq.s32.totalorder %s29, 1
    %p251 = por %p249, %p250
    %p253 = scmp.ne.s32.totalorder %s238, %s252
    %p254 = scmp.eq.s32.totalorder %s29, 0
    %p255 = por %p253, %p254
    %s257 = sadd.s32 %s256, 1
    %p260 = scmp.eq.s32.totalorder %s23, 1
    %p261 = scmp.ne.s32.totalorder %s256, %s258
    %p262 = scmp.eq.s32.totalorder %s23, 0
    %p263 = por %p261, %p262
    %p264 = scmp.ne.s32.totalorder %s256, %s258
    %p265 = scmp.eq.s32.totalorder %s28, 1
    %p266 = por %p264, %p265
    %p267 = scmp.ne.s32.totalorder %s258, %s259
    %p268 = scmp.eq.s32.totalorder %s28, 0
    %p269 = por %p267, %p268
    %p270 = scmp.ne.s32.totalorder %s258, %s259
    %p271 = scmp.eq.s32.totalorder %s29, 1
    %p272 = por %p270, %p271
    %p274 = scmp.ne.s32.totalorder %s259, %s273
    %p275 = scmp.eq.s32.totalorder %s29, 0
    %p276 = por %p274, %p275
    %s278 = sadd.s32 %s277, 1
    %p281 = scmp.eq.s32.totalorder %s23, 1
    %p282 = scmp.ne.s32.totalorder %s277, %s279
    %p283 = scmp.eq.s32.totalorder %s23, 0
    %p284 = por %p282, %p283
    %p285 = scmp.ne.s32.totalorder %s277, %s279
    %p286 = scmp.eq.s32.totalorder %s28, 1
    %p287 = por %p285, %p286
    %p288 = scmp.ne.s32.totalorder %s279, %s280
    %p289 = scmp.eq.s32.totalorder %s28, 0
    %p290 = por %p288, %p289
    %p291 = scmp.ne.s32.totalorder %s279, %s280
    %p292 = scmp.eq.s32.totalorder %s29, 1
    %p293 = por %p291, %p292
    %p295 = scmp.ne.s32.totalorder %s280, %s294
    %p296 = scmp.eq.s32.totalorder %s29, 0
    %p297 = por %p295, %p296
    %s299 = sadd.s32 %s298, 1
    %p302 = scmp.eq.s32.totalorder %s23, 1
    %p303 = scmp.ne.s32.totalorder %s298, %s300
    %p304 = scmp.eq.s32.totalorder %s23, 0
    %p305 = por %p303, %p304
    %p306 = scmp.ne.s32.totalorder %s298, %s300
    %p307 = scmp.eq.s32.totalorder %s28, 1
    %p308 = por %p306, %p307
    %p309 = scmp.ne.s32.totalorder %s300, %s301
    %p310 = scmp.eq.s32.totalorder %s28, 0
    %p311 = por %p309, %p310
    %p312 = scmp.ne.s32.totalorder %s300, %s301
    %p313 = scmp.eq.s32.totalorder %s29, 1
    %p314 = por %p312, %p313
    %p316 = scmp.ne.s32.totalorder %s301, %s315
    %p317 = scmp.eq.s32.totalorder %s29, 0
    %p318 = por %p316, %p317
    %s320 = sadd.s32 %s319, 1
    %p323 = scmp.eq.s32.totalorder %s23, 1
    %p324 = scmp.ne.s32.totalorder %s319, %s321
    %p325 = scmp.eq.s32.totalorder %s23, 0
    %p326 = por %p324, %p325
    %p327 = scmp.ne.s32.totalorder %s319, %s321
    %p328 = scmp.eq.s32.totalorder %s28, 1
    %p329 = por %p327, %p328
    %p330 = scmp.ne.s32.totalorder %s321, %s322
    %p331 = scmp.eq.s32.totalorder %s28, 0
    %p332 = por %p330, %p331
    %p333 = scmp.ne.s32.totalorder %s321, %s322
    %p334 = scmp.eq.s32.totalorder %s29, 1
    %p335 = por %p333, %p334
    %p337 = scmp.ne.s32.totalorder %s322, %s336
    %p338 = scmp.eq.s32.totalorder %s29, 0
    %p339 = por %p337, %p338
    %s341 = sadd.s32 %s340, 1
    %p344 = scmp.eq.s32.totalorder %s23, 1
    %p345 = scmp.ne.s32.totalorder %s340, %s342
    %p346 = scmp.eq.s32.totalorder %s23, 0
    %p347 = por %p345, %p346
    %p348 = scmp.ne.s32.totalorder %s340, %s342
    %p349 = scmp.eq.s32.totalorder %s28, 1
    %p350 = por %p348, %p349
    %p351 = scmp.ne.s32.totalorder %s342, %s343
    %p352 = scmp.eq.s32.totalorder %s28, 0
    %p353 = por %p351, %p352
    %p354 = scmp.ne.s32.totalorder %s342, %s343
    %p355 = scmp.eq.s32.totalorder %s29, 1
    %p356 = por %p354, %p355
    %p358 = scmp.ne.s32.totalorder %s343, %s357
    %p359 = scmp.eq.s32.totalorder %s29, 0
    %p360 = por %p358, %p359
    %s361 = ssub.s32 %s23, %s30
    %p362 = scmp.eq.s32.totalorder %s361, 0
    %s364 = sadd.s32 %s363, 1
    %s365 = scalar_select %p362, %s363, %s364
    %p368 = pneg %p362
    %p369 = scmp.eq.s32.totalorder %s23, 1
    %p370 = por %p368, %p369
    %p371 = scmp.ne.s32.totalorder %s363, %s366
    %p372 = scmp.eq.s32.totalorder %s23, 0
    %p373 = por %p371, %p372
    %p374 = scmp.ne.s32.totalorder %s363, %s366
    %p375 = scmp.eq.s32.totalorder %s28, 1
    %p376 = por %p374, %p375
    %p377 = scmp.ne.s32.totalorder %s366, %s367
    %p378 = scmp.eq.s32.totalorder %s28, 0
    %p379 = por %p377, %p378
    %p380 = scmp.ne.s32.totalorder %s366, %s367
    %p381 = scmp.eq.s32.totalorder %s29, 1
    %p382 = por %p380, %p381
    %p384 = scmp.ne.s32.totalorder %s367, %s383
    %p385 = scmp.eq.s32.totalorder %s29, 0
    %p386 = por %p384, %p385
    %s387 = ssub.s32 %s23, %s30
    %p388 = scmp.eq.s32.totalorder %s387, 0
    %s390 = sadd.s32 %s389, 1
    %s391 = scalar_select %p388, %s389, %s390
    %p394 = pneg %p388
    %p395 = scmp.eq.s32.totalorder %s23, 1
    %p396 = por %p394, %p395
    %p397 = scmp.ne.s32.totalorder %s389, %s392
    %p398 = scmp.eq.s32.totalorder %s23, 0
    %p399 = por %p397, %p398
    %p400 = scmp.ne.s32.totalorder %s389, %s392
    %p401 = scmp.eq.s32.totalorder %s28, 1
    %p402 = por %p400, %p401
    %p403 = scmp.ne.s32.totalorder %s392, %s393
    %p404 = scmp.eq.s32.totalorder %s28, 0
    %p405 = por %p403, %p404
    %p406 = scmp.ne.s32.totalorder %s392, %s393
    %p407 = scmp.eq.s32.totalorder %s29, 1
    %p408 = por %p406, %p407
    %p410 = scmp.ne.s32.totalorder %s393, %s409
    %p411 = scmp.eq.s32.totalorder %s29, 0
    %p412 = por %p410, %p411
    %p413 = scmp.le.s32.totalorder 1, %s23
    %p414 = scmp.lt.s32.totalorder %s23, 3
    %p415 = pnand %p413, %p414
    %p416 = pneg %p415
    // Predicated region
    $region9: #{gns_forward.11} parent=5 // pred_check
      _
    $region10: #{gns_forward.11} parent=5 // pred_check_branch
      %418 = sbr.rel (%p415) target = $region12
    $region11: #{gns_forward.11} parent=5 // pred_region
      %s419 = ssub.s32 %s23, 1
      // Predicated region
      $region13: #{gns_forward.11} parent=11 // pred_check
        %p420 = pneg %p122
      $region14: #{gns_forward.11} parent=11 // pred_check_branch
        %422 = sbr.rel (%p420) target = $region16
      $region15: #{gns_forward.11} parent=11 // pred_region
        _
      $region16: #{gns_forward.11} parent=11 // pred_fallthru
        _
      // Predicated region
      $region17: #{gns_forward.11} parent=11 // pred_check
        %p423 = pneg %p143
      $region18: #{gns_forward.11} parent=11 // pred_check_branch
        %425 = sbr.rel (%p423) target = $region20
      $region19: #{gns_forward.11} parent=11 // pred_region
        _
      $region20: #{gns_forward.11} parent=11 // pred_fallthru
        _
      // Predicated region
      $region21: #{gns_forward.11} parent=11 // pred_check
        %p426 = pneg %p164
      $region22: #{gns_forward.11} parent=11 // pred_check_branch
        %428 = sbr.rel (%p426) target = $region24
      $region23: #{gns_forward.11} parent=11 // pred_region
        _
      $region24: #{gns_forward.11} parent=11 // pred_fallthru
        _
      // Predicated region
      $region25: #{gns_forward.11} parent=11 // pred_check
        %p429 = pneg %p185
      $region26: #{gns_forward.11} parent=11 // pred_check_branch
        %431 = sbr.rel (%p429) target = $region28
      $region27: #{gns_forward.11} parent=11 // pred_region
        _
      $region28: #{gns_forward.11} parent=11 // pred_fallthru
        _
      // Predicated region
      $region29: #{gns_forward.11} parent=11 // pred_check
        %p432 = pneg %p206
      $region30: #{gns_forward.11} parent=11 // pred_check_branch
        %434 = sbr.rel (%p432) target = $region32
      $region31: #{gns_forward.11} parent=11 // pred_region
        _
      $region32: #{gns_forward.11} parent=11 // pred_fallthru
        _
      // Predicated region
      $region33: #{gns_forward.11} parent=11 // pred_check
        %p435 = pneg %p227
      $region34: #{gns_forward.11} parent=11 // pred_check_branch
        %437 = sbr.rel (%p435) target = $region36
      $region35: #{gns_forward.11} parent=11 // pred_region
        _
      $region36: #{gns_forward.11} parent=11 // pred_fallthru
        _
      // Predicated region
      $region37: #{gns_forward.11} parent=11 // pred_check
        %p438 = pneg %p248
      $region38: #{gns_forward.11} parent=11 // pred_check_branch
        %440 = sbr.rel (%p438) target = $region40
      $region39: #{gns_forward.11} parent=11 // pred_region
        _
      $region40: #{gns_forward.11} parent=11 // pred_fallthru
        _
      // Predicated region
      $region41: #{gns_forward.11} parent=11 // pred_check
        %p441 = pneg %p269
      $region42: #{gns_forward.11} parent=11 // pred_check_branch
        %443 = sbr.rel (%p441) target = $region44
      $region43: #{gns_forward.11} parent=11 // pred_region
        _
      $region44: #{gns_forward.11} parent=11 // pred_fallthru
        _
      // Predicated region
      $region45: #{gns_forward.11} parent=11 // pred_check
        %p444 = pneg %p290
      $region46: #{gns_forward.11} parent=11 // pred_check_branch
        %446 = sbr.rel (%p444) target = $region48
      $region47: #{gns_forward.11} parent=11 // pred_region
        _
      $region48: #{gns_forward.11} parent=11 // pred_fallthru
        _
      // Predicated region
      $region49: #{gns_forward.11} parent=11 // pred_check
        %p447 = pneg %p311
      $region50: #{gns_forward.11} parent=11 // pred_check_branch
        %449 = sbr.rel (%p447) target = $region52
      $region51: #{gns_forward.11} parent=11 // pred_region
        _
      $region52: #{gns_forward.11} parent=11 // pred_fallthru
        _
      // Predicated region
      $region53: #{gns_forward.11} parent=11 // pred_check
        %p450 = pneg %p332
      $region54: #{gns_forward.11} parent=11 // pred_check_branch
        %452 = sbr.rel (%p450) target = $region56
      $region55: #{gns_forward.11} parent=11 // pred_region
        _
      $region56: #{gns_forward.11} parent=11 // pred_fallthru
        _
      // Predicated region
      $region57: #{gns_forward.11} parent=11 // pred_check
        %p453 = pneg %p353
      $region58: #{gns_forward.11} parent=11 // pred_check_branch
        %455 = sbr.rel (%p453) target = $region60
      $region59: #{gns_forward.11} parent=11 // pred_region
        _
      $region60: #{gns_forward.11} parent=11 // pred_fallthru
        _
    $region12: #{gns_forward.11} parent=5 // pred_fallthru
      _
    %p456 = scmp.lt.s32.totalorder %s23, 2
    // Predicated region
    $region61: #{gns_forward.11} parent=5 // pred_check
      %p457 = pneg %p456
    $region62: #{gns_forward.11} parent=5 // pred_check_branch
      %459 = sbr.rel (%p457) target = $region64
    $region63: #{gns_forward.11} parent=5 // pred_region
      // Predicated region
      $region65: #{gns_forward.11} parent=63 // pred_check
        %p460 = pneg %p43
      $region66: #{gns_forward.11} parent=63 // pred_check_branch
        %462 = sbr.rel (%p460) target = $region68
      $region67: #{gns_forward.11} parent=63 // pred_region
        %s463 = smul.u32 2, %s23
        %p464 = scmp.lt.s32.totalorder %s463, 3
        %s465 = scalar_select %p464, %s463, 3
        %s466 = smul.addr %s465, 4
        %s467 = scalar_lea.vmem %s0, %s466
        %s468 = smul.u32 2, %s23
      $region68: #{gns_forward.11} parent=63 // pred_fallthru
        _
      // Predicated region
      $region69: #{gns_forward.11} parent=63 // pred_check
        %p469 = pneg %p69
      $region70: #{gns_forward.11} parent=63 // pred_check_branch
        %471 = sbr.rel (%p469) target = $region72
      $region71: #{gns_forward.11} parent=63 // pred_region
        %s472 = smul.u32 2, %s23
        %p473 = scmp.lt.s32.totalorder %s472, 3
        %s474 = scalar_select %p473, %s472, 3
        %s475 = smul.addr %s474, 4
        %s476 = scalar_lea.vmem %s1, %s475
        %s477 = smul.u32 2, %s23
      $region72: #{gns_forward.11} parent=63 // pred_fallthru
        _
      // Predicated region
      $region73: #{gns_forward.11} parent=63 // pred_check
        %p478 = pneg %p95
      $region74: #{gns_forward.11} parent=63 // pred_check_branch
        %480 = sbr.rel (%p478) target = $region76
      $region75: #{gns_forward.11} parent=63 // pred_region
        %s481 = smul.u32 2, %s23
        %p482 = scmp.lt.s32.totalorder %s481, 3
        %s483 = scalar_select %p482, %s481, 3
        %s484 = smul.addr %s483, 4
        %s485 = scalar_lea.vmem %s2, %s484
        %s486 = smul.u32 2, %s23
      $region76: #{gns_forward.11} parent=63 // pred_fallthru
        _
    $region64: #{gns_forward.11} parent=5 // pred_fallthru
      _
    %p487 = scmp.le.s32.totalorder 1, %s23
    %p488 = scmp.lt.s32.totalorder %s23, 3
    %p489 = pnand %p487, %p488
    %p490 = pneg %p489
    // Predicated region
    $region77: #{gns_forward.11} parent=5 // pred_check
      _
    $region78: #{gns_forward.11} parent=5 // pred_check_branch
      %492 = sbr.rel (%p489) target = $region80
    $region79: #{gns_forward.11} parent=5 // pred_region
      %s493 = ssub.s32 %s23, 1
      %s494 = smul.u32 2, %s28
      %p495 = scmp.lt.s32.totalorder %s494, 3
      %s496 = scalar_select %p495, %s494, 3
      %s497 = smul.addr %s496, 4
      %s498 = scalar_lea.vmem %s0, %s497
      %p499 = pneg %p49
      %p500 = pneg %p46
      %s501 = smul.u32 2, %s28
      %p502 = scmp.lt.s32.totalorder %s501, 3
      %s503 = scalar_select %p502, %s501, 3
      %s504 = smul.addr %s503, 4
      %s505 = scalar_lea.vmem %s1, %s504
      %p506 = pneg %p75
      %p507 = pneg %p72
      %s508 = smul.u32 2, %s28
      %p509 = scmp.lt.s32.totalorder %s508, 3
      %s510 = scalar_select %p509, %s508, 3
      %s511 = smul.addr %s510, 4
      %s512 = scalar_lea.vmem %s2, %s511
      %p513 = pneg %p101
      %p514 = pneg %p98
      %p515 = pneg %p122
      %p516 = pneg %p119
      %p517 = pneg %p143
      %p518 = pneg %p140
      %p519 = pneg %p164
      %p520 = pneg %p161
      %p521 = pneg %p185
      %p522 = pneg %p182
      %p523 = pneg %p206
      %p524 = pneg %p203
      %p525 = pneg %p227
      %p526 = pneg %p224
      %p527 = pneg %p248
      %p528 = pneg %p245
      %p529 = pneg %p269
      %p530 = pneg %p266
      %p531 = pneg %p290
      %p532 = pneg %p287
      %p533 = pneg %p311
      %p534 = pneg %p308
      %p535 = pneg %p332
      %p536 = pneg %p329
      %p537 = pneg %p353
      %p538 = pneg %p350
      %p539 = pneg %p379
      %p540 = pneg %p376
      %s541 = smul.u32 2, %s28
      %p542 = scmp.lt.s32.totalorder %s541, 3
      %s543 = scalar_select %p542, %s541, 3
      %s544 = smul.addr %s543, 8
      %s545 = scalar_lea.vmem %s15, %s544
      %p546 = pneg %p405
      %p547 = pneg %p402
      %s548 = smul.u32 2, %s28
      %p549 = scmp.lt.s32.totalorder %s548, 3
      %s550 = scalar_select %p549, %s548, 3
      %s551 = smul.addr %s550, 4
      %s552 = scalar_lea.vmem %s16, %s551
      %s553 = smul.u32 2, %s28
      %p554 = scmp.lt.s32.totalorder %s553, 3
      %s555 = scalar_select %p554, %s553, 3
      %s556 = smul.addr %s555, 4
      %s557 = scalar_lea.vmem %s0, %s556
      %s558 = smul.u32 2, %s28
      %s559 = smul.u32 2, %s28
      %p560 = scmp.lt.s32.totalorder %s559, 3
      %s561 = scalar_select %p560, %s559, 3
      %s562 = smul.addr %s561, 4
      %s563 = scalar_lea.vmem %s1, %s562
      %s564 = smul.u32 2, %s28
      %s565 = smul.u32 2, %s28
      %p566 = scmp.lt.s32.totalorder %s565, 3
      %s567 = scalar_select %p566, %s565, 3
      %s568 = smul.addr %s567, 4
      %s569 = scalar_lea.vmem %s2, %s568
      %s570 = smul.u32 2, %s28
      %s571 = smul.u32 2, %s28
      %p572 = scmp.lt.s32.totalorder %s571, 3
      %s573 = scalar_select %p572, %s571, 3
      %s574 = smul.addr %s573, 8
      %s575 = scalar_lea.vmem %s15, %s574
      %s576 = smul.u32 2, %s28
      %s577 = smul.u32 2, %s28
      %p578 = scmp.lt.s32.totalorder %s577, 3
      %s579 = scalar_select %p578, %s577, 3
      %s580 = smul.addr %s579, 4
      %s581 = scalar_lea.vmem %s16, %s580
      %s582 = smul.u32 2, %s28
      %v584 = vld [vmem:[%s557] sm:$0xf]
      %v585 = vld [vmem:[%s557 + $0x4] sm:$0xf]
      %v586 = vld [vmem:[%s3] sm:$0xf]
      %v587 = vld [vmem:[%s3 + $0x4] sm:$0xf]
      %v588 = vld [vmem:[%s3 + $0x8] sm:$0xf]
      %v589 = vld [vmem:[%s3 + $0xc] sm:$0xf]
      %v590 = vld [vmem:[%s563] sm:$0xf]
      %v591 = vld [vmem:[%s563 + $0x4] sm:$0xf]
      %v592 = vld [vmem:[%s4] sm:$0xf]
      %v593 = vld [vmem:[%s4 + $0x4] sm:$0xf]
      %v594 = vld [vmem:[%s4 + $0x8] sm:$0xf]
      %v595 = vld [vmem:[%s4 + $0xc] sm:$0xf]
      %v598 = vunpack.c.l.b16 %v590
      %v599 = vunpack.c.l.b16 %v591
      %v600 = vpack.c.b16 %v599, %v598
      %v605 = vunpack.c.l.b16 %v592
      %v606 = vunpack.c.l.b16 %v593
      %v607 = vunpack.c.l.b16 %v594
      %v608 = vunpack.c.l.b16 %v595
      %v609 = vpack.c.b16 %v606, %v605
      %v610 = vpack.c.b16 %v608, %v607
      %vm613 = vcmask 261120
      %v615 = vsel %vm613, %v600, 0
      %617 = vmatprep.subr.bf16.mxu0 0
      %618 = vmatpush1.bf16.msra.mxu0 %v609
      %619 = vmatprep.subr.bf16.mxu0 0
      %620 = vmatpush1.bf16.msra.mxu0 %v610
      %621 = vmatprep.subr.bf16.mxu0 0
      %622 = vmatpush1.bf16.msra.mxu0 0
      %623 = vmatprep.subr.bf16.mxu0 0
      %624 = vmatpush1.bf16.msra.mxu0 0
      %625 = vmatprep.subr.bf16.mxu0 0
      %626 = vmatpush1.bf16.msra.mxu0 0
      %627 = vmatprep.subr.bf16.mxu0 0
      %628 = vmatpush1.bf16.msra.mxu0 0
      %629 = vmatprep.subr.bf16.mxu0 0
      %630 = vmatpush1.bf16.msra.mxu0 0
      %631 = vmatprep.subr.bf16.mxu0 0
      %632 = vmatpush1.bf16.msra.mxu0 0
      %633 = vmatprep.subr.bf16.mxu0 0
      %634 = vmatpush1.bf16.msra.mxu0 0
      %635 = vmatprep.subr.bf16.mxu0 0
      %636 = vmatpush1.bf16.msra.mxu0 0
      %637 = vmatprep.subr.bf16.mxu0 0
      %638 = vmatpush1.bf16.msra.mxu0 0
      %639 = vmatprep.subr.bf16.mxu0 0
      %640 = vmatpush1.bf16.msra.mxu0 0
      %641 = vmatprep.subr.bf16.mxu0 0
      %642 = vmatpush1.bf16.msra.mxu0 0
      %643 = vmatprep.subr.bf16.mxu0 0
      %644 = vmatpush1.bf16.msra.mxu0 0
      %645 = vmatprep.subr.bf16.mxu0 0
      %646 = vmatpush1.bf16.msra.mxu0 0
      %647 = vmatprep.subr.bf16.mxu0 0
      %648 = vmatpush1.bf16.msra.mxu0 0
      %649 = vmatprep.mubr.bf16.mxu0 0
      %650 = vmatmul.mubr.bf16.gmra.mrb[0].mxu0 %v615
      %v651 = vpop.f32.mrb[0].mxu0
      %v652 = vadd.f32 0.0, %v651
      %v653 = vpop.f32.mrb[0].mxu0
      %v654 = vpop.f32.mrb[0].mxu0
      %v655 = vadd.f32 0.0, %v654
      %v656 = vpop.f32.mrb[0].mxu0
      %657 = vdwg.mxu0
      %v660 = vunpack.c.l.b16 %v584
      %v661 = vunpack.c.l.b16 %v585
      %v662 = vpack.c.b16 %v661, %v660
      %v667 = vunpack.c.l.b16 %v586
      %v668 = vunpack.c.l.b16 %v587
      %v669 = vunpack.c.l.b16 %v588
      %v670 = vunpack.c.l.b16 %v589
      %v671 = vpack.c.b16 %v668, %v667
      %v672 = vpack.c.b16 %v670, %v669
      %v676 = vsel %vm613, %v662, 0
      %678 = vmatprep.subr.bf16.mxu0 0
      %679 = vmatpush1.bf16.msra.mxu0 %v671
      %680 = vmatprep.subr.bf16.mxu0 0
      %681 = vmatpush1.bf16.msra.mxu0 %v672
      %682 = vmatprep.subr.bf16.mxu0 0
      %683 = vmatpush1.bf16.msra.mxu0 0
      %684 = vmatprep.subr.bf16.mxu0 0
      %685 = vmatpush1.bf16.msra.mxu0 0
      %686 = vmatprep.subr.bf16.mxu0 0
      %687 = vmatpush1.bf16.msra.mxu0 0
      %688 = vmatprep.subr.bf16.mxu0 0
      %689 = vmatpush1.bf16.msra.mxu0 0
      %690 = vmatprep.subr.bf16.mxu0 0
      %691 = vmatpush1.bf16.msra.mxu0 0
      %692 = vmatprep.subr.bf16.mxu0 0
      %693 = vmatpush1.bf16.msra.mxu0 0
      %694 = vmatprep.subr.bf16.mxu0 0
      %695 = vmatpush1.bf16.msra.mxu0 0
      %696 = vmatprep.subr.bf16.mxu0 0
      %697 = vmatpush1.bf16.msra.mxu0 0
      %698 = vmatprep.subr.bf16.mxu0 0
      %699 = vmatpush1.bf16.msra.mxu0 0
      %700 = vmatprep.subr.bf16.mxu0 0
      %701 = vmatpush1.bf16.msra.mxu0 0
      %702 = vmatprep.subr.bf16.mxu0 0
      %703 = vmatpush1.bf16.msra.mxu0 0
      %704 = vmatprep.subr.bf16.mxu0 0
      %705 = vmatpush1.bf16.msra.mxu0 0
      %706 = vmatprep.subr.bf16.mxu0 0
      %707 = vmatpush1.bf16.msra.mxu0 0
      %708 = vmatprep.subr.bf16.mxu0 0
      %709 = vmatpush1.bf16.msra.mxu0 0
      %710 = vmatprep.mubr.bf16.mxu0 0
      %711 = vmatmul.mubr.bf16.gmra.mrb[0].mxu0 %v676
      %v712 = vpop.f32.mrb[0].mxu0
      %v713 = vadd.f32 %v652, %v712
      %v714 = vpop.f32.mrb[0].mxu0
      %v715 = vpop.f32.mrb[0].mxu0
      %v716 = vadd.f32 %v655, %v715
      %v717 = vpop.f32.mrb[0].mxu0
      %718 = vdwg.mxu0
      %v719 = vld [vmem:[%s569] sm:$0xf]
      %v720 = vld [vmem:[%s569 + $0x4] sm:$0xf]
      %v721 = vld [vmem:[%s5] sm:$0xf]
      %v722 = vld [vmem:[%s5 + $0x4] sm:$0xf]
      %v723 = vld [vmem:[%s5 + $0x8] sm:$0xf]
      %v724 = vld [vmem:[%s5 + $0xc] sm:$0xf]
      %v727 = vunpack.c.l.b16 %v719
      %v728 = vunpack.c.l.b16 %v720
      %v729 = vpack.c.b16 %v728, %v727
      %v734 = vunpack.c.l.b16 %v721
      %v735 = vunpack.c.l.b16 %v722
      %v736 = vunpack.c.l.b16 %v723
      %v737 = vunpack.c.l.b16 %v724
      %v738 = vpack.c.b16 %v735, %v734
      %v739 = vpack.c.b16 %v737, %v736
      %v743 = vsel %vm613, %v729, 0
      %745 = vmatprep.subr.bf16.mxu0 0
      %746 = vmatpush1.bf16.msra.mxu0 %v738
      %747 = vmatprep.subr.bf16.mxu0 0
      %748 = vmatpush1.bf16.msra.mxu0 %v739
      %749 = vmatprep.subr.bf16.mxu0 0
      %750 = vmatpush1.bf16.msra.mxu0 0
      %751 = vmatprep.subr.bf16.mxu0 0
      %752 = vmatpush1.bf16.msra.mxu0 0
      %753 = vmatprep.subr.bf16.mxu0 0
      %754 = vmatpush1.bf16.msra.mxu0 0
      %755 = vmatprep.subr.bf16.mxu0 0
      %756 = vmatpush1.bf16.msra.mxu0 0
      %757 = vmatprep.subr.bf16.mxu0 0
      %758 = vmatpush1.bf16.msra.mxu0 0
      %759 = vmatprep.subr.bf16.mxu0 0
      %760 = vmatpush1.bf16.msra.mxu0 0
      %761 = vmatprep.subr.bf16.mxu0 0
      %762 = vmatpush1.bf16.msra.mxu0 0
      %763 = vmatprep.subr.bf16.mxu0 0
      %764 = vmatpush1.bf16.msra.mxu0 0
      %765 = vmatprep.subr.bf16.mxu0 0
      %766 = vmatpush1.bf16.msra.mxu0 0
      %767 = vmatprep.subr.bf16.mxu0 0
      %768 = vmatpush1.bf16.msra.mxu0 0
      %769 = vmatprep.subr.bf16.mxu0 0
      %770 = vmatpush1.bf16.msra.mxu0 0
      %771 = vmatprep.subr.bf16.mxu0 0
      %772 = vmatpush1.bf16.msra.mxu0 0
      %773 = vmatprep.subr.bf16.mxu0 0
      %774 = vmatpush1.bf16.msra.mxu0 0
      %775 = vmatprep.subr.bf16.mxu0 0
      %776 = vmatpush1.bf16.msra.mxu0 0
      %777 = vmatprep.mubr.bf16.mxu0 0
      %778 = vmatmul.mubr.bf16.gmra.mrb[0].mxu0 %v743
      %v779 = vpop.f32.mrb[0].mxu0
      %v780 = vadd.f32 0.0, %v779
      %v781 = vpop.f32.mrb[0].mxu0
      %v782 = vpop.f32.mrb[0].mxu0
      %v783 = vadd.f32 0.0, %v782
      %v784 = vpop.f32.mrb[0].mxu0
      %785 = vdwg.mxu0
      %v786 = vadd.f32 %v713, %v780
      %v787 = vadd.f32 %v716, %v783
      %v788 = vld [vmem:[%s6] sm:$0x1]
      %v790 = vlaneseq
      %v791 = vshrl.u32 %v790, 7
      %v792 = vsub.s32 0, %v791
      %v793 = vrot.slane %v788, %v792
      %v795 = vadd.f32 %v786, %v793
      %v796 = vadd.f32 %v787, %v793
      %vm797 = vcmp.gt.f32.partialorder %v795, 0.0
      %vm798 = vcmp.gt.f32.partialorder %v796, 0.0
      %v799 = vmul.f32 %v795, 0.01
      %v800 = vmul.f32 %v796, 0.01
      %v801 = vsel %vm797, %v795, %v799
      %v802 = vsel %vm798, %v796, %v800
      %v803 = vpack.c.bf16 %v802, %v801
      %v804 = vld [vmem:[%s7] sm:$0xf]
      %v805 = vld [vmem:[%s7 + $0x4] sm:$0xf]
      %v806 = vld [vmem:[%s7 + $0x8] sm:$0xf]
      %v807 = vld [vmem:[%s7 + $0xc] sm:$0xf]
      %v808 = vld [vmem:[%s7 + $0x10] sm:$0xf]
      %v809 = vld [vmem:[%s7 + $0x14] sm:$0xf]
      %v810 = vld [vmem:[%s7 + $0x18] sm:$0xf]
      %v811 = vld [vmem:[%s7 + $0x1c] sm:$0xf]
      %v812 = vld [vmem:[%s7 + $0x20] sm:$0xf]
      %v813 = vld [vmem:[%s7 + $0x24] sm:$0xf]
      %v814 = vld [vmem:[%s7 + $0x28] sm:$0xf]
      %v815 = vld [vmem:[%s7 + $0x2c] sm:$0xf]
      %v816 = vld [vmem:[%s7 + $0x30] sm:$0xf]
      %v817 = vld [vmem:[%s7 + $0x34] sm:$0xf]
      %v818 = vld [vmem:[%s7 + $0x38] sm:$0xf]
      %v819 = vld [vmem:[%s7 + $0x3c] sm:$0xf]
      %v820 = vld [vmem:[%s8] sm:$0x1]
      %v822 = vlaneseq
      %v823 = vshrl.u32 %v822, 7
      %v824 = vsub.s32 0, %v823
      %v825 = vrot.slane %v820, %v824
      %v843 = vunpack.c.l.b16 %v804
      %v844 = vunpack.c.l.b16 %v805
      %v845 = vunpack.c.l.b16 %v806
      %v846 = vunpack.c.l.b16 %v807
      %v847 = vunpack.c.l.b16 %v808
      %v848 = vunpack.c.l.b16 %v809
      %v849 = vunpack.c.l.b16 %v810
      %v850 = vunpack.c.l.b16 %v811
      %v851 = vunpack.c.l.b16 %v812
      %v852 = vunpack.c.l.b16 %v813
      %v853 = vunpack.c.l.b16 %v814
      %v854 = vunpack.c.l.b16 %v815
      %v855 = vunpack.c.l.b16 %v816
      %v856 = vunpack.c.l.b16 %v817
      %v857 = vunpack.c.l.b16 %v818
      %v858 = vunpack.c.l.b16 %v819
      %v859 = vpack.c.b16 %v844, %v843
      %v860 = vpack.c.b16 %v846, %v845
      %v861 = vpack.c.b16 %v848, %v847
      %v862 = vpack.c.b16 %v850, %v849
      %v863 = vpack.c.b16 %v852, %v851
      %v864 = vpack.c.b16 %v854, %v853
      %v865 = vpack.c.b16 %v856, %v855
      %v866 = vpack.c.b16 %v858, %v857
      %875 = vmatprep.subr.bf16.mxu0 0
      %876 = vmatpush1.bf16.msra.mxu0 %v859
      %877 = vmatprep.subr.bf16.mxu0 0
      %878 = vmatpush1.bf16.msra.mxu0 %v860
      %879 = vmatprep.subr.bf16.mxu0 0
      %880 = vmatpush1.bf16.msra.mxu0 %v861
      %881 = vmatprep.subr.bf16.mxu0 0
      %882 = vmatpush1.bf16.msra.mxu0 %v862
      %883 = vmatprep.subr.bf16.mxu0 0
      %884 = vmatpush1.bf16.msra.mxu0 %v863
      %885 = vmatprep.subr.bf16.mxu0 0
      %886 = vmatpush1.bf16.msra.mxu0 %v864
      %887 = vmatprep.subr.bf16.mxu0 0
      %888 = vmatpush1.bf16.msra.mxu0 %v865
      %889 = vmatprep.subr.bf16.mxu0 0
      %890 = vmatpush1.bf16.msra.mxu0 %v866
      %891 = vmatprep.subr.bf16.mxu0 0
      %892 = vmatpush1.bf16.msra.mxu0 0
      %893 = vmatprep.subr.bf16.mxu0 0
      %894 = vmatpush1.bf16.msra.mxu0 0
      %895 = vmatprep.subr.bf16.mxu0 0
      %896 = vmatpush1.bf16.msra.mxu0 0
      %897 = vmatprep.subr.bf16.mxu0 0
      %898 = vmatpush1.bf16.msra.mxu0 0
      %899 = vmatprep.subr.bf16.mxu0 0
      %900 = vmatpush1.bf16.msra.mxu0 0
      %901 = vmatprep.subr.bf16.mxu0 0
      %902 = vmatpush1.bf16.msra.mxu0 0
      %903 = vmatprep.subr.bf16.mxu0 0
      %904 = vmatpush1.bf16.msra.mxu0 0
      %905 = vmatprep.subr.bf16.mxu0 0
      %906 = vmatpush1.bf16.msra.mxu0 0
      %907 = vmatprep.mubr.bf16.mxu0 0
      %908 = vmatmul.mubr.bf16.gmra.mrb[0].mxu0 %v803
      %v909 = vpop.f32.mrb[0].mxu0
      %v910 = vadd.f32 %v825, %v909
      %v911 = vpop.f32.mrb[0].mxu0
      %v912 = vpop.f32.mrb[0].mxu0
      %v913 = vadd.f32 %v825, %v912
      %v914 = vpop.f32.mrb[0].mxu0
      %915 = vdwg.mxu0
      %vm916 = vcmp.gt.f32.partialorder %v910, 0.0
      %vm917 = vcmp.gt.f32.partialorder %v913, 0.0
      %v918 = vmul.f32 %v910, 0.01
      %v919 = vmul.f32 %v913, 0.01
      %v920 = vsel %vm916, %v910, %v918
      %v921 = vsel %vm917, %v913, %v919
      %v922 = vpack.c.bf16 %v921, %v920
      %v923 = vld [vmem:[%s9] sm:$0xf]
      %v924 = vld [vmem:[%s9 + $0x4] sm:$0xf]
      %v925 = vld [vmem:[%s9 + $0x8] sm:$0xf]
      %v926 = vld [vmem:[%s9 + $0xc] sm:$0xf]
      %v927 = vld [vmem:[%s9 + $0x10] sm:$0xf]
      %v928 = vld [vmem:[%s9 + $0x14] sm:$0xf]
      %v929 = vld [vmem:[%s9 + $0x18] sm:$0xf]
      %v930 = vld [vmem:[%s9 + $0x1c] sm:$0xf]
      %v931 = vld [vmem:[%s9 + $0x20] sm:$0xf]
      %v932 = vld [vmem:[%s9 + $0x24] sm:$0xf]
      %v933 = vld [vmem:[%s9 + $0x28] sm:$0xf]
      %v934 = vld [vmem:[%s9 + $0x2c] sm:$0xf]
      %v935 = vld [vmem:[%s9 + $0x30] sm:$0xf]
      %v936 = vld [vmem:[%s9 + $0x34] sm:$0xf]
      %v937 = vld [vmem:[%s9 + $0x38] sm:$0xf]
      %v938 = vld [vmem:[%s9 + $0x3c] sm:$0xf]
      %v939 = vld [vmem:[%s10] sm:$0x1]
      %v941 = vlaneseq
      %v942 = vshrl.u32 %v941, 7
      %v943 = vsub.s32 0, %v942
      %v944 = vrot.slane %v939, %v943
      %v962 = vunpack.c.l.b16 %v923
      %v963 = vunpack.c.l.b16 %v924
      %v964 = vunpack.c.l.b16 %v925
      %v965 = vunpack.c.l.b16 %v926
      %v966 = vunpack.c.l.b16 %v927
      %v967 = vunpack.c.l.b16 %v928
      %v968 = vunpack.c.l.b16 %v929
      %v969 = vunpack.c.l.b16 %v930
      %v970 = vunpack.c.l.b16 %v931
      %v971 = vunpack.c.l.b16 %v932
      %v972 = vunpack.c.l.b16 %v933
      %v973 = vunpack.c.l.b16 %v934
      %v974 = vunpack.c.l.b16 %v935
      %v975 = vunpack.c.l.b16 %v936
      %v976 = vunpack.c.l.b16 %v937
      %v977 = vunpack.c.l.b16 %v938
      %v978 = vpack.c.b16 %v963, %v962
      %v979 = vpack.c.b16 %v965, %v964
      %v980 = vpack.c.b16 %v967, %v966
      %v981 = vpack.c.b16 %v969, %v968
      %v982 = vpack.c.b16 %v971, %v970
      %v983 = vpack.c.b16 %v973, %v972
      %v984 = vpack.c.b16 %v975, %v974
      %v985 = vpack.c.b16 %v977, %v976
      %994 = vmatprep.subr.bf16.mxu0 0
      %995 = vmatpush1.bf16.msra.mxu0 %v978
      %996 = vmatprep.subr.bf16.mxu0 0
      %997 = vmatpush1.bf16.msra.mxu0 %v979
      %998 = vmatprep.subr.bf16.mxu0 0
      %999 = vmatpush1.bf16.msra.mxu0 %v980
      %1000 = vmatprep.subr.bf16.mxu0 0
      %1001 = vmatpush1.bf16.msra.mxu0 %v981
      %1002 = vmatprep.subr.bf16.mxu0 0
      %1003 = vmatpush1.bf16.msra.mxu0 %v982
      %1004 = vmatprep.subr.bf16.mxu0 0
      %1005 = vmatpush1.bf16.msra.mxu0 %v983
      %1006 = vmatprep.subr.bf16.mxu0 0
      %1007 = vmatpush1.bf16.msra.mxu0 %v984
      %1008 = vmatprep.subr.bf16.mxu0 0
      %1009 = vmatpush1.bf16.msra.mxu0 %v985
      %1010 = vmatprep.subr.bf16.mxu0 0
      %1011 = vmatpush1.bf16.msra.mxu0 0
      %1012 = vmatprep.subr.bf16.mxu0 0
      %1013 = vmatpush1.bf16.msra.mxu0 0
      %1014 = vmatprep.subr.bf16.mxu0 0
      %1015 = vmatpush1.bf16.msra.mxu0 0
      %1016 = vmatprep.subr.bf16.mxu0 0
      %1017 = vmatpush1.bf16.msra.mxu0 0
      %1018 = vmatprep.subr.bf16.mxu0 0
      %1019 = vmatpush1.bf16.msra.mxu0 0
      %1020 = vmatprep.subr.bf16.mxu0 0
      %1021 = vmatpush1.bf16.msra.mxu0 0
      %1022 = vmatprep.subr.bf16.mxu0 0
      %1023 = vmatpush1.bf16.msra.mxu0 0
      %1024 = vmatprep.subr.bf16.mxu0 0
      %1025 = vmatpush1.bf16.msra.mxu0 0
      %1026 = vmatprep.mubr.bf16.mxu0 0
      %1027 = vmatmul.mubr.bf16.gmra.mrb[0].mxu0 %v922
      %v1028 = vpop.f32.mrb[0].mxu0
      %v1029 = vadd.f32 %v944, %v1028
      %v1030 = vpop.f32.mrb[0].mxu0
      %v1031 = vpop.f32.mrb[0].mxu0
      %v1032 = vadd.f32 %v944, %v1031
      %v1033 = vpop.f32.mrb[0].mxu0
      %1034 = vdwg.mxu0
      %vm1035 = vcmp.gt.f32.partialorder %v1029, 0.0
      %vm1036 = vcmp.gt.f32.partialorder %v1032, 0.0
      %v1037 = vmul.f32 %v1029, 0.01
      %v1038 = vmul.f32 %v1032, 0.01
      %v1039 = vsel %vm1035, %v1029, %v1037
      %v1040 = vsel %vm1036, %v1032, %v1038
      %v1041 = vpack.c.bf16 %v1040, %v1039
      %v1042 = vld [vmem:[%s11] sm:$0xf]
      %v1043 = vld [vmem:[%s11 + $0x4] sm:$0xf]
      %v1044 = vld [vmem:[%s11 + $0x8] sm:$0xf]
      %v1045 = vld [vmem:[%s11 + $0xc] sm:$0xf]
      %v1046 = vld [vmem:[%s11 + $0x10] sm:$0xf]
      %v1047 = vld [vmem:[%s11 + $0x14] sm:$0xf]
      %v1048 = vld [vmem:[%s11 + $0x18] sm:$0xf]
      %v1049 = vld [vmem:[%s11 + $0x1c] sm:$0xf]
      %v1050 = vld [vmem:[%s11 + $0x20] sm:$0xf]
      %v1051 = vld [vmem:[%s11 + $0x24] sm:$0xf]
      %v1052 = vld [vmem:[%s11 + $0x28] sm:$0xf]
      %v1053 = vld [vmem:[%s11 + $0x2c] sm:$0xf]
      %v1054 = vld [vmem:[%s11 + $0x30] sm:$0xf]
      %v1055 = vld [vmem:[%s11 + $0x34] sm:$0xf]
      %v1056 = vld [vmem:[%s11 + $0x38] sm:$0xf]
      %v1057 = vld [vmem:[%s11 + $0x3c] sm:$0xf]
      %v1058 = vld [vmem:[%s12] sm:$0x1]
      %v1060 = vlaneseq
      %v1061 = vshrl.u32 %v1060, 7
      %v1062 = vsub.s32 0, %v1061
      %v1063 = vrot.slane %v1058, %v1062
      %v1081 = vunpack.c.l.b16 %v1042
      %v1082 = vunpack.c.l.b16 %v1043
      %v1083 = vunpack.c.l.b16 %v1044
      %v1084 = vunpack.c.l.b16 %v1045
      %v1085 = vunpack.c.l.b16 %v1046
      %v1086 = vunpack.c.l.b16 %v1047
      %v1087 = vunpack.c.l.b16 %v1048
      %v1088 = vunpack.c.l.b16 %v1049
      %v1089 = vunpack.c.l.b16 %v1050
      %v1090 = vunpack.c.l.b16 %v1051
      %v1091 = vunpack.c.l.b16 %v1052
      %v1092 = vunpack.c.l.b16 %v1053
      %v1093 = vunpack.c.l.b16 %v1054
      %v1094 = vunpack.c.l.b16 %v1055
      %v1095 = vunpack.c.l.b16 %v1056
      %v1096 = vunpack.c.l.b16 %v1057
      %v1097 = vpack.c.b16 %v1082, %v1081
      %v1098 = vpack.c.b16 %v1084, %v1083
      %v1099 = vpack.c.b16 %v1086, %v1085
      %v1100 = vpack.c.b16 %v1088, %v1087
      %v1101 = vpack.c.b16 %v1090, %v1089
      %v1102 = vpack.c.b16 %v1092, %v1091
      %v1103 = vpack.c.b16 %v1094, %v1093
      %v1104 = vpack.c.b16 %v1096, %v1095
      %1113 = vmatprep.subr.bf16.mxu0 0
      %1114 = vmatpush1.bf16.msra.mxu0 %v1097
      %1115 = vmatprep.subr.bf16.mxu0 0
      %1116 = vmatpush1.bf16.msra.mxu0 %v1098
      %1117 = vmatprep.subr.bf16.mxu0 0
      %1118 = vmatpush1.bf16.msra.mxu0 %v1099
      %1119 = vmatprep.subr.bf16.mxu0 0
      %1120 = vmatpush1.bf16.msra.mxu0 %v1100
      %1121 = vmatprep.subr.bf16.mxu0 0
      %1122 = vmatpush1.bf16.msra.mxu0 %v1101
      %1123 = vmatprep.subr.bf16.mxu0 0
      %1124 = vmatpush1.bf16.msra.mxu0 %v1102
      %1125 = vmatprep.subr.bf16.mxu0 0
      %1126 = vmatpush1.bf16.msra.mxu0 %v1103
      %1127 = vmatprep.subr.bf16.mxu0 0
      %1128 = vmatpush1.bf16.msra.mxu0 %v1104
      %1129 = vmatprep.subr.bf16.mxu0 0
      %1130 = vmatpush1.bf16.msra.mxu0 0
      %1131 = vmatprep.subr.bf16.mxu0 0
      %1132 = vmatpush1.bf16.msra.mxu0 0
      %1133 = vmatprep.subr.bf16.mxu0 0
      %1134 = vmatpush1.bf16.msra.mxu0 0
      %1135 = vmatprep.subr.bf16.mxu0 0
      %1136 = vmatpush1.bf16.msra.mxu0 0
      %1137 = vmatprep.subr.bf16.mxu0 0
      %1138 = vmatpush1.bf16.msra.mxu0 0
      %1139 = vmatprep.subr.bf16.mxu0 0
      %1140 = vmatpush1.bf16.msra.mxu0 0
      %1141 = vmatprep.subr.bf16.mxu0 0
      %1142 = vmatpush1.bf16.msra.mxu0 0
      %1143 = vmatprep.subr.bf16.mxu0 0
      %1144 = vmatpush1.bf16.msra.mxu0 0
      %1145 = vmatprep.mubr.bf16.mxu0 0
      %1146 = vmatmul.mubr.bf16.gmra.mrb[0].mxu0 %v1041
      %v1147 = vpop.f32.mrb[0].mxu0
      %v1148 = vadd.f32 %v1063, %v1147
      %v1149 = vpop.f32.mrb[0].mxu0
      %v1150 = vpop.f32.mrb[0].mxu0
      %v1151 = vadd.f32 %v1063, %v1150
      %v1152 = vpop.f32.mrb[0].mxu0
      %1153 = vdwg.mxu0
      %v1154 = vsel %vm613, %v1148, 0.0
      %1155 = vadd.xlane.f32.xlu0 %v1154
      %v1156 = vpop.xlane.xlu0 %1155
      %v1157 = vsel %vm613, %v1151, 0.0
      %1158 = vadd.xlane.f32.xlu0 %v1157
      %v1159 = vpop.xlane.xlu0 %1158
      %v1160 = vrcp.pop 32.0
      %v1161 = vmul.f32 %v1156, %v1160
      %v1162 = vmul.f32 %v1159, %v1160
      %v1163 = vsub.f32 %v1148, %v1161
      %v1164 = vsub.f32 %v1151, %v1162
      %v1165 = vmul.f32 %v1163, %v1163
      %v1166 = vmul.f32 %v1164, %v1164
      %v1167 = vsel %vm613, %v1165, 0.0
      %1168 = vadd.xlane.f32.xlu0 %v1167
      %v1169 = vpop.xlane.xlu0 %1168
      %v1170 = vsel %vm613, %v1166, 0.0
      %1171 = vadd.xlane.f32.xlu0 %v1170
      %v1172 = vpop.xlane.xlu0 %1171
      %v1173 = vmul.f32 %v1169, %v1160
      %v1174 = vmul.f32 %v1172, %v1160
      %v1175 = vadd.f32 %v1173, 1e-05
      %v1176 = vadd.f32 %v1174, 1e-05
      %v1177 = vrsqrt.pop %v1175
      %v1178 = vrsqrt.pop %v1176
      %v1179 = vmul.f32 %v1163, %v1177
      %v1180 = vmul.f32 %v1164, %v1178
      %v1181 = vld [vmem:[%s13] sm:$0x1]
      %v1183 = vlaneseq
      %v1184 = vshrl.u32 %v1183, 7
      %v1185 = vsub.s32 0, %v1184
      %v1186 = vrot.slane %v1181, %v1185
      %v1188 = vmul.f32 %v1179, %v1186
      %v1189 = vmul.f32 %v1180, %v1186
      %v1190 = vld [vmem:[%s14] sm:$0x1]
      %v1192 = vlaneseq
      %v1193 = vshrl.u32 %v1192, 7
      %v1194 = vsub.s32 0, %v1193
      %v1195 = vrot.slane %v1190, %v1194
      %v1197 = vadd.f32 %v1188, %v1195
      %v1198 = vadd.f32 %v1189, %v1195
      %1199 = vst.msk [vmem:[%s575] sm:$0xff] %vm613, %v1197
      %1200 = vst.msk [vmem:[%s575 + $0x8] sm:$0xff] %vm613, %v1198
      %v1201 = vld [vmem:[%s569] sm:$0xf]
      %v1202 = vld [vmem:[%s569 + $0x4] sm:$0xf]
      %v1203 = vunpack.c.l.bf16 %v1201
      %v1204 = vunpack.c.l.bf16 %v1202
      %v1205 = vadd.f32 %v1197, %v1203
      %v1206 = vadd.f32 %v1198, %v1204
      %v1207 = vpack.c.bf16 %v1206, %v1205
      %v1209 = vunpack.c.l.b16 %v1207
      %v1210 = vunpack.c.h.b16 %v1207
      %v1211 = vpack.c.b16 %v1209, %v1209
      %v1212 = vpack.c.b16 %v1210, %v1210
      %vm1215 = vcmask 257024
      %1216 = vst.msk [vmem:[%s581] sm:$0xf] %vm1215, %v1211
      %1217 = vst.msk [vmem:[%s581 + $0x4] sm:$0xf] %vm1215, %v1212
      %s1218 = smul.u32 2, %s28
      %p1219 = scmp.lt.s32.totalorder %s1218, 3
      %s1220 = scalar_select %p1219, %s1218, 3
      %s1221 = smul.addr %s1220, 8
      %s1222 = scalar_lea.vmem %s15, %s1221
      %s1223 = smul.u32 2, %s28
      %p1224 = scmp.lt.s32.totalorder %s1223, 3
      %s1225 = scalar_select %p1224, %s1223, 3
      %s1226 = smul.addr %s1225, 4
      %s1227 = scalar_lea.vmem %s16, %s1226
      // Predicated region
      $region81: #{gns_forward.11} parent=79 // pred_check
        %p1228 = pneg %p376
      $region82: #{gns_forward.11} parent=79 // pred_check_branch
        %1230 = sbr.rel (%p1228) target = $region84
      $region83: #{gns_forward.11} parent=79 // pred_region
        %s1231 = smul.u32 2, %s28
      $region84: #{gns_forward.11} parent=79 // pred_fallthru
        _
      // Predicated region
      $region85: #{gns_forward.11} parent=79 // pred_check
        %p1232 = pneg %p402
      $region86: #{gns_forward.11} parent=79 // pred_check_branch
        %1234 = sbr.rel (%p1232) target = $region88
      $region87: #{gns_forward.11} parent=79 // pred_region
        %s1235 = smul.u32 2, %s28
      $region88: #{gns_forward.11} parent=79 // pred_fallthru
        _
    $region80: #{gns_forward.11} parent=5 // pred_fallthru
      _
    %p1236 = scmp.le.s32.totalorder 2, %s23
    // Predicated region
    $region89: #{gns_forward.11} parent=5 // pred_check
      %p1237 = pneg %p1236
    $region90: #{gns_forward.11} parent=5 // pred_check_branch
      %1239 = sbr.rel (%p1237) target = $region92
    $region91: #{gns_forward.11} parent=5 // pred_region
      %s1240 = ssub.s32 %s23, 2
      // Predicated region
      $region93: #{gns_forward.11} parent=91 // pred_check
        %p1241 = pneg %p382
      $region94: #{gns_forward.11} parent=91 // pred_check_branch
        %1243 = sbr.rel (%p1241) target = $region96
      $region95: #{gns_forward.11} parent=91 // pred_region
        %s1244 = smul.u32 2, %s29
        %p1245 = scmp.lt.s32.totalorder %s1244, 3
        %s1246 = scalar_select %p1245, %s1244, 3
        %s1247 = smul.addr %s1246, 8
        %s1248 = scalar_lea.vmem %s15, %s1247
      $region96: #{gns_forward.11} parent=91 // pred_fallthru
        _
      // Predicated region
      $region97: #{gns_forward.11} parent=91 // pred_check
        %p1249 = pneg %p408
      $region98: #{gns_forward.11} parent=91 // pred_check_branch
        %1251 = sbr.rel (%p1249) target = $region100
      $region99: #{gns_forward.11} parent=91 // pred_region
        %s1252 = smul.u32 2, %s29
        %p1253 = scmp.lt.s32.totalorder %s1252, 3
        %s1254 = scalar_select %p1253, %s1252, 3
        %s1255 = smul.addr %s1254, 4
        %s1256 = scalar_lea.vmem %s16, %s1255
      $region100: #{gns_forward.11} parent=91 // pred_fallthru
        _
    $region92: #{gns_forward.11} parent=5 // pred_fallthru
      _
  $region6: #{gns_forward.11} parent=0 // loop_footer
    %s27 = sadd.s32 1, %s23
  $region7: #{gns_forward.11} parent=0 // loop_footer_branch
    %22 = sbr.rel target = $region3
  $region8: #{gns_forward.11} parent=0 // loop_exit
    _

// kernel: gns_forward.12
$region0: #{gns_forward.12}
  #allocation0 [shape = 'u32[]', space=smem, size = 0x4, offset = 0x4, fixed_abs, tag = 'smem constant byte address 0x4 - core index']
  #allocation1 [shape = 'u32[144,128]{1,0:T(1,128)}', space=vmem, size = 0x12000, scoped, tag = 'internal scratch']
  %s0 = inlined_call_operand.vmem [shape: f32[16,32], index: 0, kind: input, shape index: {}]
  %s1 = inlined_call_operand.vmem [shape: bf16[16,32], index: 1, kind: input, shape index: {}]
  %s2 = inlined_call_operand.vmem [shape: bf16[32,128], index: 2, kind: input, shape index: {}]
  %s3 = inlined_call_operand.vmem [shape: bf16[32,128], index: 3, kind: input, shape index: {}]
  %s4 = inlined_call_operand.vmem [shape: f32[1,128], index: 4, kind: input, shape index: {}]
  %s5 = inlined_call_operand.vmem [shape: bf16[128,128], index: 5, kind: input, shape index: {}]
  %s6 = inlined_call_operand.vmem [shape: f32[1,128], index: 6, kind: input, shape index: {}]
  %s7 = inlined_call_operand.vmem [shape: bf16[128,128], index: 7, kind: input, shape index: {}]
  %s8 = inlined_call_operand.vmem [shape: f32[1,128], index: 8, kind: input, shape index: {}]
  %s9 = inlined_call_operand.vmem [shape: bf16[128,32], index: 9, kind: input, shape index: {}]
  %s10 = inlined_call_operand.vmem [shape: f32[1,32], index: 10, kind: input, shape index: {}]
  %s11 = inlined_call_operand.vmem [shape: f32[1,32], index: 11, kind: input, shape index: {}]
  %s12 = inlined_call_operand.vmem [shape: f32[1,32], index: 12, kind: input, shape index: {}]
  %s13 = inlined_call_operand.vmem [shape: bf16[16,32], index: 13, kind: output, shape index: {}]
  %s14 = sld [smem:[#allocation0]]
  $region62: #{gns_forward.12} parent=0
    _
  %s16 = ssub.s32 1, %s14
  %s17 = scalar_select 0, %s16, %s14
  // Predicated region
  $region2: #{gns_forward.12} parent=0 // pred_check
    _
  $region3: #{gns_forward.12} parent=0 // pred_check_branch
    %19 = sbr.rel (0) target = $region5
  $region4: #{gns_forward.12} parent=0 // pred_region
    _
  $region5: #{gns_forward.12} parent=0 // pred_fallthru
    _
  // Predicated region
  $region6: #{gns_forward.12} parent=0 // pred_check
    _
  $region7: #{gns_forward.12} parent=0 // pred_check_branch
    %21 = sbr.rel (0) target = $region9
  $region8: #{gns_forward.12} parent=0 // pred_region
    _
  $region9: #{gns_forward.12} parent=0 // pred_fallthru
    _
  // Predicated region
  $region10: #{gns_forward.12} parent=0 // pred_check
    _
  $region11: #{gns_forward.12} parent=0 // pred_check_branch
    %23 = sbr.rel (0) target = $region13
  $region12: #{gns_forward.12} parent=0 // pred_region
    _
  $region13: #{gns_forward.12} parent=0 // pred_fallthru
    _
  // Predicated region
  $region14: #{gns_forward.12} parent=0 // pred_check
    _
  $region15: #{gns_forward.12} parent=0 // pred_check_branch
    %25 = sbr.rel (0) target = $region17
  $region16: #{gns_forward.12} parent=0 // pred_region
    _
  $region17: #{gns_forward.12} parent=0 // pred_fallthru
    _
  // Predicated region
  $region18: #{gns_forward.12} parent=0 // pred_check
    _
  $region19: #{gns_forward.12} parent=0 // pred_check_branch
    %27 = sbr.rel (0) target = $region21
  $region20: #{gns_forward.12} parent=0 // pred_region
    _
  $region21: #{gns_forward.12} parent=0 // pred_fallthru
    _
  // Predicated region
  $region22: #{gns_forward.12} parent=0 // pred_check
    _
  $region23: #{gns_forward.12} parent=0 // pred_check_branch
    %29 = sbr.rel (0) target = $region25
  $region24: #{gns_forward.12} parent=0 // pred_region
    _
  $region25: #{gns_forward.12} parent=0 // pred_fallthru
    _
  // Predicated region
  $region26: #{gns_forward.12} parent=0 // pred_check
    _
  $region27: #{gns_forward.12} parent=0 // pred_check_branch
    %31 = sbr.rel (0) target = $region29
  $region28: #{gns_forward.12} parent=0 // pred_region
    _
  $region29: #{gns_forward.12} parent=0 // pred_fallthru
    _
  // Predicated region
  $region30: #{gns_forward.12} parent=0 // pred_check
    _
  $region31: #{gns_forward.12} parent=0 // pred_check_branch
    %33 = sbr.rel (0) target = $region33
  $region32: #{gns_forward.12} parent=0 // pred_region
    _
  $region33: #{gns_forward.12} parent=0 // pred_fallthru
    _
  // Predicated region
  $region34: #{gns_forward.12} parent=0 // pred_check
    _
  $region35: #{gns_forward.12} parent=0 // pred_check_branch
    %35 = sbr.rel (0) target = $region37
  $region36: #{gns_forward.12} parent=0 // pred_region
    _
  $region37: #{gns_forward.12} parent=0 // pred_fallthru
    _
  // Predicated region
  $region38: #{gns_forward.12} parent=0 // pred_check
    _
  $region39: #{gns_forward.12} parent=0 // pred_check_branch
    %37 = sbr.rel (0) target = $region41
  $region40: #{gns_forward.12} parent=0 // pred_region
    _
  $region41: #{gns_forward.12} parent=0 // pred_fallthru
    _
  // Predicated region
  $region42: #{gns_forward.12} parent=0 // pred_check
    _
  $region43: #{gns_forward.12} parent=0 // pred_check_branch
    %39 = sbr.rel (0) target = $region45
  $region44: #{gns_forward.12} parent=0 // pred_region
    _
  $region45: #{gns_forward.12} parent=0 // pred_fallthru
    _
  // Predicated region
  $region46: #{gns_forward.12} parent=0 // pred_check
    _
  $region47: #{gns_forward.12} parent=0 // pred_check_branch
    %41 = sbr.rel (0) target = $region49
  $region48: #{gns_forward.12} parent=0 // pred_region
    _
  $region49: #{gns_forward.12} parent=0 // pred_fallthru
    _
  // Predicated region
  $region50: #{gns_forward.12} parent=0 // pred_check
    _
  $region51: #{gns_forward.12} parent=0 // pred_check_branch
    %43 = sbr.rel (0) target = $region53
  $region52: #{gns_forward.12} parent=0 // pred_region
    _
  $region53: #{gns_forward.12} parent=0 // pred_fallthru
    _
  %v45 = vld [vmem:[%s0] sm:$0xff]
  %v46 = vld [vmem:[%s0 + $0x8] sm:$0xff]
  %v47 = vpack.c.bf16 %v46, %v45
  %v48 = vld [vmem:[%s2] sm:$0xf]
  %v49 = vld [vmem:[%s2 + $0x4] sm:$0xf]
  %v50 = vld [vmem:[%s2 + $0x8] sm:$0xf]
  %v51 = vld [vmem:[%s2 + $0xc] sm:$0xf]
  %v52 = vld [vmem:[%s1] sm:$0xf]
  %v53 = vld [vmem:[%s1 + $0x4] sm:$0xf]
  %v54 = vld [vmem:[%s3] sm:$0xf]
  %v55 = vld [vmem:[%s3 + $0x4] sm:$0xf]
  %v56 = vld [vmem:[%s3 + $0x8] sm:$0xf]
  %v57 = vld [vmem:[%s3 + $0xc] sm:$0xf]
  %v60 = vunpack.c.l.b16 %v52
  %v61 = vunpack.c.l.b16 %v53
  %v62 = vpack.c.b16 %v61, %v60
  %v67 = vunpack.c.l.b16 %v54
  %v68 = vunpack.c.l.b16 %v55
  %v69 = vunpack.c.l.b16 %v56
  %v70 = vunpack.c.l.b16 %v57
  %v71 = vpack.c.b16 %v68, %v67
  %v72 = vpack.c.b16 %v70, %v69
  %vm75 = vcmask 261120
  %v77 = vsel %vm75, %v62, 0
  %79 = vmatprep.subr.bf16.mxu0 0
  %80 = vmatpush1.bf16.msra.mxu0 %v71
  %81 = vmatprep.subr.bf16.mxu0 0
  %82 = vmatpush1.bf16.msra.mxu0 %v72
  %83 = vmatprep.subr.bf16.mxu0 0
  %84 = vmatpush1.bf16.msra.mxu0 0
  %85 = vmatprep.subr.bf16.mxu0 0
  %86 = vmatpush1.bf16.msra.mxu0 0
  %87 = vmatprep.subr.bf16.mxu0 0
  %88 = vmatpush1.bf16.msra.mxu0 0
  %89 = vmatprep.subr.bf16.mxu0 0
  %90 = vmatpush1.bf16.msra.mxu0 0
  %91 = vmatprep.subr.bf16.mxu0 0
  %92 = vmatpush1.bf16.msra.mxu0 0
  %93 = vmatprep.subr.bf16.mxu0 0
  %94 = vmatpush1.bf16.msra.mxu0 0
  %95 = vmatprep.subr.bf16.mxu0 0
  %96 = vmatpush1.bf16.msra.mxu0 0
  %97 = vmatprep.subr.bf16.mxu0 0
  %98 = vmatpush1.bf16.msra.mxu0 0
  %99 = vmatprep.subr.bf16.mxu0 0
  %100 = vmatpush1.bf16.msra.mxu0 0
  %101 = vmatprep.subr.bf16.mxu0 0
  %102 = vmatpush1.bf16.msra.mxu0 0
  %103 = vmatprep.subr.bf16.mxu0 0
  %104 = vmatpush1.bf16.msra.mxu0 0
  %105 = vmatprep.subr.bf16.mxu0 0
  %106 = vmatpush1.bf16.msra.mxu0 0
  %107 = vmatprep.subr.bf16.mxu0 0
  %108 = vmatpush1.bf16.msra.mxu0 0
  %109 = vmatprep.subr.bf16.mxu0 0
  %110 = vmatpush1.bf16.msra.mxu0 0
  %111 = vmatprep.mubr.bf16.mxu0 0
  %112 = vmatmul.mubr.bf16.gmra.mrb[0].mxu0 %v77
  %v113 = vpop.f32.mrb[0].mxu0
  %v114 = vadd.f32 0.0, %v113
  %v115 = vpop.f32.mrb[0].mxu0
  %v116 = vpop.f32.mrb[0].mxu0
  %v117 = vadd.f32 0.0, %v116
  %v118 = vpop.f32.mrb[0].mxu0
  %119 = vdwg.mxu0
  %v124 = vunpack.c.l.b16 %v48
  %v125 = vunpack.c.l.b16 %v49
  %v126 = vunpack.c.l.b16 %v50
  %v127 = vunpack.c.l.b16 %v51
  %v128 = vpack.c.b16 %v125, %v124
  %v129 = vpack.c.b16 %v127, %v126
  %v133 = vsel %vm75, %v47, 0
  %135 = vmatprep.subr.bf16.mxu0 0
  %136 = vmatpush1.bf16.msra.mxu0 %v128
  %137 = vmatprep.subr.bf16.mxu0 0
  %138 = vmatpush1.bf16.msra.mxu0 %v129
  %139 = vmatprep.subr.bf16.mxu0 0
  %140 = vmatpush1.bf16.msra.mxu0 0
  %141 = vmatprep.subr.bf16.mxu0 0
  %142 = vmatpush1.bf16.msra.mxu0 0
  %143 = vmatprep.subr.bf16.mxu0 0
  %144 = vmatpush1.bf16.msra.mxu0 0
  %145 = vmatprep.subr.bf16.mxu0 0
  %146 = vmatpush1.bf16.msra.mxu0 0
  %147 = vmatprep.subr.bf16.mxu0 0
  %148 = vmatpush1.bf16.msra.mxu0 0
  %149 = vmatprep.subr.bf16.mxu0 0
  %150 = vmatpush1.bf16.msra.mxu0 0
  %151 = vmatprep.subr.bf16.mxu0 0
  %152 = vmatpush1.bf16.msra.mxu0 0
  %153 = vmatprep.subr.bf16.mxu0 0
  %154 = vmatpush1.bf16.msra.mxu0 0
  %155 = vmatprep.subr.bf16.mxu0 0
  %156 = vmatpush1.bf16.msra.mxu0 0
  %157 = vmatprep.subr.bf16.mxu0 0
  %158 = vmatpush1.bf16.msra.mxu0 0
  %159 = vmatprep.subr.bf16.mxu0 0
  %160 = vmatpush1.bf16.msra.mxu0 0
  %161 = vmatprep.subr.bf16.mxu0 0
  %162 = vmatpush1.bf16.msra.mxu0 0
  %163 = vmatprep.subr.bf16.mxu0 0
  %164 = vmatpush1.bf16.msra.mxu0 0
  %165 = vmatprep.subr.bf16.mxu0 0
  %166 = vmatpush1.bf16.msra.mxu0 0
  %167 = vmatprep.mubr.bf16.mxu0 0
  %168 = vmatmul.mubr.bf16.gmra.mrb[0].mxu0 %v133
  %v169 = vpop.f32.mrb[0].mxu0
  %v170 = vadd.f32 %v114, %v169
  %v171 = vpop.f32.mrb[0].mxu0
  %v172 = vpop.f32.mrb[0].mxu0
  %v173 = vadd.f32 %v117, %v172
  %v174 = vpop.f32.mrb[0].mxu0
  %175 = vdwg.mxu0
  %v176 = vld [vmem:[%s4] sm:$0x1]
  %v178 = vlaneseq
  %v179 = vshrl.u32 %v178, 7
  %v180 = vsub.s32 0, %v179
  %v181 = vrot.slane %v176, %v180
  %v183 = vadd.f32 %v170, %v181
  %v184 = vadd.f32 %v173, %v181
  %vm185 = vcmp.gt.f32.partialorder %v183, 0.0
  %vm186 = vcmp.gt.f32.partialorder %v184, 0.0
  %v187 = vmul.f32 %v183, 0.01
  %v188 = vmul.f32 %v184, 0.01
  %v189 = vsel %vm185, %v183, %v187
  %v190 = vsel %vm186, %v184, %v188
  %v191 = vpack.c.bf16 %v190, %v189
  %v192 = vld [vmem:[%s5] sm:$0xf]
  %v193 = vld [vmem:[%s5 + $0x4] sm:$0xf]
  %v194 = vld [vmem:[%s5 + $0x8] sm:$0xf]
  %v195 = vld [vmem:[%s5 + $0xc] sm:$0xf]
  %v196 = vld [vmem:[%s5 + $0x10] sm:$0xf]
  %v197 = vld [vmem:[%s5 + $0x14] sm:$0xf]
  %v198 = vld [vmem:[%s5 + $0x18] sm:$0xf]
  %v199 = vld [vmem:[%s5 + $0x1c] sm:$0xf]
  %v200 = vld [vmem:[%s5 + $0x20] sm:$0xf]
  %v201 = vld [vmem:[%s5 + $0x24] sm:$0xf]
  %v202 = vld [vmem:[%s5 + $0x28] sm:$0xf]
  %v203 = vld [vmem:[%s5 + $0x2c] sm:$0xf]
  %v204 = vld [vmem:[%s5 + $0x30] sm:$0xf]
  %v205 = vld [vmem:[%s5 + $0x34] sm:$0xf]
  %v206 = vld [vmem:[%s5 + $0x38] sm:$0xf]
  %v207 = vld [vmem:[%s5 + $0x3c] sm:$0xf]
  %v208 = vld [vmem:[%s6] sm:$0x1]
  %v210 = vlaneseq
  %v211 = vshrl.u32 %v210, 7
  %v212 = vsub.s32 0, %v211
  %v213 = vrot.slane %v208, %v212
  %v231 = vunpack.c.l.b16 %v192
  %v232 = vunpack.c.l.b16 %v193
  %v233 = vunpack.c.l.b16 %v194
  %v234 = vunpack.c.l.b16 %v195
  %v235 = vunpack.c.l.b16 %v196
  %v236 = vunpack.c.l.b16 %v197
  %v237 = vunpack.c.l.b16 %v198
  %v238 = vunpack.c.l.b16 %v199
  %v239 = vunpack.c.l.b16 %v200
  %v240 = vunpack.c.l.b16 %v201
  %v241 = vunpack.c.l.b16 %v202
  %v242 = vunpack.c.l.b16 %v203
  %v243 = vunpack.c.l.b16 %v204
  %v244 = vunpack.c.l.b16 %v205
  %v245 = vunpack.c.l.b16 %v206
  %v246 = vunpack.c.l.b16 %v207
  %v247 = vpack.c.b16 %v232, %v231
  %v248 = vpack.c.b16 %v234, %v233
  %v249 = vpack.c.b16 %v236, %v235
  %v250 = vpack.c.b16 %v238, %v237
  %v251 = vpack.c.b16 %v240, %v239
  %v252 = vpack.c.b16 %v242, %v241
  %v253 = vpack.c.b16 %v244, %v243
  %v254 = vpack.c.b16 %v246, %v245
  %263 = vmatprep.subr.bf16.mxu0 0
  %264 = vmatpush1.bf16.msra.mxu0 %v247
  %265 = vmatprep.subr.bf16.mxu0 0
  %266 = vmatpush1.bf16.msra.mxu0 %v248
  %267 = vmatprep.subr.bf16.mxu0 0
  %268 = vmatpush1.bf16.msra.mxu0 %v249
  %269 = vmatprep.subr.bf16.mxu0 0
  %270 = vmatpush1.bf16.msra.mxu0 %v250
  %271 = vmatprep.subr.bf16.mxu0 0
  %272 = vmatpush1.bf16.msra.mxu0 %v251
  %273 = vmatprep.subr.bf16.mxu0 0
  %274 = vmatpush1.bf16.msra.mxu0 %v252
  %275 = vmatprep.subr.bf16.mxu0 0
  %276 = vmatpush1.bf16.msra.mxu0 %v253
  %277 = vmatprep.subr.bf16.mxu0 0
  %278 = vmatpush1.bf16.msra.mxu0 %v254
  %279 = vmatprep.subr.bf16.mxu0 0
  %280 = vmatpush1.bf16.msra.mxu0 0
  %281 = vmatprep.subr.bf16.mxu0 0
  %282 = vmatpush1.bf16.msra.mxu0 0
  %283 = vmatprep.subr.bf16.mxu0 0
  %284 = vmatpush1.bf16.msra.mxu0 0
  %285 = vmatprep.subr.bf16.mxu0 0
  %286 = vmatpush1.bf16.msra.mxu0 0
  %287 = vmatprep.subr.bf16.mxu0 0
  %288 = vmatpush1.bf16.msra.mxu0 0
  %289 = vmatprep.subr.bf16.mxu0 0
  %290 = vmatpush1.bf16.msra.mxu0 0
  %291 = vmatprep.subr.bf16.mxu0 0
  %292 = vmatpush1.bf16.msra.mxu0 0
  %293 = vmatprep.subr.bf16.mxu0 0
  %294 = vmatpush1.bf16.msra.mxu0 0
  %295 = vmatprep.mubr.bf16.mxu0 0
  %296 = vmatmul.mubr.bf16.gmra.mrb[0].mxu0 %v191
  %v297 = vpop.f32.mrb[0].mxu0
  %v298 = vadd.f32 %v213, %v297
  %v299 = vpop.f32.mrb[0].mxu0
  %v300 = vpop.f32.mrb[0].mxu0
  %v301 = vadd.f32 %v213, %v300
  %v302 = vpop.f32.mrb[0].mxu0
  %303 = vdwg.mxu0
  %vm304 = vcmp.gt.f32.partialorder %v298, 0.0
  %vm305 = vcmp.gt.f32.partialorder %v301, 0.0
  %v306 = vmul.f32 %v298, 0.01
  %v307 = vmul.f32 %v301, 0.01
  %v308 = vsel %vm304, %v298, %v306
  %v309 = vsel %vm305, %v301, %v307
  %v310 = vpack.c.bf16 %v309, %v308
  %v311 = vld [vmem:[%s7] sm:$0xf]
  %v312 = vld [vmem:[%s7 + $0x4] sm:$0xf]
  %v313 = vld [vmem:[%s7 + $0x8] sm:$0xf]
  %v314 = vld [vmem:[%s7 + $0xc] sm:$0xf]
  %v315 = vld [vmem:[%s7 + $0x10] sm:$0xf]
  %v316 = vld [vmem:[%s7 + $0x14] sm:$0xf]
  %v317 = vld [vmem:[%s7 + $0x18] sm:$0xf]
  %v318 = vld [vmem:[%s7 + $0x1c] sm:$0xf]
  %v319 = vld [vmem:[%s7 + $0x20] sm:$0xf]
  %v320 = vld [vmem:[%s7 + $0x24] sm:$0xf]
  %v321 = vld [vmem:[%s7 + $0x28] sm:$0xf]
  %v322 = vld [vmem:[%s7 + $0x2c] sm:$0xf]
  %v323 = vld [vmem:[%s7 + $0x30] sm:$0xf]
  %v324 = vld [vmem:[%s7 + $0x34] sm:$0xf]
  %v325 = vld [vmem:[%s7 + $0x38] sm:$0xf]
  %v326 = vld [vmem:[%s7 + $0x3c] sm:$0xf]
  %v327 = vld [vmem:[%s8] sm:$0x1]
  %v329 = vlaneseq
  %v330 = vshrl.u32 %v329, 7
  %v331 = vsub.s32 0, %v330
  %v332 = vrot.slane %v327, %v331
  %v350 = vunpack.c.l.b16 %v311
  %v351 = vunpack.c.l.b16 %v312
  %v352 = vunpack.c.l.b16 %v313
  %v353 = vunpack.c.l.b16 %v314
  %v354 = vunpack.c.l.b16 %v315
  %v355 = vunpack.c.l.b16 %v316
  %v356 = vunpack.c.l.b16 %v317
  %v357 = vunpack.c.l.b16 %v318
  %v358 = vunpack.c.l.b16 %v319
  %v359 = vunpack.c.l.b16 %v320
  %v360 = vunpack.c.l.b16 %v321
  %v361 = vunpack.c.l.b16 %v322
  %v362 = vunpack.c.l.b16 %v323
  %v363 = vunpack.c.l.b16 %v324
  %v364 = vunpack.c.l.b16 %v325
  %v365 = vunpack.c.l.b16 %v326
  %v366 = vpack.c.b16 %v351, %v350
  %v367 = vpack.c.b16 %v353, %v352
  %v368 = vpack.c.b16 %v355, %v354
  %v369 = vpack.c.b16 %v357, %v356
  %v370 = vpack.c.b16 %v359, %v358
  %v371 = vpack.c.b16 %v361, %v360
  %v372 = vpack.c.b16 %v363, %v362
  %v373 = vpack.c.b16 %v365, %v364
  %382 = vmatprep.subr.bf16.mxu0 0
  %383 = vmatpush1.bf16.msra.mxu0 %v366
  %384 = vmatprep.subr.bf16.mxu0 0
  %385 = vmatpush1.bf16.msra.mxu0 %v367
  %386 = vmatprep.subr.bf16.mxu0 0
  %387 = vmatpush1.bf16.msra.mxu0 %v368
  %388 = vmatprep.subr.bf16.mxu0 0
  %389 = vmatpush1.bf16.msra.mxu0 %v369
  %390 = vmatprep.subr.bf16.mxu0 0
  %391 = vmatpush1.bf16.msra.mxu0 %v370
  %392 = vmatprep.subr.bf16.mxu0 0
  %393 = vmatpush1.bf16.msra.mxu0 %v371
  %394 = vmatprep.subr.bf16.mxu0 0
  %395 = vmatpush1.bf16.msra.mxu0 %v372
  %396 = vmatprep.subr.bf16.mxu0 0
  %397 = vmatpush1.bf16.msra.mxu0 %v373
  %398 = vmatprep.subr.bf16.mxu0 0
  %399 = vmatpush1.bf16.msra.mxu0 0
  %400 = vmatprep.subr.bf16.mxu0 0
  %401 = vmatpush1.bf16.msra.mxu0 0
  %402 = vmatprep.subr.bf16.mxu0 0
  %403 = vmatpush1.bf16.msra.mxu0 0
  %404 = vmatprep.subr.bf16.mxu0 0
  %405 = vmatpush1.bf16.msra.mxu0 0
  %406 = vmatprep.subr.bf16.mxu0 0
  %407 = vmatpush1.bf16.msra.mxu0 0
  %408 = vmatprep.subr.bf16.mxu0 0
  %409 = vmatpush1.bf16.msra.mxu0 0
  %410 = vmatprep.subr.bf16.mxu0 0
  %411 = vmatpush1.bf16.msra.mxu0 0
  %412 = vmatprep.subr.bf16.mxu0 0
  %413 = vmatpush1.bf16.msra.mxu0 0
  %414 = vmatprep.mubr.bf16.mxu0 0
  %415 = vmatmul.mubr.bf16.gmra.mrb[0].mxu0 %v310
  %v416 = vpop.f32.mrb[0].mxu0
  %v417 = vadd.f32 %v332, %v416
  %v418 = vpop.f32.mrb[0].mxu0
  %v419 = vpop.f32.mrb[0].mxu0
  %v420 = vadd.f32 %v332, %v419
  %v421 = vpop.f32.mrb[0].mxu0
  %422 = vdwg.mxu0
  %vm423 = vcmp.gt.f32.partialorder %v417, 0.0
  %vm424 = vcmp.gt.f32.partialorder %v420, 0.0
  %v425 = vmul.f32 %v417, 0.01
  %v426 = vmul.f32 %v420, 0.01
  %v427 = vsel %vm423, %v417, %v425
  %v428 = vsel %vm424, %v420, %v426
  %v429 = vpack.c.bf16 %v428, %v427
  %v430 = vld [vmem:[%s9] sm:$0xf]
  %v431 = vld [vmem:[%s9 + $0x4] sm:$0xf]
  %v432 = vld [vmem:[%s9 + $0x8] sm:$0xf]
  %v433 = vld [vmem:[%s9 + $0xc] sm:$0xf]
  %v434 = vld [vmem:[%s9 + $0x10] sm:$0xf]
  %v435 = vld [vmem:[%s9 + $0x14] sm:$0xf]
  %v436 = vld [vmem:[%s9 + $0x18] sm:$0xf]
  %v437 = vld [vmem:[%s9 + $0x1c] sm:$0xf]
  %v438 = vld [vmem:[%s9 + $0x20] sm:$0xf]
  %v439 = vld [vmem:[%s9 + $0x24] sm:$0xf]
  %v440 = vld [vmem:[%s9 + $0x28] sm:$0xf]
  %v441 = vld [vmem:[%s9 + $0x2c] sm:$0xf]
  %v442 = vld [vmem:[%s9 + $0x30] sm:$0xf]
  %v443 = vld [vmem:[%s9 + $0x34] sm:$0xf]
  %v444 = vld [vmem:[%s9 + $0x38] sm:$0xf]
  %v445 = vld [vmem:[%s9 + $0x3c] sm:$0xf]
  %v446 = vld [vmem:[%s10] sm:$0x1]
  %v448 = vlaneseq
  %v449 = vshrl.u32 %v448, 7
  %v450 = vsub.s32 0, %v449
  %v451 = vrot.slane %v446, %v450
  %v469 = vunpack.c.l.b16 %v430
  %v470 = vunpack.c.l.b16 %v431
  %v471 = vunpack.c.l.b16 %v432
  %v472 = vunpack.c.l.b16 %v433
  %v473 = vunpack.c.l.b16 %v434
  %v474 = vunpack.c.l.b16 %v435
  %v475 = vunpack.c.l.b16 %v436
  %v476 = vunpack.c.l.b16 %v437
  %v477 = vunpack.c.l.b16 %v438
  %v478 = vunpack.c.l.b16 %v439
  %v479 = vunpack.c.l.b16 %v440
  %v480 = vunpack.c.l.b16 %v441
  %v481 = vunpack.c.l.b16 %v442
  %v482 = vunpack.c.l.b16 %v443
  %v483 = vunpack.c.l.b16 %v444
  %v484 = vunpack.c.l.b16 %v445
  %v485 = vpack.c.b16 %v470, %v469
  %v486 = vpack.c.b16 %v472, %v471
  %v487 = vpack.c.b16 %v474, %v473
  %v488 = vpack.c.b16 %v476, %v475
  %v489 = vpack.c.b16 %v478, %v477
  %v490 = vpack.c.b16 %v480, %v479
  %v491 = vpack.c.b16 %v482, %v481
  %v492 = vpack.c.b16 %v484, %v483
  %501 = vmatprep.subr.bf16.mxu0 0
  %502 = vmatpush1.bf16.msra.mxu0 %v485
  %503 = vmatprep.subr.bf16.mxu0 0
  %504 = vmatpush1.bf16.msra.mxu0 %v486
  %505 = vmatprep.subr.bf16.mxu0 0
  %506 = vmatpush1.bf16.msra.mxu0 %v487
  %507 = vmatprep.subr.bf16.mxu0 0
  %508 = vmatpush1.bf16.msra.mxu0 %v488
  %509 = vmatprep.subr.bf16.mxu0 0
  %510 = vmatpush1.bf16.msra.mxu0 %v489
  %511 = vmatprep.subr.bf16.mxu0 0
  %512 = vmatpush1.bf16.msra.mxu0 %v490
  %513 = vmatprep.subr.bf16.mxu0 0
  %514 = vmatpush1.bf16.msra.mxu0 %v491
  %515 = vmatprep.subr.bf16.mxu0 0
  %516 = vmatpush1.bf16.msra.mxu0 %v492
  %517 = vmatprep.subr.bf16.mxu0 0
  %518 = vmatpush1.bf16.msra.mxu0 0
  %519 = vmatprep.subr.bf16.mxu0 0
  %520 = vmatpush1.bf16.msra.mxu0 0
  %521 = vmatprep.subr.bf16.mxu0 0
  %522 = vmatpush1.bf16.msra.mxu0 0
  %523 = vmatprep.subr.bf16.mxu0 0
  %524 = vmatpush1.bf16.msra.mxu0 0
  %525 = vmatprep.subr.bf16.mxu0 0
  %526 = vmatpush1.bf16.msra.mxu0 0
  %527 = vmatprep.subr.bf16.mxu0 0
  %528 = vmatpush1.bf16.msra.mxu0 0
  %529 = vmatprep.subr.bf16.mxu0 0
  %530 = vmatpush1.bf16.msra.mxu0 0
  %531 = vmatprep.subr.bf16.mxu0 0
  %532 = vmatpush1.bf16.msra.mxu0 0
  %533 = vmatprep.mubr.bf16.mxu0 0
  %534 = vmatmul.mubr.bf16.gmra.mrb[0].mxu0 %v429
  %v535 = vpop.f32.mrb[0].mxu0
  %v536 = vadd.f32 %v451, %v535
  %v537 = vpop.f32.mrb[0].mxu0
  %v538 = vpop.f32.mrb[0].mxu0
  %v539 = vadd.f32 %v451, %v538
  %v540 = vpop.f32.mrb[0].mxu0
  %541 = vdwg.mxu0
  %v542 = vsel %vm75, %v536, 0.0
  %543 = vadd.xlane.f32.xlu0 %v542
  %v544 = vpop.xlane.xlu0 %543
  %v545 = vsel %vm75, %v539, 0.0
  %546 = vadd.xlane.f32.xlu0 %v545
  %v547 = vpop.xlane.xlu0 %546
  %v548 = vrcp.pop 32.0
  %v549 = vmul.f32 %v544, %v548
  %v550 = vmul.f32 %v547, %v548
  %v551 = vsub.f32 %v536, %v549
  %v552 = vsub.f32 %v539, %v550
  %v553 = vmul.f32 %v551, %v551
  %v554 = vmul.f32 %v552, %v552
  %v555 = vsel %vm75, %v553, 0.0
  %556 = vadd.xlane.f32.xlu0 %v555
  %v557 = vpop.xlane.xlu0 %556
  %v558 = vsel %vm75, %v554, 0.0
  %559 = vadd.xlane.f32.xlu0 %v558
  %v560 = vpop.xlane.xlu0 %559
  %v561 = vmul.f32 %v557, %v548
  %v562 = vmul.f32 %v560, %v548
  %v563 = vadd.f32 %v561, 1e-05
  %v564 = vadd.f32 %v562, 1e-05
  %v565 = vrsqrt.pop %v563
  %v566 = vrsqrt.pop %v564
  %v567 = vmul.f32 %v551, %v565
  %v568 = vmul.f32 %v552, %v566
  %v569 = vld [vmem:[%s11] sm:$0x1]
  %v571 = vlaneseq
  %v572 = vshrl.u32 %v571, 7
  %v573 = vsub.s32 0, %v572
  %v574 = vrot.slane %v569, %v573
  %v576 = vmul.f32 %v567, %v574
  %v577 = vmul.f32 %v568, %v574
  %v578 = vld [vmem:[%s12] sm:$0x1]
  %v580 = vlaneseq
  %v581 = vshrl.u32 %v580, 7
  %v582 = vsub.s32 0, %v581
  %v583 = vrot.slane %v578, %v582
  %v585 = vadd.f32 %v576, %v583
  %v586 = vadd.f32 %v577, %v583
  %v587 = vunpack.c.l.bf16 %v52
  %v588 = vunpack.c.l.bf16 %v53
  %v589 = vadd.f32 %v585, %v587
  %v590 = vadd.f32 %v586, %v588
  %v591 = vpack.c.bf16 %v590, %v589
  %v593 = vunpack.c.l.b16 %v591
  %v594 = vunpack.c.h.b16 %v591
  %v595 = vpack.c.b16 %v593, %v593
  %v596 = vpack.c.b16 %v594, %v594
  %vm599 = vcmask 257024
  %600 = vst.msk [vmem:[%s13] sm:$0xf] %vm599, %v595
  %601 = vst.msk [vmem:[%s13 + $0x4] sm:$0xf] %vm599, %v596
  // Predicated region
  $region54: #{gns_forward.12} parent=0 // pred_check
    _
  $region55: #{gns_forward.12} parent=0 // pred_check_branch
    %603 = sbr.rel (0) target = $region57
  $region56: #{gns_forward.12} parent=0 // pred_region
    _
  $region57: #{gns_forward.12} parent=0 // pred_fallthru
    _
  // Predicated region
  $region58: #{gns_forward.12} parent=0 // pred_check
    _
  $region59: #{gns_forward.12} parent=0 // pred_check_branch
    %605 = sbr.rel (0) target = $region61
  $region60: #{gns_forward.12} parent=0 // pred_region
    _
  $region61: #{gns_forward.12} parent=0 // pred_fallthru
    _

// kernel: gns_forward.17
$region0: #{gns_forward.17}
  #allocation0 [shape = 'u32[]', space=smem, size = 0x4, offset = 0x4, fixed_abs, tag = 'smem constant byte address 0x4 - core index']
  #allocation1 [shape = 'u32[144,128]{1,0:T(1,128)}', space=vmem, size = 0x12000, scoped, tag = 'internal scratch']
  %s0 = inlined_call_operand.vmem [shape: bf16[16,32], index: 0, kind: input, shape index: {}]
  %s1 = inlined_call_operand.vmem [shape: bf16[32,128], index: 1, kind: input, shape index: {}]
  %s2 = inlined_call_operand.vmem [shape: f32[1,128], index: 2, kind: input, shape index: {}]
  %s3 = inlined_call_operand.vmem [shape: bf16[128,128], index: 3, kind: input, shape index: {}]
  %s4 = inlined_call_operand.vmem [shape: f32[1,128], index: 4, kind: input, shape index: {}]
  %s5 = inlined_call_operand.vmem [shape: bf16[128,128], index: 5, kind: input, shape index: {}]
  %s6 = inlined_call_operand.vmem [shape: f32[1,128], index: 6, kind: input, shape index: {}]
  %s7 = inlined_call_operand.vmem [shape: bf16[128,128], index: 7, kind: input, shape index: {}]
  %s8 = inlined_call_operand.vmem [shape: f32[1,128], index: 8, kind: input, shape index: {}]
  %s9 = inlined_call_operand.hbm [shape: f32[16,128], index: 9, kind: output, shape index: {}]
  %s10 = sld [smem:[#allocation0]]
  $region46: #{gns_forward.17} parent=0
    _
  %s12 = ssub.s32 1, %s10
  %s13 = scalar_select 0, %s12, %s10
  $region1: #{gns_forward.17} parent=0
    #allocation2 [shape = 'u8[8192]{0}', space=vmem, size = 0x2000, scoped, tag = 'output window, operand 0, single buffered']
    #allocation3 [shape = 's32[1]{0}', space=sflag, size = 0x4, scoped, tag = 'scoped memory for gns_forward.17']
    %14 = vsyncpa [#allocation3], 0
    // Predicated region
    $region2: #{gns_forward.17} parent=1 // pred_check
      _
    $region3: #{gns_forward.17} parent=1 // pred_check_branch
      %16 = sbr.rel (0) target = $region5
    $region4: #{gns_forward.17} parent=1 // pred_region
      _
    $region5: #{gns_forward.17} parent=1 // pred_fallthru
      _
    // Predicated region
    $region6: #{gns_forward.17} parent=1 // pred_check
      _
    $region7: #{gns_forward.17} parent=1 // pred_check_branch
      %18 = sbr.rel (0) target = $region9
    $region8: #{gns_forward.17} parent=1 // pred_region
      _
    $region9: #{gns_forward.17} parent=1 // pred_fallthru
      _
    // Predicated region
    $region10: #{gns_forward.17} parent=1 // pred_check
      _
    $region11: #{gns_forward.17} parent=1 // pred_check_branch
      %20 = sbr.rel (0) target = $region13
    $region12: #{gns_forward.17} parent=1 // pred_region
      _
    $region13: #{gns_forward.17} parent=1 // pred_fallthru
      _
    // Predicated region
    $region14: #{gns_forward.17} parent=1 // pred_check
      _
    $region15: #{gns_forward.17} parent=1 // pred_check_branch
      %22 = sbr.rel (0) target = $region17
    $region16: #{gns_forward.17} parent=1 // pred_region
      _
    $region17: #{gns_forward.17} parent=1 // pred_fallthru
      _
    // Predicated region
    $region18: #{gns_forward.17} parent=1 // pred_check
      _
    $region19: #{gns_forward.17} parent=1 // pred_check_branch
      %24 = sbr.rel (0) target = $region21
    $region20: #{gns_forward.17} parent=1 // pred_region
      _
    $region21: #{gns_forward.17} parent=1 // pred_fallthru
      _
    // Predicated region
    $region22: #{gns_forward.17} parent=1 // pred_check
      _
    $region23: #{gns_forward.17} parent=1 // pred_check_branch
      %26 = sbr.rel (0) target = $region25
    $region24: #{gns_forward.17} parent=1 // pred_region
      _
    $region25: #{gns_forward.17} parent=1 // pred_fallthru
      _
    // Predicated region
    $region26: #{gns_forward.17} parent=1 // pred_check
      _
    $region27: #{gns_forward.17} parent=1 // pred_check_branch
      %28 = sbr.rel (0) target = $region29
    $region28: #{gns_forward.17} parent=1 // pred_region
      _
    $region29: #{gns_forward.17} parent=1 // pred_fallthru
      _
    // Predicated region
    $region30: #{gns_forward.17} parent=1 // pred_check
      _
    $region31: #{gns_forward.17} parent=1 // pred_check_branch
      %30 = sbr.rel (0) target = $region33
    $region32: #{gns_forward.17} parent=1 // pred_region
      _
    $region33: #{gns_forward.17} parent=1 // pred_fallthru
      _
    // Predicated region
    $region34: #{gns_forward.17} parent=1 // pred_check
      _
    $region35: #{gns_forward.17} parent=1 // pred_check_branch
      %32 = sbr.rel (0) target = $region37
    $region36: #{gns_forward.17} parent=1 // pred_region
      _
    $region37: #{gns_forward.17} parent=1 // pred_fallthru
      _
    %v34 = vld [vmem:[%s0] sm:$0xf]
    %v35 = vld [vmem:[%s0 + $0x4] sm:$0xf]
    %v36 = vld [vmem:[%s1] sm:$0xf]
    %v37 = vld [vmem:[%s1 + $0x4] sm:$0xf]
    %v38 = vld [vmem:[%s1 + $0x8] sm:$0xf]
    %v39 = vld [vmem:[%s1 + $0xc] sm:$0xf]
    %v40 = vld [vmem:[%s2] sm:$0x1]
    %v42 = vlaneseq
    %v43 = vshrl.u32 %v42, 7
    %v44 = vsub.s32 0, %v43
    %v45 = vrot.slane %v40, %v44
    %v49 = vunpack.c.l.b16 %v34
    %v50 = vunpack.c.l.b16 %v35
    %v51 = vpack.c.b16 %v50, %v49
    %v56 = vunpack.c.l.b16 %v36
    %v57 = vunpack.c.l.b16 %v37
    %v58 = vunpack.c.l.b16 %v38
    %v59 = vunpack.c.l.b16 %v39
    %v60 = vpack.c.b16 %v57, %v56
    %v61 = vpack.c.b16 %v59, %v58
    %vm64 = vcmask 261120
    %v66 = vsel %vm64, %v51, 0
    %68 = vmatprep.subr.bf16.mxu0 0
    %69 = vmatpush1.bf16.msra.mxu0 %v60
    %70 = vmatprep.subr.bf16.mxu0 0
    %71 = vmatpush1.bf16.msra.mxu0 %v61
    %72 = vmatprep.subr.bf16.mxu0 0
    %73 = vmatpush1.bf16.msra.mxu0 0
    %74 = vmatprep.subr.bf16.mxu0 0
    %75 = vmatpush1.bf16.msra.mxu0 0
    %76 = vmatprep.subr.bf16.mxu0 0
    %77 = vmatpush1.bf16.msra.mxu0 0
    %78 = vmatprep.subr.bf16.mxu0 0
    %79 = vmatpush1.bf16.msra.mxu0 0
    %80 = vmatprep.subr.bf16.mxu0 0
    %81 = vmatpush1.bf16.msra.mxu0 0
    %82 = vmatprep.subr.bf16.mxu0 0
    %83 = vmatpush1.bf16.msra.mxu0 0
    %84 = vmatprep.subr.bf16.mxu0 0
    %85 = vmatpush1.bf16.msra.mxu0 0
    %86 = vmatprep.subr.bf16.mxu0 0
    %87 = vmatpush1.bf16.msra.mxu0 0
    %88 = vmatprep.subr.bf16.mxu0 0
    %89 = vmatpush1.bf16.msra.mxu0 0
    %90 = vmatprep.subr.bf16.mxu0 0
    %91 = vmatpush1.bf16.msra.mxu0 0
    %92 = vmatprep.subr.bf16.mxu0 0
    %93 = vmatpush1.bf16.msra.mxu0 0
    %94 = vmatprep.subr.bf16.mxu0 0
    %95 = vmatpush1.bf16.msra.mxu0 0
    %96 = vmatprep.subr.bf16.mxu0 0
    %97 = vmatpush1.bf16.msra.mxu0 0
    %98 = vmatprep.subr.bf16.mxu0 0
    %99 = vmatpush1.bf16.msra.mxu0 0
    %100 = vmatprep.mubr.bf16.mxu0 0
    %101 = vmatmul.mubr.bf16.gmra.mrb[0].mxu0 %v66
    %v102 = vpop.f32.mrb[0].mxu0
    %v103 = vadd.f32 %v45, %v102
    %v104 = vpop.f32.mrb[0].mxu0
    %v105 = vpop.f32.mrb[0].mxu0
    %v106 = vadd.f32 %v45, %v105
    %v107 = vpop.f32.mrb[0].mxu0
    %108 = vdwg.mxu0
    %vm109 = vcmp.gt.f32.partialorder %v103, 0.0
    %vm110 = vcmp.gt.f32.partialorder %v106, 0.0
    %v111 = vmul.f32 %v103, 0.01
    %v112 = vmul.f32 %v106, 0.01
    %v113 = vsel %vm109, %v103, %v111
    %v114 = vsel %vm110, %v106, %v112
    %v115 = vpack.c.bf16 %v114, %v113
    %v116 = vld [vmem:[%s3] sm:$0xf]
    %v117 = vld [vmem:[%s3 + $0x4] sm:$0xf]
    %v118 = vld [vmem:[%s3 + $0x8] sm:$0xf]
    %v119 = vld [vmem:[%s3 + $0xc] sm:$0xf]
    %v120 = vld [vmem:[%s3 + $0x10] sm:$0xf]
    %v121 = vld [vmem:[%s3 + $0x14] sm:$0xf]
    %v122 = vld [vmem:[%s3 + $0x18] sm:$0xf]
    %v123 = vld [vmem:[%s3 + $0x1c] sm:$0xf]
    %v124 = vld [vmem:[%s3 + $0x20] sm:$0xf]
    %v125 = vld [vmem:[%s3 + $0x24] sm:$0xf]
    %v126 = vld [vmem:[%s3 + $0x28] sm:$0xf]
    %v127 = vld [vmem:[%s3 + $0x2c] sm:$0xf]
    %v128 = vld [vmem:[%s3 + $0x30] sm:$0xf]
    %v129 = vld [vmem:[%s3 + $0x34] sm:$0xf]
    %v130 = vld [vmem:[%s3 + $0x38] sm:$0xf]
    %v131 = vld [vmem:[%s3 + $0x3c] sm:$0xf]
    %v132 = vld [vmem:[%s4] sm:$0x1]
    %v134 = vlaneseq
    %v135 = vshrl.u32 %v134, 7
    %v136 = vsub.s32 0, %v135
    %v137 = vrot.slane %v132, %v136
    %v155 = vunpack.c.l.b16 %v116
    %v156 = vunpack.c.l.b16 %v117
    %v157 = vunpack.c.l.b16 %v118
    %v158 = vunpack.c.l.b16 %v119
    %v159 = vunpack.c.l.b16 %v120
    %v160 = vunpack.c.l.b16 %v121
    %v161 = vunpack.c.l.b16 %v122
    %v162 = vunpack.c.l.b16 %v123
    %v163 = vunpack.c.l.b16 %v124
    %v164 = vunpack.c.l.b16 %v125
    %v165 = vunpack.c.l.b16 %v126
    %v166 = vunpack.c.l.b16 %v127
    %v167 = vunpack.c.l.b16 %v128
    %v168 = vunpack.c.l.b16 %v129
    %v169 = vunpack.c.l.b16 %v130
    %v170 = vunpack.c.l.b16 %v131
    %v171 = vpack.c.b16 %v156, %v155
    %v172 = vpack.c.b16 %v158, %v157
    %v173 = vpack.c.b16 %v160, %v159
    %v174 = vpack.c.b16 %v162, %v161
    %v175 = vpack.c.b16 %v164, %v163
    %v176 = vpack.c.b16 %v166, %v165
    %v177 = vpack.c.b16 %v168, %v167
    %v178 = vpack.c.b16 %v170, %v169
    %187 = vmatprep.subr.bf16.mxu0 0
    %188 = vmatpush1.bf16.msra.mxu0 %v171
    %189 = vmatprep.subr.bf16.mxu0 0
    %190 = vmatpush1.bf16.msra.mxu0 %v172
    %191 = vmatprep.subr.bf16.mxu0 0
    %192 = vmatpush1.bf16.msra.mxu0 %v173
    %193 = vmatprep.subr.bf16.mxu0 0
    %194 = vmatpush1.bf16.msra.mxu0 %v174
    %195 = vmatprep.subr.bf16.mxu0 0
    %196 = vmatpush1.bf16.msra.mxu0 %v175
    %197 = vmatprep.subr.bf16.mxu0 0
    %198 = vmatpush1.bf16.msra.mxu0 %v176
    %199 = vmatprep.subr.bf16.mxu0 0
    %200 = vmatpush1.bf16.msra.mxu0 %v177
    %201 = vmatprep.subr.bf16.mxu0 0
    %202 = vmatpush1.bf16.msra.mxu0 %v178
    %203 = vmatprep.subr.bf16.mxu0 0
    %204 = vmatpush1.bf16.msra.mxu0 0
    %205 = vmatprep.subr.bf16.mxu0 0
    %206 = vmatpush1.bf16.msra.mxu0 0
    %207 = vmatprep.subr.bf16.mxu0 0
    %208 = vmatpush1.bf16.msra.mxu0 0
    %209 = vmatprep.subr.bf16.mxu0 0
    %210 = vmatpush1.bf16.msra.mxu0 0
    %211 = vmatprep.subr.bf16.mxu0 0
    %212 = vmatpush1.bf16.msra.mxu0 0
    %213 = vmatprep.subr.bf16.mxu0 0
    %214 = vmatpush1.bf16.msra.mxu0 0
    %215 = vmatprep.subr.bf16.mxu0 0
    %216 = vmatpush1.bf16.msra.mxu0 0
    %217 = vmatprep.subr.bf16.mxu0 0
    %218 = vmatpush1.bf16.msra.mxu0 0
    %219 = vmatprep.mubr.bf16.mxu0 0
    %220 = vmatmul.mubr.bf16.gmra.mrb[0].mxu0 %v115
    %v221 = vpop.f32.mrb[0].mxu0
    %v222 = vadd.f32 %v137, %v221
    %v223 = vpop.f32.mrb[0].mxu0
    %v224 = vpop.f32.mrb[0].mxu0
    %v225 = vadd.f32 %v137, %v224
    %v226 = vpop.f32.mrb[0].mxu0
    %227 = vdwg.mxu0
    %vm228 = vcmp.gt.f32.partialorder %v222, 0.0
    %vm229 = vcmp.gt.f32.partialorder %v225, 0.0
    %v230 = vmul.f32 %v222, 0.01
    %v231 = vmul.f32 %v225, 0.01
    %v232 = vsel %vm228, %v222, %v230
    %v233 = vsel %vm229, %v225, %v231
    %v234 = vpack.c.bf16 %v233, %v232
    %v235 = vld [vmem:[%s5] sm:$0xf]
    %v236 = vld [vmem:[%s5 + $0x4] sm:$0xf]
    %v237 = vld [vmem:[%s5 + $0x8] sm:$0xf]
    %v238 = vld [vmem:[%s5 + $0xc] sm:$0xf]
    %v239 = vld [vmem:[%s5 + $0x10] sm:$0xf]
    %v240 = vld [vmem:[%s5 + $0x14] sm:$0xf]
    %v241 = vld [vmem:[%s5 + $0x18] sm:$0xf]
    %v242 = vld [vmem:[%s5 + $0x1c] sm:$0xf]
    %v243 = vld [vmem:[%s5 + $0x20] sm:$0xf]
    %v244 = vld [vmem:[%s5 + $0x24] sm:$0xf]
    %v245 = vld [vmem:[%s5 + $0x28] sm:$0xf]
    %v246 = vld [vmem:[%s5 + $0x2c] sm:$0xf]
    %v247 = vld [vmem:[%s5 + $0x30] sm:$0xf]
    %v248 = vld [vmem:[%s5 + $0x34] sm:$0xf]
    %v249 = vld [vmem:[%s5 + $0x38] sm:$0xf]
    %v250 = vld [vmem:[%s5 + $0x3c] sm:$0xf]
    %v251 = vld [vmem:[%s6] sm:$0x1]
    %v253 = vlaneseq
    %v254 = vshrl.u32 %v253, 7
    %v255 = vsub.s32 0, %v254
    %v256 = vrot.slane %v251, %v255
    %v274 = vunpack.c.l.b16 %v235
    %v275 = vunpack.c.l.b16 %v236
    %v276 = vunpack.c.l.b16 %v237
    %v277 = vunpack.c.l.b16 %v238
    %v278 = vunpack.c.l.b16 %v239
    %v279 = vunpack.c.l.b16 %v240
    %v280 = vunpack.c.l.b16 %v241
    %v281 = vunpack.c.l.b16 %v242
    %v282 = vunpack.c.l.b16 %v243
    %v283 = vunpack.c.l.b16 %v244
    %v284 = vunpack.c.l.b16 %v245
    %v285 = vunpack.c.l.b16 %v246
    %v286 = vunpack.c.l.b16 %v247
    %v287 = vunpack.c.l.b16 %v248
    %v288 = vunpack.c.l.b16 %v249
    %v289 = vunpack.c.l.b16 %v250
    %v290 = vpack.c.b16 %v275, %v274
    %v291 = vpack.c.b16 %v277, %v276
    %v292 = vpack.c.b16 %v279, %v278
    %v293 = vpack.c.b16 %v281, %v280
    %v294 = vpack.c.b16 %v283, %v282
    %v295 = vpack.c.b16 %v285, %v284
    %v296 = vpack.c.b16 %v287, %v286
    %v297 = vpack.c.b16 %v289, %v288
    %306 = vmatprep.subr.bf16.mxu0 0
    %307 = vmatpush1.bf16.msra.mxu0 %v290
    %308 = vmatprep.subr.bf16.mxu0 0
    %309 = vmatpush1.bf16.msra.mxu0 %v291
    %310 = vmatprep.subr.bf16.mxu0 0
    %311 = vmatpush1.bf16.msra.mxu0 %v292
    %312 = vmatprep.subr.bf16.mxu0 0
    %313 = vmatpush1.bf16.msra.mxu0 %v293
    %314 = vmatprep.subr.bf16.mxu0 0
    %315 = vmatpush1.bf16.msra.mxu0 %v294
    %316 = vmatprep.subr.bf16.mxu0 0
    %317 = vmatpush1.bf16.msra.mxu0 %v295
    %318 = vmatprep.subr.bf16.mxu0 0
    %319 = vmatpush1.bf16.msra.mxu0 %v296
    %320 = vmatprep.subr.bf16.mxu0 0
    %321 = vmatpush1.bf16.msra.mxu0 %v297
    %322 = vmatprep.subr.bf16.mxu0 0
    %323 = vmatpush1.bf16.msra.mxu0 0
    %324 = vmatprep.subr.bf16.mxu0 0
    %325 = vmatpush1.bf16.msra.mxu0 0
    %326 = vmatprep.subr.bf16.mxu0 0
    %327 = vmatpush1.bf16.msra.mxu0 0
    %328 = vmatprep.subr.bf16.mxu0 0
    %329 = vmatpush1.bf16.msra.mxu0 0
    %330 = vmatprep.subr.bf16.mxu0 0
    %331 = vmatpush1.bf16.msra.mxu0 0
    %332 = vmatprep.subr.bf16.mxu0 0
    %333 = vmatpush1.bf16.msra.mxu0 0
    %334 = vmatprep.subr.bf16.mxu0 0
    %335 = vmatpush1.bf16.msra.mxu0 0
    %336 = vmatprep.subr.bf16.mxu0 0
    %337 = vmatpush1.bf16.msra.mxu0 0
    %338 = vmatprep.mubr.bf16.mxu0 0
    %339 = vmatmul.mubr.bf16.gmra.mrb[0].mxu0 %v234
    %v340 = vpop.f32.mrb[0].mxu0
    %v341 = vadd.f32 %v256, %v340
    %v342 = vpop.f32.mrb[0].mxu0
    %v343 = vpop.f32.mrb[0].mxu0
    %v344 = vadd.f32 %v256, %v343
    %v345 = vpop.f32.mrb[0].mxu0
    %346 = vdwg.mxu0
    %vm347 = vcmp.gt.f32.partialorder %v341, 0.0
    %vm348 = vcmp.gt.f32.partialorder %v344, 0.0
    %v349 = vmul.f32 %v341, 0.01
    %v350 = vmul.f32 %v344, 0.01
    %v351 = vsel %vm347, %v341, %v349
    %v352 = vsel %vm348, %v344, %v350
    %v353 = vpack.c.bf16 %v352, %v351
    %v354 = vld [vmem:[%s7] sm:$0xf]
    %v355 = vld [vmem:[%s7 + $0x4] sm:$0xf]
    %v356 = vld [vmem:[%s7 + $0x8] sm:$0xf]
    %v357 = vld [vmem:[%s7 + $0xc] sm:$0xf]
    %v358 = vld [vmem:[%s7 + $0x10] sm:$0xf]
    %v359 = vld [vmem:[%s7 + $0x14] sm:$0xf]
    %v360 = vld [vmem:[%s7 + $0x18] sm:$0xf]
    %v361 = vld [vmem:[%s7 + $0x1c] sm:$0xf]
    %v362 = vld [vmem:[%s7 + $0x20] sm:$0xf]
    %v363 = vld [vmem:[%s7 + $0x24] sm:$0xf]
    %v364 = vld [vmem:[%s7 + $0x28] sm:$0xf]
    %v365 = vld [vmem:[%s7 + $0x2c] sm:$0xf]
    %v366 = vld [vmem:[%s7 + $0x30] sm:$0xf]
    %v367 = vld [vmem:[%s7 + $0x34] sm:$0xf]
    %v368 = vld [vmem:[%s7 + $0x38] sm:$0xf]
    %v369 = vld [vmem:[%s7 + $0x3c] sm:$0xf]
    %v370 = vld [vmem:[%s8] sm:$0x1]
    %v372 = vlaneseq
    %v373 = vshrl.u32 %v372, 7
    %v374 = vsub.s32 0, %v373
    %v375 = vrot.slane %v370, %v374
    %v393 = vunpack.c.l.b16 %v354
    %v394 = vunpack.c.l.b16 %v355
    %v395 = vunpack.c.l.b16 %v356
    %v396 = vunpack.c.l.b16 %v357
    %v397 = vunpack.c.l.b16 %v358
    %v398 = vunpack.c.l.b16 %v359
    %v399 = vunpack.c.l.b16 %v360
    %v400 = vunpack.c.l.b16 %v361
    %v401 = vunpack.c.l.b16 %v362
    %v402 = vunpack.c.l.b16 %v363
    %v403 = vunpack.c.l.b16 %v364
    %v404 = vunpack.c.l.b16 %v365
    %v405 = vunpack.c.l.b16 %v366
    %v406 = vunpack.c.l.b16 %v367
    %v407 = vunpack.c.l.b16 %v368
    %v408 = vunpack.c.l.b16 %v369
    %v409 = vpack.c.b16 %v394, %v393
    %v410 = vpack.c.b16 %v396, %v395
    %v411 = vpack.c.b16 %v398, %v397
    %v412 = vpack.c.b16 %v400, %v399
    %v413 = vpack.c.b16 %v402, %v401
    %v414 = vpack.c.b16 %v404, %v403
    %v415 = vpack.c.b16 %v406, %v405
    %v416 = vpack.c.b16 %v408, %v407
    %425 = vmatprep.subr.bf16.mxu0 0
    %426 = vmatpush1.bf16.msra.mxu0 %v409
    %427 = vmatprep.subr.bf16.mxu0 0
    %428 = vmatpush1.bf16.msra.mxu0 %v410
    %429 = vmatprep.subr.bf16.mxu0 0
    %430 = vmatpush1.bf16.msra.mxu0 %v411
    %431 = vmatprep.subr.bf16.mxu0 0
    %432 = vmatpush1.bf16.msra.mxu0 %v412
    %433 = vmatprep.subr.bf16.mxu0 0
    %434 = vmatpush1.bf16.msra.mxu0 %v413
    %435 = vmatprep.subr.bf16.mxu0 0
    %436 = vmatpush1.bf16.msra.mxu0 %v414
    %437 = vmatprep.subr.bf16.mxu0 0
    %438 = vmatpush1.bf16.msra.mxu0 %v415
    %439 = vmatprep.subr.bf16.mxu0 0
    %440 = vmatpush1.bf16.msra.mxu0 %v416
    %441 = vmatprep.subr.bf16.mxu0 0
    %442 = vmatpush1.bf16.msra.mxu0 0
    %443 = vmatprep.subr.bf16.mxu0 0
    %444 = vmatpush1.bf16.msra.mxu0 0
    %445 = vmatprep.subr.bf16.mxu0 0
    %446 = vmatpush1.bf16.msra.mxu0 0
    %447 = vmatprep.subr.bf16.mxu0 0
    %448 = vmatpush1.bf16.msra.mxu0 0
    %449 = vmatprep.subr.bf16.mxu0 0
    %450 = vmatpush1.bf16.msra.mxu0 0
    %451 = vmatprep.subr.bf16.mxu0 0
    %452 = vmatpush1.bf16.msra.mxu0 0
    %453 = vmatprep.subr.bf16.mxu0 0
    %454 = vmatpush1.bf16.msra.mxu0 0
    %455 = vmatprep.subr.bf16.mxu0 0
    %456 = vmatpush1.bf16.msra.mxu0 0
    %457 = vmatprep.mubr.bf16.mxu0 0
    %458 = vmatmul.mubr.bf16.gmra.mrb[0].mxu0 %v353
    %v459 = vpop.f32.mrb[0].mxu0
    %v460 = vadd.f32 %v375, %v459
    %v461 = vpop.f32.mrb[0].mxu0
    %v462 = vpop.f32.mrb[0].mxu0
    %v463 = vadd.f32 %v375, %v462
    %v464 = vpop.f32.mrb[0].mxu0
    %465 = vdwg.mxu0
    %466 = vst [vmem:[#allocation2] sm:$0xff] %v460
    %467 = vst [vmem:[#allocation2 + $0x8] sm:$0xff] %v463
    // Predicated region
    $region38: #{gns_forward.17} parent=1 // pred_check
      _
    $region39: #{gns_forward.17} parent=1 // pred_check_branch
      %469 = sbr.rel (0) target = $region41
    $region40: #{gns_forward.17} parent=1 // pred_region
      %s471 = ssub.s32 256, 256
      %472 = vsyncadd [#allocation3], %s471
      %s473 = sshll.u32 [#allocation2], 4
      %s474 = int_to_ptr.vmem [resolvable:$true] %s473
      %479 = dma.vmem_to_hbm [thread:$0]  %s474, 256, %s9, [#allocation3], 128, 128, 8
    $region41: #{gns_forward.17} parent=1 // pred_fallthru
      _
    // Predicated region
    $region42: #{gns_forward.17} parent=1 // pred_check
      _
    $region43: #{gns_forward.17} parent=1 // pred_check_branch
      %481 = sbr.rel (0) target = $region45
    $region44: #{gns_forward.17} parent=1 // pred_region
      %482 = dma.done [#allocation3], 256
    $region45: #{gns_forward.17} parent=1 // pred_fallthru
      _
    %483 = vsyncpa [#allocation3], 1

// kernel: gns_forward.15
$region0: #{gns_forward.15}
  #allocation0 [shape = 'u32[]', space=smem, size = 0x4, offset = 0x4, fixed_abs, tag = 'smem constant byte address 0x4 - core index']
  #allocation1 [shape = 'u32[144,128]{1,0:T(1,128)}', space=vmem, size = 0x12000, scoped, tag = 'internal scratch']
  %s0 = inlined_call_operand.vmem [shape: bf16[32,32], index: 0, kind: input, shape index: {}]
  %s1 = inlined_call_operand.vmem [shape: bf16[32,32], index: 1, kind: input, shape index: {}]
  %s2 = inlined_call_operand.vmem [shape: bf16[32,32], index: 2, kind: input, shape index: {}]
  %s3 = inlined_call_operand.vmem [shape: bf16[32,128], index: 3, kind: input, shape index: {}]
  %s4 = inlined_call_operand.vmem [shape: bf16[32,128], index: 4, kind: input, shape index: {}]
  %s5 = inlined_call_operand.vmem [shape: bf16[32,128], index: 5, kind: input, shape index: {}]
  %s6 = inlined_call_operand.vmem [shape: f32[1,128], index: 6, kind: input, shape index: {}]
  %s7 = inlined_call_operand.vmem [shape: bf16[128,128], index: 7, kind: input, shape index: {}]
  %s8 = inlined_call_operand.vmem [shape: f32[1,128], index: 8, kind: input, shape index: {}]
  %s9 = inlined_call_operand.vmem [shape: bf16[128,128], index: 9, kind: input, shape index: {}]
  %s10 = inlined_call_operand.vmem [shape: f32[1,128], index: 10, kind: input, shape index: {}]
  %s11 = inlined_call_operand.vmem [shape: bf16[128,32], index: 11, kind: input, shape index: {}]
  %s12 = inlined_call_operand.vmem [shape: f32[1,32], index: 12, kind: input, shape index: {}]
  %s13 = inlined_call_operand.vmem [shape: f32[1,32], index: 13, kind: input, shape index: {}]
  %s14 = inlined_call_operand.vmem [shape: f32[1,32], index: 14, kind: input, shape index: {}]
  %s15 = inlined_call_operand.vmem [shape: f32[32,32], index: 15, kind: output, shape index: {0}]
  %s16 = inlined_call_operand.hbm [shape: bf16[32,32], index: 16, kind: output, shape index: {1}]
  %17 = xla_tuple %s15, %s16
  %s18 = sld [smem:[#allocation0]]
  $region101: #{gns_forward.15} parent=0
    _
  %s20 = ssub.s32 1, %s18
  %s21 = scalar_select 0, %s20, %s18
  $region1: #{gns_forward.15} parent=0
    #allocation2 [shape = 'u8[8192]{0}', space=vmem, size = 0x2000, scoped, tag = 'output window, operand 1']
    #allocation3 [shape = 's32[2]{0}', space=sflag, size = 0x8, scoped, tag = 'scoped memory for gns_forward.15']
    %22 = vsyncpa [#allocation3], 0
    %s23 = scalar_lea.sflag [#allocation3], 1
    %24 = vsyncpa %s23, 0
    loop: start=0, step=1, limit=4
    $region2: #{gns_forward.15} parent=1 // loop_pre_header
      _
    $region3: #{gns_forward.15} parent=1 // loop_header
      %s26 = sphi 0, %s30
      %p27 = scmp.ge.s32.totalorder %s26, 4
      %s36 = sphi 0, %s38
      %s39 = sphi 0, %s36
      %s40 = sphi 0, %s39
      %s56 = sphi 0, %s40
      %s62 = sphi 0, %s64
      %s65 = sphi 0, %s62
      %s66 = sphi 0, %s65
      %s82 = sphi 0, %s66
      %s88 = sphi 0, %s90
      %s91 = sphi 0, %s88
      %s92 = sphi 0, %s91
      %s108 = sphi 0, %s92
      %s112 = sphi 0, %s112
      %s114 = sphi 0, %s112
      %s115 = sphi 0, %s114
      %s129 = sphi 0, %s115
      %s133 = sphi 0, %s133
      %s135 = sphi 0, %s133
      %s136 = sphi 0, %s135
      %s150 = sphi 0, %s136
      %s154 = sphi 0, %s154
      %s156 = sphi 0, %s154
      %s157 = sphi 0, %s156
      %s171 = sphi 0, %s157
      %s175 = sphi 0, %s175
      %s177 = sphi 0, %s175
      %s178 = sphi 0, %s177
      %s192 = sphi 0, %s178
      %s196 = sphi 0, %s196
      %s198 = sphi 0, %s196
      %s199 = sphi 0, %s198
      %s213 = sphi 0, %s199
      %s217 = sphi 0, %s217
      %s219 = sphi 0, %s217
      %s220 = sphi 0, %s219
      %s234 = sphi 0, %s220
      %s238 = sphi 0, %s238
      %s240 = sphi 0, %s238
      %s241 = sphi 0, %s240
      %s255 = sphi 0, %s241
      %s259 = sphi 0, %s259
      %s261 = sphi 0, %s259
      %s262 = sphi 0, %s261
      %s276 = sphi 0, %s262
      %s280 = sphi 0, %s280
      %s282 = sphi 0, %s280
      %s283 = sphi 0, %s282
      %s297 = sphi 0, %s283
      %s301 = sphi 0, %s301
      %s303 = sphi 0, %s301
      %s304 = sphi 0, %s303
      %s318 = sphi 0, %s304
      %s322 = sphi 0, %s322
      %s324 = sphi 0, %s322
      %s325 = sphi 0, %s324
      %s339 = sphi 0, %s325
      %s343 = sphi 0, %s343
      %s345 = sphi 0, %s343
      %s346 = sphi 0, %s345
      %s360 = sphi 0, %s346
      %s366 = sphi 0, %s368
      %s369 = sphi 0, %s366
      %s370 = sphi 0, %s369
      %s386 = sphi 0, %s370
      %s392 = sphi 0, %s394
      %s395 = sphi 0, %s392
      %s396 = sphi 0, %s395
      %s412 = sphi 0, %s396
    $region4: #{gns_forward.15} parent=1 // loop_header_branch
      %29 = sbr.rel (%p27) target = $region8
    $region5: #{gns_forward.15} parent=1 // loop_body
      %s31 = ssub.s32 %s26, 1
      %s32 = ssub.s32 %s26, 2
      %s33 = sadd.s32 %s26, 1
      %s34 = ssub.s32 %s26, %s33
      %p35 = scmp.eq.s32.totalorder %s34, 0
      %s37 = sadd.s32 %s36, 1
      %s38 = scalar_select %p35, %s36, %s37
      %p41 = pneg %p35
      %p42 = scmp.eq.s32.totalorder %s26, 1
      %p43 = por %p41, %p42
      %p44 = scmp.ne.s32.totalorder %s36, %s39
      %p45 = scmp.eq.s32.totalorder %s26, 0
      %p46 = por %p44, %p45
      %p47 = scmp.ne.s32.totalorder %s36, %s39
      %p48 = scmp.eq.s32.totalorder %s31, 1
      %p49 = por %p47, %p48
      %p50 = scmp.ne.s32.totalorder %s39, %s40
      %p51 = scmp.eq.s32.totalorder %s31, 0
      %p52 = por %p50, %p51
      %p53 = scmp.ne.s32.totalorder %s39, %s40
      %p54 = scmp.eq.s32.totalorder %s32, 1
      %p55 = por %p53, %p54
      %p57 = scmp.ne.s32.totalorder %s40, %s56
      %p58 = scmp.eq.s32.totalorder %s32, 0
      %p59 = por %p57, %p58
      %s60 = ssub.s32 %s26, %s33
      %p61 = scmp.eq.s32.totalorder %s60, 0
      %s63 = sadd.s32 %s62, 1
      %s64 = scalar_select %p61, %s62, %s63
      %p67 = pneg %p61
      %p68 = scmp.eq.s32.totalorder %s26, 1
      %p69 = por %p67, %p68
      %p70 = scmp.ne.s32.totalorder %s62, %s65
      %p71 = scmp.eq.s32.totalorder %s26, 0
      %p72 = por %p70, %p71
      %p73 = scmp.ne.s32.totalorder %s62, %s65
      %p74 = scmp.eq.s32.totalorder %s31, 1
      %p75 = por %p73, %p74
      %p76 = scmp.ne.s32.totalorder %s65, %s66
      %p77 = scmp.eq.s32.totalorder %s31, 0
      %p78 = por %p76, %p77
      %p79 = scmp.ne.s32.totalorder %s65, %s66
      %p80 = scmp.eq.s32.totalorder %s32, 1
      %p81 = por %p79, %p80
      %p83 = scmp.ne.s32.totalorder %s66, %s82
      %p84 = scmp.eq.s32.totalorder %s32, 0
      %p85 = por %p83, %p84
      %s86 = ssub.s32 %s26, %s33
      %p87 = scmp.eq.s32.totalorder %s86, 0
      %s89 = sadd.s32 %s88, 1
      %s90 = scalar_select %p87, %s88, %s89
      %p93 = pneg %p87
      %p94 = scmp.eq.s32.totalorder %s26, 1
      %p95 = por %p93, %p94
      %p96 = scmp.ne.s32.totalorder %s88, %s91
      %p97 = scmp.eq.s32.totalorder %s26, 0
      %p98 = por %p96, %p97
      %p99 = scmp.ne.s32.totalorder %s88, %s91
      %p100 = scmp.eq.s32.totalorder %s31, 1
      %p101 = por %p99, %p100
      %p102 = scmp.ne.s32.totalorder %s91, %s92
      %p103 = scmp.eq.s32.totalorder %s31, 0
      %p104 = por %p102, %p103
      %p105 = scmp.ne.s32.totalorder %s91, %s92
      %p106 = scmp.eq.s32.totalorder %s32, 1
      %p107 = por %p105, %p106
      %p109 = scmp.ne.s32.totalorder %s92, %s108
      %p110 = scmp.eq.s32.totalorder %s32, 0
      %p111 = por %p109, %p110
      %s113 = sadd.s32 %s112, 1
      %p116 = scmp.eq.s32.totalorder %s26, 1
      %p117 = scmp.ne.s32.totalorder %s112, %s114
      %p118 = scmp.eq.s32.totalorder %s26, 0
      %p119 = por %p117, %p118
      %p120 = scmp.ne.s32.totalorder %s112, %s114
      %p121 = scmp.eq.s32.totalorder %s31, 1
      %p122 = por %p120, %p121
      %p123 = scmp.ne.s32.totalorder %s114, %s115
      %p124 = scmp.eq.s32.totalorder %s31, 0
      %p125 = por %p123, %p124
      %p126 = scmp.ne.s32.totalorder %s114, %s115
      %p127 = scmp.eq.s32.totalorder %s32, 1
      %p128 = por %p126, %p127
      %p130 = scmp.ne.s32.totalorder %s115, %s129
      %p131 = scmp.eq.s32.totalorder %s32, 0
      %p132 = por %p130, %p131
      %s134 = sadd.s32 %s133, 1
      %p137 = scmp.eq.s32.totalorder %s26, 1
      %p138 = scmp.ne.s32.totalorder %s133, %s135
      %p139 = scmp.eq.s32.totalorder %s26, 0
      %p140 = por %p138, %p139
      %p141 = scmp.ne.s32.totalorder %s133, %s135
      %p142 = scmp.eq.s32.totalorder %s31, 1
      %p143 = por %p141, %p142
      %p144 = scmp.ne.s32.totalorder %s135, %s136
      %p145 = scmp.eq.s32.totalorder %s31, 0
      %p146 = por %p144, %p145
      %p147 = scmp.ne.s32.totalorder %s135, %s136
      %p148 = scmp.eq.s32.totalorder %s32, 1
      %p149 = por %p147, %p148
      %p151 = scmp.ne.s32.totalorder %s136, %s150
      %p152 = scmp.eq.s32.totalorder %s32, 0
      %p153 = por %p151, %p152
      %s155 = sadd.s32 %s154, 1
      %p158 = scmp.eq.s32.totalorder %s26, 1
      %p159 = scmp.ne.s32.totalorder %s154, %s156
      %p160 = scmp.eq.s32.totalorder %s26, 0
      %p161 = por %p159, %p160
      %p162 = scmp.ne.s32.totalorder %s154, %s156
      %p163 = scmp.eq.s32.totalorder %s31, 1
      %p164 = por %p162, %p163
      %p165 = scmp.ne.s32.totalorder %s156, %s157
      %p166 = scmp.eq.s32.totalorder %s31, 0
      %p167 = por %p165, %p166
      %p168 = scmp.ne.s32.totalorder %s156, %s157
      %p169 = scmp.eq.s32.totalorder %s32, 1
      %p170 = por %p168, %p169
      %p172 = scmp.ne.s32.totalorder %s157, %s171
      %p173 = scmp.eq.s32.totalorder %s32, 0
      %p174 = por %p172, %p173
      %s176 = sadd.s32 %s175, 1
      %p179 = scmp.eq.s32.totalorder %s26, 1
      %p180 = scmp.ne.s32.totalorder %s175, %s177
      %p181 = scmp.eq.s32.totalorder %s26, 0
      %p182 = por %p180, %p181
      %p183 = scmp.ne.s32.totalorder %s175, %s177
      %p184 = scmp.eq.s32.totalorder %s31, 1
      %p185 = por %p183, %p184
      %p186 = scmp.ne.s32.totalorder %s177, %s178
      %p187 = scmp.eq.s32.totalorder %s31, 0
      %p188 = por %p186, %p187
      %p189 = scmp.ne.s32.totalorder %s177, %s178
      %p190 = scmp.eq.s32.totalorder %s32, 1
      %p191 = por %p189, %p190
      %p193 = scmp.ne.s32.totalorder %s178, %s192
      %p194 = scmp.eq.s32.totalorder %s32, 0
      %p195 = por %p193, %p194
      %s197 = sadd.s32 %s196, 1
      %p200 = scmp.eq.s32.totalorder %s26, 1
      %p201 = scmp.ne.s32.totalorder %s196, %s198
      %p202 = scmp.eq.s32.totalorder %s26, 0
      %p203 = por %p201, %p202
      %p204 = scmp.ne.s32.totalorder %s196, %s198
      %p205 = scmp.eq.s32.totalorder %s31, 1
      %p206 = por %p204, %p205
      %p207 = scmp.ne.s32.totalorder %s198, %s199
      %p208 = scmp.eq.s32.totalorder %s31, 0
      %p209 = por %p207, %p208
      %p210 = scmp.ne.s32.totalorder %s198, %s199
      %p211 = scmp.eq.s32.totalorder %s32, 1
      %p212 = por %p210, %p211
      %p214 = scmp.ne.s32.totalorder %s199, %s213
      %p215 = scmp.eq.s32.totalorder %s32, 0
      %p216 = por %p214, %p215
      %s218 = sadd.s32 %s217, 1
      %p221 = scmp.eq.s32.totalorder %s26, 1
      %p222 = scmp.ne.s32.totalorder %s217, %s219
      %p223 = scmp.eq.s32.totalorder %s26, 0
      %p224 = por %p222, %p223
      %p225 = scmp.ne.s32.totalorder %s217, %s219
      %p226 = scmp.eq.s32.totalorder %s31, 1
      %p227 = por %p225, %p226
      %p228 = scmp.ne.s32.totalorder %s219, %s220
      %p229 = scmp.eq.s32.totalorder %s31, 0
      %p230 = por %p228, %p229
      %p231 = scmp.ne.s32.totalorder %s219, %s220
      %p232 = scmp.eq.s32.totalorder %s32, 1
      %p233 = por %p231, %p232
      %p235 = scmp.ne.s32.totalorder %s220, %s234
      %p236 = scmp.eq.s32.totalorder %s32, 0
      %p237 = por %p235, %p236
      %s239 = sadd.s32 %s238, 1
      %p242 = scmp.eq.s32.totalorder %s26, 1
      %p243 = scmp.ne.s32.totalorder %s238, %s240
      %p244 = scmp.eq.s32.totalorder %s26, 0
      %p245 = por %p243, %p244
      %p246 = scmp.ne.s32.totalorder %s238, %s240
      %p247 = scmp.eq.s32.totalorder %s31, 1
      %p248 = por %p246, %p247
      %p249 = scmp.ne.s32.totalorder %s240, %s241
      %p250 = scmp.eq.s32.totalorder %s31, 0
      %p251 = por %p249, %p250
      %p252 = scmp.ne.s32.totalorder %s240, %s241
      %p253 = scmp.eq.s32.totalorder %s32, 1
      %p254 = por %p252, %p253
      %p256 = scmp.ne.s32.totalorder %s241, %s255
      %p257 = scmp.eq.s32.totalorder %s32, 0
      %p258 = por %p256, %p257
      %s260 = sadd.s32 %s259, 1
      %p263 = scmp.eq.s32.totalorder %s26, 1
      %p264 = scmp.ne.s32.totalorder %s259, %s261
      %p265 = scmp.eq.s32.totalorder %s26, 0
      %p266 = por %p264, %p265
      %p267 = scmp.ne.s32.totalorder %s259, %s261
      %p268 = scmp.eq.s32.totalorder %s31, 1
      %p269 = por %p267, %p268
      %p270 = scmp.ne.s32.totalorder %s261, %s262
      %p271 = scmp.eq.s32.totalorder %s31, 0
      %p272 = por %p270, %p271
      %p273 = scmp.ne.s32.totalorder %s261, %s262
      %p274 = scmp.eq.s32.totalorder %s32, 1
      %p275 = por %p273, %p274
      %p277 = scmp.ne.s32.totalorder %s262, %s276
      %p278 = scmp.eq.s32.totalorder %s32, 0
      %p279 = por %p277, %p278
      %s281 = sadd.s32 %s280, 1
      %p284 = scmp.eq.s32.totalorder %s26, 1
      %p285 = scmp.ne.s32.totalorder %s280, %s282
      %p286 = scmp.eq.s32.totalorder %s26, 0
      %p287 = por %p285, %p286
      %p288 = scmp.ne.s32.totalorder %s280, %s282
      %p289 = scmp.eq.s32.totalorder %s31, 1
      %p290 = por %p288, %p289
      %p291 = scmp.ne.s32.totalorder %s282, %s283
      %p292 = scmp.eq.s32.totalorder %s31, 0
      %p293 = por %p291, %p292
      %p294 = scmp.ne.s32.totalorder %s282, %s283
      %p295 = scmp.eq.s32.totalorder %s32, 1
      %p296 = por %p294, %p295
      %p298 = scmp.ne.s32.totalorder %s283, %s297
      %p299 = scmp.eq.s32.totalorder %s32, 0
      %p300 = por %p298, %p299
      %s302 = sadd.s32 %s301, 1
      %p305 = scmp.eq.s32.totalorder %s26, 1
      %p306 = scmp.ne.s32.totalorder %s301, %s303
      %p307 = scmp.eq.s32.totalorder %s26, 0
      %p308 = por %p306, %p307
      %p309 = scmp.ne.s32.totalorder %s301, %s303
      %p310 = scmp.eq.s32.totalorder %s31, 1
      %p311 = por %p309, %p310
      %p312 = scmp.ne.s32.totalorder %s303, %s304
      %p313 = scmp.eq.s32.totalorder %s31, 0
      %p314 = por %p312, %p313
      %p315 = scmp.ne.s32.totalorder %s303, %s304
      %p316 = scmp.eq.s32.totalorder %s32, 1
      %p317 = por %p315, %p316
      %p319 = scmp.ne.s32.totalorder %s304, %s318
      %p320 = scmp.eq.s32.totalorder %s32, 0
      %p321 = por %p319, %p320
      %s323 = sadd.s32 %s322, 1
      %p326 = scmp.eq.s32.totalorder %s26, 1
      %p327 = scmp.ne.s32.totalorder %s322, %s324
      %p328 = scmp.eq.s32.totalorder %s26, 0
      %p329 = por %p327, %p328
      %p330 = scmp.ne.s32.totalorder %s322, %s324
      %p331 = scmp.eq.s32.totalorder %s31, 1
      %p332 = por %p330, %p331
      %p333 = scmp.ne.s32.totalorder %s324, %s325
      %p334 = scmp.eq.s32.totalorder %s31, 0
      %p335 = por %p333, %p334
      %p336 = scmp.ne.s32.totalorder %s324, %s325
      %p337 = scmp.eq.s32.totalorder %s32, 1
      %p338 = por %p336, %p337
      %p340 = scmp.ne.s32.totalorder %s325, %s339
      %p341 = scmp.eq.s32.totalorder %s32, 0
      %p342 = por %p340, %p341
      %s344 = sadd.s32 %s343, 1
      %p347 = scmp.eq.s32.totalorder %s26, 1
      %p348 = scmp.ne.s32.totalorder %s343, %s345
      %p349 = scmp.eq.s32.totalorder %s26, 0
      %p350 = por %p348, %p349
      %p351 = scmp.ne.s32.totalorder %s343, %s345
      %p352 = scmp.eq.s32.totalorder %s31, 1
      %p353 = por %p351, %p352
      %p354 = scmp.ne.s32.totalorder %s345, %s346
      %p355 = scmp.eq.s32.totalorder %s31, 0
      %p356 = por %p354, %p355
      %p357 = scmp.ne.s32.totalorder %s345, %s346
      %p358 = scmp.eq.s32.totalorder %s32, 1
      %p359 = por %p357, %p358
      %p361 = scmp.ne.s32.totalorder %s346, %s360
      %p362 = scmp.eq.s32.totalorder %s32, 0
      %p363 = por %p361, %p362
      %s364 = ssub.s32 %s26, %s33
      %p365 = scmp.eq.s32.totalorder %s364, 0
      %s367 = sadd.s32 %s366, 1
      %s368 = scalar_select %p365, %s366, %s367
      %p371 = pneg %p365
      %p372 = scmp.eq.s32.totalorder %s26, 1
      %p373 = por %p371, %p372
      %p374 = scmp.ne.s32.totalorder %s366, %s369
      %p375 = scmp.eq.s32.totalorder %s26, 0
      %p376 = por %p374, %p375
      %p377 = scmp.ne.s32.totalorder %s366, %s369
      %p378 = scmp.eq.s32.totalorder %s31, 1
      %p379 = por %p377, %p378
      %p380 = scmp.ne.s32.totalorder %s369, %s370
      %p381 = scmp.eq.s32.totalorder %s31, 0
      %p382 = por %p380, %p381
      %p383 = scmp.ne.s32.totalorder %s369, %s370
      %p384 = scmp.eq.s32.totalorder %s32, 1
      %p385 = por %p383, %p384
      %p387 = scmp.ne.s32.totalorder %s370, %s386
      %p388 = scmp.eq.s32.totalorder %s32, 0
      %p389 = por %p387, %p388
      %s390 = ssub.s32 %s26, %s33
      %p391 = scmp.eq.s32.totalorder %s390, 0
      %s393 = sadd.s32 %s392, 1
      %s394 = scalar_select %p391, %s392, %s393
      %p397 = pneg %p391
      %p398 = scmp.eq.s32.totalorder %s26, 1
      %p399 = por %p397, %p398
      %p400 = scmp.ne.s32.totalorder %s392, %s395
      %p401 = scmp.eq.s32.totalorder %s26, 0
      %p402 = por %p400, %p401
      %p403 = scmp.ne.s32.totalorder %s392, %s395
      %p404 = scmp.eq.s32.totalorder %s31, 1
      %p405 = por %p403, %p404
      %p406 = scmp.ne.s32.totalorder %s395, %s396
      %p407 = scmp.eq.s32.totalorder %s31, 0
      %p408 = por %p406, %p407
      %p409 = scmp.ne.s32.totalorder %s395, %s396
      %p410 = scmp.eq.s32.totalorder %s32, 1
      %p411 = por %p409, %p410
      %p413 = scmp.ne.s32.totalorder %s396, %s412
      %p414 = scmp.eq.s32.totalorder %s32, 0
      %p415 = por %p413, %p414
      %p416 = scmp.le.s32.totalorder 1, %s26
      %p417 = scmp.lt.s32.totalorder %s26, 3
      %p418 = pnand %p416, %p417
      %p419 = pneg %p418
      // Predicated region
      $region9: #{gns_forward.15} parent=5 // pred_check
        _
      $region10: #{gns_forward.15} parent=5 // pred_check_branch
        %421 = sbr.rel (%p418) target = $region12
      $region11: #{gns_forward.15} parent=5 // pred_region
        %s422 = ssub.s32 %s26, 1
        // Predicated region
        $region13: #{gns_forward.15} parent=11 // pred_check
          %p423 = pneg %p125
        $region14: #{gns_forward.15} parent=11 // pred_check_branch
          %425 = sbr.rel (%p423) target = $region16
        $region15: #{gns_forward.15} parent=11 // pred_region
          _
        $region16: #{gns_forward.15} parent=11 // pred_fallthru
          _
        // Predicated region
        $region17: #{gns_forward.15} parent=11 // pred_check
          %p426 = pneg %p146
        $region18: #{gns_forward.15} parent=11 // pred_check_branch
          %428 = sbr.rel (%p426) target = $region20
        $region19: #{gns_forward.15} parent=11 // pred_region
          _
        $region20: #{gns_forward.15} parent=11 // pred_fallthru
          _
        // Predicated region
        $region21: #{gns_forward.15} parent=11 // pred_check
          %p429 = pneg %p167
        $region22: #{gns_forward.15} parent=11 // pred_check_branch
          %431 = sbr.rel (%p429) target = $region24
        $region23: #{gns_forward.15} parent=11 // pred_region
          _
        $region24: #{gns_forward.15} parent=11 // pred_fallthru
          _
        // Predicated region
        $region25: #{gns_forward.15} parent=11 // pred_check
          %p432 = pneg %p188
        $region26: #{gns_forward.15} parent=11 // pred_check_branch
          %434 = sbr.rel (%p432) target = $region28
        $region27: #{gns_forward.15} parent=11 // pred_region
          _
        $region28: #{gns_forward.15} parent=11 // pred_fallthru
          _
        // Predicated region
        $region29: #{gns_forward.15} parent=11 // pred_check
          %p435 = pneg %p209
        $region30: #{gns_forward.15} parent=11 // pred_check_branch
          %437 = sbr.rel (%p435) target = $region32
        $region31: #{gns_forward.15} parent=11 // pred_region
          _
        $region32: #{gns_forward.15} parent=11 // pred_fallthru
          _
        // Predicated region
        $region33: #{gns_forward.15} parent=11 // pred_check
          %p438 = pneg %p230
        $region34: #{gns_forward.15} parent=11 // pred_check_branch
          %440 = sbr.rel (%p438) target = $region36
        $region35: #{gns_forward.15} parent=11 // pred_region
          _
        $region36: #{gns_forward.15} parent=11 // pred_fallthru
          _
        // Predicated region
        $region37: #{gns_forward.15} parent=11 // pred_check
          %p441 = pneg %p251
        $region38: #{gns_forward.15} parent=11 // pred_check_branch
          %443 = sbr.rel (%p441) target = $region40
        $region39: #{gns_forward.15} parent=11 // pred_region
          _
        $region40: #{gns_forward.15} parent=11 // pred_fallthru
          _
        // Predicated region
        $region41: #{gns_forward.15} parent=11 // pred_check
          %p444 = pneg %p272
        $region42: #{gns_forward.15} parent=11 // pred_check_branch
          %446 = sbr.rel (%p444) target = $region44
        $region43: #{gns_forward.15} parent=11 // pred_region
          _
        $region44: #{gns_forward.15} parent=11 // pred_fallthru
          _
        // Predicated region
        $region45: #{gns_forward.15} parent=11 // pred_check
          %p447 = pneg %p293
        $region46: #{gns_forward.15} parent=11 // pred_check_branch
          %449 = sbr.rel (%p447) target = $region48
        $region47: #{gns_forward.15} parent=11 // pred_region
          _
        $region48: #{gns_forward.15} parent=11 // pred_fallthru
          _
        // Predicated region
        $region49: #{gns_forward.15} parent=11 // pred_check
          %p450 = pneg %p314
        $region50: #{gns_forward.15} parent=11 // pred_check_branch
          %452 = sbr.rel (%p450) target = $region52
        $region51: #{gns_forward.15} parent=11 // pred_region
          _
        $region52: #{gns_forward.15} parent=11 // pred_fallthru
          _
        // Predicated region
        $region53: #{gns_forward.15} parent=11 // pred_check
          %p453 = pneg %p335
        $region54: #{gns_forward.15} parent=11 // pred_check_branch
          %455 = sbr.rel (%p453) target = $region56
        $region55: #{gns_forward.15} parent=11 // pred_region
          _
        $region56: #{gns_forward.15} parent=11 // pred_fallthru
          _
        // Predicated region
        $region57: #{gns_forward.15} parent=11 // pred_check
          %p456 = pneg %p356
        $region58: #{gns_forward.15} parent=11 // pred_check_branch
          %458 = sbr.rel (%p456) target = $region60
        $region59: #{gns_forward.15} parent=11 // pred_region
          _
        $region60: #{gns_forward.15} parent=11 // pred_fallthru
          _
      $region12: #{gns_forward.15} parent=5 // pred_fallthru
        _
      %p459 = scmp.lt.s32.totalorder %s26, 2
      // Predicated region
      $region61: #{gns_forward.15} parent=5 // pred_check
        %p460 = pneg %p459
      $region62: #{gns_forward.15} parent=5 // pred_check_branch
        %462 = sbr.rel (%p460) target = $region64
      $region63: #{gns_forward.15} parent=5 // pred_region
        // Predicated region
        $region65: #{gns_forward.15} parent=63 // pred_check
          %p463 = pneg %p46
        $region66: #{gns_forward.15} parent=63 // pred_check_branch
          %465 = sbr.rel (%p463) target = $region68
        $region67: #{gns_forward.15} parent=63 // pred_region
          %s466 = smul.u32 2, %s26
          %p467 = scmp.lt.s32.totalorder %s466, 3
          %s468 = scalar_select %p467, %s466, 3
          %s469 = smul.addr %s468, 4
          %s470 = scalar_lea.vmem %s0, %s469
          %s471 = smul.u32 2, %s26
        $region68: #{gns_forward.15} parent=63 // pred_fallthru
          _
        // Predicated region
        $region69: #{gns_forward.15} parent=63 // pred_check
          %p472 = pneg %p72
        $region70: #{gns_forward.15} parent=63 // pred_check_branch
          %474 = sbr.rel (%p472) target = $region72
        $region71: #{gns_forward.15} parent=63 // pred_region
          %s475 = smul.u32 2, %s26
          %p476 = scmp.lt.s32.totalorder %s475, 3
          %s477 = scalar_select %p476, %s475, 3
          %s478 = smul.addr %s477, 4
          %s479 = scalar_lea.vmem %s1, %s478
          %s480 = smul.u32 2, %s26
        $region72: #{gns_forward.15} parent=63 // pred_fallthru
          _
        // Predicated region
        $region73: #{gns_forward.15} parent=63 // pred_check
          %p481 = pneg %p98
        $region74: #{gns_forward.15} parent=63 // pred_check_branch
          %483 = sbr.rel (%p481) target = $region76
        $region75: #{gns_forward.15} parent=63 // pred_region
          %s484 = smul.u32 2, %s26
          %p485 = scmp.lt.s32.totalorder %s484, 3
          %s486 = scalar_select %p485, %s484, 3
          %s487 = smul.addr %s486, 4
          %s488 = scalar_lea.vmem %s2, %s487
          %s489 = smul.u32 2, %s26
        $region76: #{gns_forward.15} parent=63 // pred_fallthru
          _
      $region64: #{gns_forward.15} parent=5 // pred_fallthru
        _
      %p490 = scmp.le.s32.totalorder 1, %s26
      %p491 = scmp.lt.s32.totalorder %s26, 3
      %p492 = pnand %p490, %p491
      %p493 = pneg %p492
      // Predicated region
      $region77: #{gns_forward.15} parent=5 // pred_check
        _
      $region78: #{gns_forward.15} parent=5 // pred_check_branch
        %495 = sbr.rel (%p492) target = $region80
      $region79: #{gns_forward.15} parent=5 // pred_region
        %s496 = ssub.s32 %s26, 1
        %s497 = smul.u32 2, %s31
        %p498 = scmp.lt.s32.totalorder %s497, 3
        %s499 = scalar_select %p498, %s497, 3
        %s500 = smul.addr %s499, 4
        %s501 = scalar_lea.vmem %s0, %s500
        %p502 = pneg %p52
        %p503 = pneg %p49
        %s504 = smul.u32 2, %s31
        %p505 = scmp.lt.s32.totalorder %s504, 3
        %s506 = scalar_select %p505, %s504, 3
        %s507 = smul.addr %s506, 4
        %s508 = scalar_lea.vmem %s1, %s507
        %p509 = pneg %p78
        %p510 = pneg %p75
        %s511 = smul.u32 2, %s31
        %p512 = scmp.lt.s32.totalorder %s511, 3
        %s513 = scalar_select %p512, %s511, 3
        %s514 = smul.addr %s513, 4
        %s515 = scalar_lea.vmem %s2, %s514
        %p516 = pneg %p104
        %p517 = pneg %p101
        %p518 = pneg %p125
        %p519 = pneg %p122
        %p520 = pneg %p146
        %p521 = pneg %p143
        %p522 = pneg %p167
        %p523 = pneg %p164
        %p524 = pneg %p188
        %p525 = pneg %p185
        %p526 = pneg %p209
        %p527 = pneg %p206
        %p528 = pneg %p230
        %p529 = pneg %p227
        %p530 = pneg %p251
        %p531 = pneg %p248
        %p532 = pneg %p272
        %p533 = pneg %p269
        %p534 = pneg %p293
        %p535 = pneg %p290
        %p536 = pneg %p314
        %p537 = pneg %p311
        %p538 = pneg %p335
        %p539 = pneg %p332
        %p540 = pneg %p356
        %p541 = pneg %p353
        %p542 = pneg %p382
        %p543 = pneg %p379
        %s544 = smul.u32 2, %s31
        %p545 = scmp.lt.s32.totalorder %s544, 3
        %s546 = scalar_select %p545, %s544, 3
        %s547 = smul.addr %s546, 8
        %s548 = scalar_lea.vmem %s15, %s547
        %p549 = pneg %p408
        %p550 = pneg %p405
        %s551 = sand.u32 %s395, 1
        %s552 = scalar_lea.sflag [#allocation3], %s551
        %s553 = sand.u32 %s395, 1
        %s554 = smul.addr %s553, 8
        %s555 = scalar_lea.vmem [#allocation2], %s554
        %s556 = smul.u32 2, %s31
        %p557 = scmp.lt.s32.totalorder %s556, 3
        %s558 = scalar_select %p557, %s556, 3
        %s559 = smul.addr %s558, 4
        %s560 = scalar_lea.vmem %s0, %s559
        %s561 = smul.u32 2, %s31
        %s562 = smul.u32 2, %s31
        %p563 = scmp.lt.s32.totalorder %s562, 3
        %s564 = scalar_select %p563, %s562, 3
        %s565 = smul.addr %s564, 4
        %s566 = scalar_lea.vmem %s1, %s565
        %s567 = smul.u32 2, %s31
        %s568 = smul.u32 2, %s31
        %p569 = scmp.lt.s32.totalorder %s568, 3
        %s570 = scalar_select %p569, %s568, 3
        %s571 = smul.addr %s570, 4
        %s572 = scalar_lea.vmem %s2, %s571
        %s573 = smul.u32 2, %s31
        %s574 = smul.u32 2, %s31
        %p575 = scmp.lt.s32.totalorder %s574, 3
        %s576 = scalar_select %p575, %s574, 3
        %s577 = smul.addr %s576, 8
        %s578 = scalar_lea.vmem %s15, %s577
        %s579 = smul.u32 2, %s31
        %s580 = smul.u32 2, %s31
        %v582 = vld [vmem:[%s560] sm:$0xf]
        %v583 = vld [vmem:[%s560 + $0x4] sm:$0xf]
        %v584 = vld [vmem:[%s3] sm:$0xf]
        %v585 = vld [vmem:[%s3 + $0x4] sm:$0xf]
        %v586 = vld [vmem:[%s3 + $0x8] sm:$0xf]
        %v587 = vld [vmem:[%s3 + $0xc] sm:$0xf]
        %v588 = vld [vmem:[%s566] sm:$0xf]
        %v589 = vld [vmem:[%s566 + $0x4] sm:$0xf]
        %v590 = vld [vmem:[%s4] sm:$0xf]
        %v591 = vld [vmem:[%s4 + $0x4] sm:$0xf]
        %v592 = vld [vmem:[%s4 + $0x8] sm:$0xf]
        %v593 = vld [vmem:[%s4 + $0xc] sm:$0xf]
        %v596 = vunpack.c.l.b16 %v588
        %v597 = vunpack.c.l.b16 %v589
        %v598 = vpack.c.b16 %v597, %v596
        %v603 = vunpack.c.l.b16 %v590
        %v604 = vunpack.c.l.b16 %v591
        %v605 = vunpack.c.l.b16 %v592
        %v606 = vunpack.c.l.b16 %v593
        %v607 = vpack.c.b16 %v604, %v603
        %v608 = vpack.c.b16 %v606, %v605
        %vm611 = vcmask 261120
        %v613 = vsel %vm611, %v598, 0
        %615 = vmatprep.subr.bf16.mxu0 0
        %616 = vmatpush1.bf16.msra.mxu0 %v607
        %617 = vmatprep.subr.bf16.mxu0 0
        %618 = vmatpush1.bf16.msra.mxu0 %v608
        %619 = vmatprep.subr.bf16.mxu0 0
        %620 = vmatpush1.bf16.msra.mxu0 0
        %621 = vmatprep.subr.bf16.mxu0 0
        %622 = vmatpush1.bf16.msra.mxu0 0
        %623 = vmatprep.subr.bf16.mxu0 0
        %624 = vmatpush1.bf16.msra.mxu0 0
        %625 = vmatprep.subr.bf16.mxu0 0
        %626 = vmatpush1.bf16.msra.mxu0 0
        %627 = vmatprep.subr.bf16.mxu0 0
        %628 = vmatpush1.bf16.msra.mxu0 0
        %629 = vmatprep.subr.bf16.mxu0 0
        %630 = vmatpush1.bf16.msra.mxu0 0
        %631 = vmatprep.subr.bf16.mxu0 0
        %632 = vmatpush1.bf16.msra.mxu0 0
        %633 = vmatprep.subr.bf16.mxu0 0
        %634 = vmatpush1.bf16.msra.mxu0 0
        %635 = vmatprep.subr.bf16.mxu0 0
        %636 = vmatpush1.bf16.msra.mxu0 0
        %637 = vmatprep.subr.bf16.mxu0 0
        %638 = vmatpush1.bf16.msra.mxu0 0
        %639 = vmatprep.subr.bf16.mxu0 0
        %640 = vmatpush1.bf16.msra.mxu0 0
        %641 = vmatprep.subr.bf16.mxu0 0
        %642 = vmatpush1.bf16.msra.mxu0 0
        %643 = vmatprep.subr.bf16.mxu0 0
        %644 = vmatpush1.bf16.msra.mxu0 0
        %645 = vmatprep.subr.bf16.mxu0 0
        %646 = vmatpush1.bf16.msra.mxu0 0
        %647 = vmatprep.mubr.bf16.mxu0 0
        %648 = vmatmul.mubr.bf16.gmra.mrb[0].mxu0 %v613
        %v649 = vpop.f32.mrb[0].mxu0
        %v650 = vadd.f32 0.0, %v649
        %v651 = vpop.f32.mrb[0].mxu0
        %v652 = vpop.f32.mrb[0].mxu0
        %v653 = vadd.f32 0.0, %v652
        %v654 = vpop.f32.mrb[0].mxu0
        %655 = vdwg.mxu0
        %v658 = vunpack.c.l.b16 %v582
        %v659 = vunpack.c.l.b16 %v583
        %v660 = vpack.c.b16 %v659, %v658
        %v665 = vunpack.c.l.b16 %v584
        %v666 = vunpack.c.l.b16 %v585
        %v667 = vunpack.c.l.b16 %v586
        %v668 = vunpack.c.l.b16 %v587
        %v669 = vpack.c.b16 %v666, %v665
        %v670 = vpack.c.b16 %v668, %v667
        %v674 = vsel %vm611, %v660, 0
        %676 = vmatprep.subr.bf16.mxu0 0
        %677 = vmatpush1.bf16.msra.mxu0 %v669
        %678 = vmatprep.subr.bf16.mxu0 0
        %679 = vmatpush1.bf16.msra.mxu0 %v670
        %680 = vmatprep.subr.bf16.mxu0 0
        %681 = vmatpush1.bf16.msra.mxu0 0
        %682 = vmatprep.subr.bf16.mxu0 0
        %683 = vmatpush1.bf16.msra.mxu0 0
        %684 = vmatprep.subr.bf16.mxu0 0
        %685 = vmatpush1.bf16.msra.mxu0 0
        %686 = vmatprep.subr.bf16.mxu0 0
        %687 = vmatpush1.bf16.msra.mxu0 0
        %688 = vmatprep.subr.bf16.mxu0 0
        %689 = vmatpush1.bf16.msra.mxu0 0
        %690 = vmatprep.subr.bf16.mxu0 0
        %691 = vmatpush1.bf16.msra.mxu0 0
        %692 = vmatprep.subr.bf16.mxu0 0
        %693 = vmatpush1.bf16.msra.mxu0 0
        %694 = vmatprep.subr.bf16.mxu0 0
        %695 = vmatpush1.bf16.msra.mxu0 0
        %696 = vmatprep.subr.bf16.mxu0 0
        %697 = vmatpush1.bf16.msra.mxu0 0
        %698 = vmatprep.subr.bf16.mxu0 0
        %699 = vmatpush1.bf16.msra.mxu0 0
        %700 = vmatprep.subr.bf16.mxu0 0
        %701 = vmatpush1.bf16.msra.mxu0 0
        %702 = vmatprep.subr.bf16.mxu0 0
        %703 = vmatpush1.bf16.msra.mxu0 0
        %704 = vmatprep.subr.bf16.mxu0 0
        %705 = vmatpush1.bf16.msra.mxu0 0
        %706 = vmatprep.subr.bf16.mxu0 0
        %707 = vmatpush1.bf16.msra.mxu0 0
        %708 = vmatprep.mubr.bf16.mxu0 0
        %709 = vmatmul.mubr.bf16.gmra.mrb[0].mxu0 %v674
        %v710 = vpop.f32.mrb[0].mxu0
        %v711 = vadd.f32 %v650, %v710
        %v712 = vpop.f32.mrb[0].mxu0
        %v713 = vpop.f32.mrb[0].mxu0
        %v714 = vadd.f32 %v653, %v713
        %v715 = vpop.f32.mrb[0].mxu0
        %716 = vdwg.mxu0
        %v717 = vld [vmem:[%s572] sm:$0xf]
        %v718 = vld [vmem:[%s572 + $0x4] sm:$0xf]
        %v719 = vld [vmem:[%s5] sm:$0xf]
        %v720 = vld [vmem:[%s5 + $0x4] sm:$0xf]
        %v721 = vld [vmem:[%s5 + $0x8] sm:$0xf]
        %v722 = vld [vmem:[%s5 + $0xc] sm:$0xf]
        %v725 = vunpack.c.l.b16 %v717
        %v726 = vunpack.c.l.b16 %v718
        %v727 = vpack.c.b16 %v726, %v725
        %v732 = vunpack.c.l.b16 %v719
        %v733 = vunpack.c.l.b16 %v720
        %v734 = vunpack.c.l.b16 %v721
        %v735 = vunpack.c.l.b16 %v722
        %v736 = vpack.c.b16 %v733, %v732
        %v737 = vpack.c.b16 %v735, %v734
        %v741 = vsel %vm611, %v727, 0
        %743 = vmatprep.subr.bf16.mxu0 0
        %744 = vmatpush1.bf16.msra.mxu0 %v736
        %745 = vmatprep.subr.bf16.mxu0 0
        %746 = vmatpush1.bf16.msra.mxu0 %v737
        %747 = vmatprep.subr.bf16.mxu0 0
        %748 = vmatpush1.bf16.msra.mxu0 0
        %749 = vmatprep.subr.bf16.mxu0 0
        %750 = vmatpush1.bf16.msra.mxu0 0
        %751 = vmatprep.subr.bf16.mxu0 0
        %752 = vmatpush1.bf16.msra.mxu0 0
        %753 = vmatprep.subr.bf16.mxu0 0
        %754 = vmatpush1.bf16.msra.mxu0 0
        %755 = vmatprep.subr.bf16.mxu0 0
        %756 = vmatpush1.bf16.msra.mxu0 0
        %757 = vmatprep.subr.bf16.mxu0 0
        %758 = vmatpush1.bf16.msra.mxu0 0
        %759 = vmatprep.subr.bf16.mxu0 0
        %760 = vmatpush1.bf16.msra.mxu0 0
        %761 = vmatprep.subr.bf16.mxu0 0
        %762 = vmatpush1.bf16.msra.mxu0 0
        %763 = vmatprep.subr.bf16.mxu0 0
        %764 = vmatpush1.bf16.msra.mxu0 0
        %765 = vmatprep.subr.bf16.mxu0 0
        %766 = vmatpush1.bf16.msra.mxu0 0
        %767 = vmatprep.subr.bf16.mxu0 0
        %768 = vmatpush1.bf16.msra.mxu0 0
        %769 = vmatprep.subr.bf16.mxu0 0
        %770 = vmatpush1.bf16.msra.mxu0 0
        %771 = vmatprep.subr.bf16.mxu0 0
        %772 = vmatpush1.bf16.msra.mxu0 0
        %773 = vmatprep.subr.bf16.mxu0 0
        %774 = vmatpush1.bf16.msra.mxu0 0
        %775 = vmatprep.mubr.bf16.mxu0 0
        %776 = vmatmul.mubr.bf16.gmra.mrb[0].mxu0 %v741
        %v777 = vpop.f32.mrb[0].mxu0
        %v778 = vadd.f32 0.0, %v777
        %v779 = vpop.f32.mrb[0].mxu0
        %v780 = vpop.f32.mrb[0].mxu0
        %v781 = vadd.f32 0.0, %v780
        %v782 = vpop.f32.mrb[0].mxu0
        %783 = vdwg.mxu0
        %v784 = vadd.f32 %v711, %v778
        %v785 = vadd.f32 %v714, %v781
        %v786 = vld [vmem:[%s6] sm:$0x1]
        %v788 = vlaneseq
        %v789 = vshrl.u32 %v788, 7
        %v790 = vsub.s32 0, %v789
        %v791 = vrot.slane %v786, %v790
        %v793 = vadd.f32 %v784, %v791
        %v794 = vadd.f32 %v785, %v791
        %vm795 = vcmp.gt.f32.partialorder %v793, 0.0
        %vm796 = vcmp.gt.f32.partialorder %v794, 0.0
        %v797 = vmul.f32 %v793, 0.01
        %v798 = vmul.f32 %v794, 0.01
        %v799 = vsel %vm795, %v793, %v797
        %v800 = vsel %vm796, %v794, %v798
        %v801 = vpack.c.bf16 %v800, %v799
        %v802 = vld [vmem:[%s7] sm:$0xf]
        %v803 = vld [vmem:[%s7 + $0x4] sm:$0xf]
        %v804 = vld [vmem:[%s7 + $0x8] sm:$0xf]
        %v805 = vld [vmem:[%s7 + $0xc] sm:$0xf]
        %v806 = vld [vmem:[%s7 + $0x10] sm:$0xf]
        %v807 = vld [vmem:[%s7 + $0x14] sm:$0xf]
        %v808 = vld [vmem:[%s7 + $0x18] sm:$0xf]
        %v809 = vld [vmem:[%s7 + $0x1c] sm:$0xf]
        %v810 = vld [vmem:[%s7 + $0x20] sm:$0xf]
        %v811 = vld [vmem:[%s7 + $0x24] sm:$0xf]
        %v812 = vld [vmem:[%s7 + $0x28] sm:$0xf]
        %v813 = vld [vmem:[%s7 + $0x2c] sm:$0xf]
        %v814 = vld [vmem:[%s7 + $0x30] sm:$0xf]
        %v815 = vld [vmem:[%s7 + $0x34] sm:$0xf]
        %v816 = vld [vmem:[%s7 + $0x38] sm:$0xf]
        %v817 = vld [vmem:[%s7 + $0x3c] sm:$0xf]
        %v818 = vld [vmem:[%s8] sm:$0x1]
        %v820 = vlaneseq
        %v821 = vshrl.u32 %v820, 7
        %v822 = vsub.s32 0, %v821
        %v823 = vrot.slane %v818, %v822
        %v841 = vunpack.c.l.b16 %v802
        %v842 = vunpack.c.l.b16 %v803
        %v843 = vunpack.c.l.b16 %v804
        %v844 = vunpack.c.l.b16 %v805
        %v845 = vunpack.c.l.b16 %v806
        %v846 = vunpack.c.l.b16 %v807
        %v847 = vunpack.c.l.b16 %v808
        %v848 = vunpack.c.l.b16 %v809
        %v849 = vunpack.c.l.b16 %v810
        %v850 = vunpack.c.l.b16 %v811
        %v851 = vunpack.c.l.b16 %v812
        %v852 = vunpack.c.l.b16 %v813
        %v853 = vunpack.c.l.b16 %v814
        %v854 = vunpack.c.l.b16 %v815
        %v855 = vunpack.c.l.b16 %v816
        %v856 = vunpack.c.l.b16 %v817
        %v857 = vpack.c.b16 %v842, %v841
        %v858 = vpack.c.b16 %v844, %v843
        %v859 = vpack.c.b16 %v846, %v845
        %v860 = vpack.c.b16 %v848, %v847
        %v861 = vpack.c.b16 %v850, %v849
        %v862 = vpack.c.b16 %v852, %v851
        %v863 = vpack.c.b16 %v854, %v853
        %v864 = vpack.c.b16 %v856, %v855
        %873 = vmatprep.subr.bf16.mxu0 0
        %874 = vmatpush1.bf16.msra.mxu0 %v857
        %875 = vmatprep.subr.bf16.mxu0 0
        %876 = vmatpush1.bf16.msra.mxu0 %v858
        %877 = vmatprep.subr.bf16.mxu0 0
        %878 = vmatpush1.bf16.msra.mxu0 %v859
        %879 = vmatprep.subr.bf16.mxu0 0
        %880 = vmatpush1.bf16.msra.mxu0 %v860
        %881 = vmatprep.subr.bf16.mxu0 0
        %882 = vmatpush1.bf16.msra.mxu0 %v861
        %883 = vmatprep.subr.bf16.mxu0 0
        %884 = vmatpush1.bf16.msra.mxu0 %v862
        %885 = vmatprep.subr.bf16.mxu0 0
        %886 = vmatpush1.bf16.msra.mxu0 %v863
        %887 = vmatprep.subr.bf16.mxu0 0
        %888 = vmatpush1.bf16.msra.mxu0 %v864
        %889 = vmatprep.subr.bf16.mxu0 0
        %890 = vmatpush1.bf16.msra.mxu0 0
        %891 = vmatprep.subr.bf16.mxu0 0
        %892 = vmatpush1.bf16.msra.mxu0 0
        %893 = vmatprep.subr.bf16.mxu0 0
        %894 = vmatpush1.bf16.msra.mxu0 0
        %895 = vmatprep.subr.bf16.mxu0 0
        %896 = vmatpush1.bf16.msra.mxu0 0
        %897 = vmatprep.subr.bf16.mxu0 0
        %898 = vmatpush1.bf16.msra.mxu0 0
        %899 = vmatprep.subr.bf16.mxu0 0
        %900 = vmatpush1.bf16.msra.mxu0 0
        %901 = vmatprep.subr.bf16.mxu0 0
        %902 = vmatpush1.bf16.msra.mxu0 0
        %903 = vmatprep.subr.bf16.mxu0 0
        %904 = vmatpush1.bf16.msra.mxu0 0
        %905 = vmatprep.mubr.bf16.mxu0 0
        %906 = vmatmul.mubr.bf16.gmra.mrb[0].mxu0 %v801
        %v907 = vpop.f32.mrb[0].mxu0
        %v908 = vadd.f32 %v823, %v907
        %v909 = vpop.f32.mrb[0].mxu0
        %v910 = vpop.f32.mrb[0].mxu0
        %v911 = vadd.f32 %v823, %v910
        %v912 = vpop.f32.mrb[0].mxu0
        %913 = vdwg.mxu0
        %vm914 = vcmp.gt.f32.partialorder %v908, 0.0
        %vm915 = vcmp.gt.f32.partialorder %v911, 0.0
        %v916 = vmul.f32 %v908, 0.01
        %v917 = vmul.f32 %v911, 0.01
        %v918 = vsel %vm914, %v908, %v916
        %v919 = vsel %vm915, %v911, %v917
        %v920 = vpack.c.bf16 %v919, %v918
        %v921 = vld [vmem:[%s9] sm:$0xf]
        %v922 = vld [vmem:[%s9 + $0x4] sm:$0xf]
        %v923 = vld [vmem:[%s9 + $0x8] sm:$0xf]
        %v924 = vld [vmem:[%s9 + $0xc] sm:$0xf]
        %v925 = vld [vmem:[%s9 + $0x10] sm:$0xf]
        %v926 = vld [vmem:[%s9 + $0x14] sm:$0xf]
        %v927 = vld [vmem:[%s9 + $0x18] sm:$0xf]
        %v928 = vld [vmem:[%s9 + $0x1c] sm:$0xf]
        %v929 = vld [vmem:[%s9 + $0x20] sm:$0xf]
        %v930 = vld [vmem:[%s9 + $0x24] sm:$0xf]
        %v931 = vld [vmem:[%s9 + $0x28] sm:$0xf]
        %v932 = vld [vmem:[%s9 + $0x2c] sm:$0xf]
        %v933 = vld [vmem:[%s9 + $0x30] sm:$0xf]
        %v934 = vld [vmem:[%s9 + $0x34] sm:$0xf]
        %v935 = vld [vmem:[%s9 + $0x38] sm:$0xf]
        %v936 = vld [vmem:[%s9 + $0x3c] sm:$0xf]
        %v937 = vld [vmem:[%s10] sm:$0x1]
        %v939 = vlaneseq
        %v940 = vshrl.u32 %v939, 7
        %v941 = vsub.s32 0, %v940
        %v942 = vrot.slane %v937, %v941
        %v960 = vunpack.c.l.b16 %v921
        %v961 = vunpack.c.l.b16 %v922
        %v962 = vunpack.c.l.b16 %v923
        %v963 = vunpack.c.l.b16 %v924
        %v964 = vunpack.c.l.b16 %v925
        %v965 = vunpack.c.l.b16 %v926
        %v966 = vunpack.c.l.b16 %v927
        %v967 = vunpack.c.l.b16 %v928
        %v968 = vunpack.c.l.b16 %v929
        %v969 = vunpack.c.l.b16 %v930
        %v970 = vunpack.c.l.b16 %v931
        %v971 = vunpack.c.l.b16 %v932
        %v972 = vunpack.c.l.b16 %v933
        %v973 = vunpack.c.l.b16 %v934
        %v974 = vunpack.c.l.b16 %v935
        %v975 = vunpack.c.l.b16 %v936
        %v976 = vpack.c.b16 %v961, %v960
        %v977 = vpack.c.b16 %v963, %v962
        %v978 = vpack.c.b16 %v965, %v964
        %v979 = vpack.c.b16 %v967, %v966
        %v980 = vpack.c.b16 %v969, %v968
        %v981 = vpack.c.b16 %v971, %v970
        %v982 = vpack.c.b16 %v973, %v972
        %v983 = vpack.c.b16 %v975, %v974
        %992 = vmatprep.subr.bf16.mxu0 0
        %993 = vmatpush1.bf16.msra.mxu0 %v976
        %994 = vmatprep.subr.bf16.mxu0 0
        %995 = vmatpush1.bf16.msra.mxu0 %v977
        %996 = vmatprep.subr.bf16.mxu0 0
        %997 = vmatpush1.bf16.msra.mxu0 %v978
        %998 = vmatprep.subr.bf16.mxu0 0
        %999 = vmatpush1.bf16.msra.mxu0 %v979
        %1000 = vmatprep.subr.bf16.mxu0 0
        %1001 = vmatpush1.bf16.msra.mxu0 %v980
        %1002 = vmatprep.subr.bf16.mxu0 0
        %1003 = vmatpush1.bf16.msra.mxu0 %v981
        %1004 = vmatprep.subr.bf16.mxu0 0
        %1005 = vmatpush1.bf16.msra.mxu0 %v982
        %1006 = vmatprep.subr.bf16.mxu0 0
        %1007 = vmatpush1.bf16.msra.mxu0 %v983
        %1008 = vmatprep.subr.bf16.mxu0 0
        %1009 = vmatpush1.bf16.msra.mxu0 0
        %1010 = vmatprep.subr.bf16.mxu0 0
        %1011 = vmatpush1.bf16.msra.mxu0 0
        %1012 = vmatprep.subr.bf16.mxu0 0
        %1013 = vmatpush1.bf16.msra.mxu0 0
        %1014 = vmatprep.subr.bf16.mxu0 0
        %1015 = vmatpush1.bf16.msra.mxu0 0
        %1016 = vmatprep.subr.bf16.mxu0 0
        %1017 = vmatpush1.bf16.msra.mxu0 0
        %1018 = vmatprep.subr.bf16.mxu0 0
        %1019 = vmatpush1.bf16.msra.mxu0 0
        %1020 = vmatprep.subr.bf16.mxu0 0
        %1021 = vmatpush1.bf16.msra.mxu0 0
        %1022 = vmatprep.subr.bf16.mxu0 0
        %1023 = vmatpush1.bf16.msra.mxu0 0
        %1024 = vmatprep.mubr.bf16.mxu0 0
        %1025 = vmatmul.mubr.bf16.gmra.mrb[0].mxu0 %v920
        %v1026 = vpop.f32.mrb[0].mxu0
        %v1027 = vadd.f32 %v942, %v1026
        %v1028 = vpop.f32.mrb[0].mxu0
        %v1029 = vpop.f32.mrb[0].mxu0
        %v1030 = vadd.f32 %v942, %v1029
        %v1031 = vpop.f32.mrb[0].mxu0
        %1032 = vdwg.mxu0
        %vm1033 = vcmp.gt.f32.partialorder %v1027, 0.0
        %vm1034 = vcmp.gt.f32.partialorder %v1030, 0.0
        %v1035 = vmul.f32 %v1027, 0.01
        %v1036 = vmul.f32 %v1030, 0.01
        %v1037 = vsel %vm1033, %v1027, %v1035
        %v1038 = vsel %vm1034, %v1030, %v1036
        %v1039 = vpack.c.bf16 %v1038, %v1037
        %v1040 = vld [vmem:[%s11] sm:$0xf]
        %v1041 = vld [vmem:[%s11 + $0x4] sm:$0xf]
        %v1042 = vld [vmem:[%s11 + $0x8] sm:$0xf]
        %v1043 = vld [vmem:[%s11 + $0xc] sm:$0xf]
        %v1044 = vld [vmem:[%s11 + $0x10] sm:$0xf]
        %v1045 = vld [vmem:[%s11 + $0x14] sm:$0xf]
        %v1046 = vld [vmem:[%s11 + $0x18] sm:$0xf]
        %v1047 = vld [vmem:[%s11 + $0x1c] sm:$0xf]
        %v1048 = vld [vmem:[%s11 + $0x20] sm:$0xf]
        %v1049 = vld [vmem:[%s11 + $0x24] sm:$0xf]
        %v1050 = vld [vmem:[%s11 + $0x28] sm:$0xf]
        %v1051 = vld [vmem:[%s11 + $0x2c] sm:$0xf]
        %v1052 = vld [vmem:[%s11 + $0x30] sm:$0xf]
        %v1053 = vld [vmem:[%s11 + $0x34] sm:$0xf]
        %v1054 = vld [vmem:[%s11 + $0x38] sm:$0xf]
        %v1055 = vld [vmem:[%s11 + $0x3c] sm:$0xf]
        %v1056 = vld [vmem:[%s12] sm:$0x1]
        %v1058 = vlaneseq
        %v1059 = vshrl.u32 %v1058, 7
        %v1060 = vsub.s32 0, %v1059
        %v1061 = vrot.slane %v1056, %v1060
        %v1079 = vunpack.c.l.b16 %v1040
        %v1080 = vunpack.c.l.b16 %v1041
        %v1081 = vunpack.c.l.b16 %v1042
        %v1082 = vunpack.c.l.b16 %v1043
        %v1083 = vunpack.c.l.b16 %v1044
        %v1084 = vunpack.c.l.b16 %v1045
        %v1085 = vunpack.c.l.b16 %v1046
        %v1086 = vunpack.c.l.b16 %v1047
        %v1087 = vunpack.c.l.b16 %v1048
        %v1088 = vunpack.c.l.b16 %v1049
        %v1089 = vunpack.c.l.b16 %v1050
        %v1090 = vunpack.c.l.b16 %v1051
        %v1091 = vunpack.c.l.b16 %v1052
        %v1092 = vunpack.c.l.b16 %v1053
        %v1093 = vunpack.c.l.b16 %v1054
        %v1094 = vunpack.c.l.b16 %v1055
        %v1095 = vpack.c.b16 %v1080, %v1079
        %v1096 = vpack.c.b16 %v1082, %v1081
        %v1097 = vpack.c.b16 %v1084, %v1083
        %v1098 = vpack.c.b16 %v1086, %v1085
        %v1099 = vpack.c.b16 %v1088, %v1087
        %v1100 = vpack.c.b16 %v1090, %v1089
        %v1101 = vpack.c.b16 %v1092, %v1091
        %v1102 = vpack.c.b16 %v1094, %v1093
        %1111 = vmatprep.subr.bf16.mxu0 0
        %1112 = vmatpush1.bf16.msra.mxu0 %v1095
        %1113 = vmatprep.subr.bf16.mxu0 0
        %1114 = vmatpush1.bf16.msra.mxu0 %v1096
        %1115 = vmatprep.subr.bf16.mxu0 0
        %1116 = vmatpush1.bf16.msra.mxu0 %v1097
        %1117 = vmatprep.subr.bf16.mxu0 0
        %1118 = vmatpush1.bf16.msra.mxu0 %v1098
        %1119 = vmatprep.subr.bf16.mxu0 0
        %1120 = vmatpush1.bf16.msra.mxu0 %v1099
        %1121 = vmatprep.subr.bf16.mxu0 0
        %1122 = vmatpush1.bf16.msra.mxu0 %v1100
        %1123 = vmatprep.subr.bf16.mxu0 0
        %1124 = vmatpush1.bf16.msra.mxu0 %v1101
        %1125 = vmatprep.subr.bf16.mxu0 0
        %1126 = vmatpush1.bf16.msra.mxu0 %v1102
        %1127 = vmatprep.subr.bf16.mxu0 0
        %1128 = vmatpush1.bf16.msra.mxu0 0
        %1129 = vmatprep.subr.bf16.mxu0 0
        %1130 = vmatpush1.bf16.msra.mxu0 0
        %1131 = vmatprep.subr.bf16.mxu0 0
        %1132 = vmatpush1.bf16.msra.mxu0 0
        %1133 = vmatprep.subr.bf16.mxu0 0
        %1134 = vmatpush1.bf16.msra.mxu0 0
        %1135 = vmatprep.subr.bf16.mxu0 0
        %1136 = vmatpush1.bf16.msra.mxu0 0
        %1137 = vmatprep.subr.bf16.mxu0 0
        %1138 = vmatpush1.bf16.msra.mxu0 0
        %1139 = vmatprep.subr.bf16.mxu0 0
        %1140 = vmatpush1.bf16.msra.mxu0 0
        %1141 = vmatprep.subr.bf16.mxu0 0
        %1142 = vmatpush1.bf16.msra.mxu0 0
        %1143 = vmatprep.mubr.bf16.mxu0 0
        %1144 = vmatmul.mubr.bf16.gmra.mrb[0].mxu0 %v1039
        %v1145 = vpop.f32.mrb[0].mxu0
        %v1146 = vadd.f32 %v1061, %v1145
        %v1147 = vpop.f32.mrb[0].mxu0
        %v1148 = vpop.f32.mrb[0].mxu0
        %v1149 = vadd.f32 %v1061, %v1148
        %v1150 = vpop.f32.mrb[0].mxu0
        %1151 = vdwg.mxu0
        %v1152 = vsel %vm611, %v1146, 0.0
        %1153 = vadd.xlane.f32.xlu0 %v1152
        %v1154 = vpop.xlane.xlu0 %1153
        %v1155 = vsel %vm611, %v1149, 0.0
        %1156 = vadd.xlane.f32.xlu0 %v1155
        %v1157 = vpop.xlane.xlu0 %1156
        %v1158 = vrcp.pop 32.0
        %v1159 = vmul.f32 %v1154, %v1158
        %v1160 = vmul.f32 %v1157, %v1158
        %v1161 = vsub.f32 %v1146, %v1159
        %v1162 = vsub.f32 %v1149, %v1160
        %v1163 = vmul.f32 %v1161, %v1161
        %v1164 = vmul.f32 %v1162, %v1162
        %v1165 = vsel %vm611, %v1163, 0.0
        %1166 = vadd.xlane.f32.xlu0 %v1165
        %v1167 = vpop.xlane.xlu0 %1166
        %v1168 = vsel %vm611, %v1164, 0.0
        %1169 = vadd.xlane.f32.xlu0 %v1168
        %v1170 = vpop.xlane.xlu0 %1169
        %v1171 = vmul.f32 %v1167, %v1158
        %v1172 = vmul.f32 %v1170, %v1158
        %v1173 = vadd.f32 %v1171, 1e-05
        %v1174 = vadd.f32 %v1172, 1e-05
        %v1175 = vrsqrt.pop %v1173
        %v1176 = vrsqrt.pop %v1174
        %v1177 = vmul.f32 %v1161, %v1175
        %v1178 = vmul.f32 %v1162, %v1176
        %v1179 = vld [vmem:[%s13] sm:$0x1]
        %v1181 = vlaneseq
        %v1182 = vshrl.u32 %v1181, 7
        %v1183 = vsub.s32 0, %v1182
        %v1184 = vrot.slane %v1179, %v1183
        %v1186 = vmul.f32 %v1177, %v1184
        %v1187 = vmul.f32 %v1178, %v1184
        %v1188 = vld [vmem:[%s14] sm:$0x1]
        %v1190 = vlaneseq
        %v1191 = vshrl.u32 %v1190, 7
        %v1192 = vsub.s32 0, %v1191
        %v1193 = vrot.slane %v1188, %v1192
        %v1195 = vadd.f32 %v1186, %v1193
        %v1196 = vadd.f32 %v1187, %v1193
        %1197 = vst.msk [vmem:[%s578] sm:$0xff] %vm611, %v1195
        %1198 = vst.msk [vmem:[%s578 + $0x8] sm:$0xff] %vm611, %v1196
        %v1199 = vld [vmem:[%s572] sm:$0xf]
        %v1200 = vld [vmem:[%s572 + $0x4] sm:$0xf]
        %v1201 = vunpack.c.l.bf16 %v1199
        %v1202 = vunpack.c.l.bf16 %v1200
        %v1203 = vadd.f32 %v1195, %v1201
        %v1204 = vadd.f32 %v1196, %v1202
        %v1205 = vpack.c.bf16 %v1204, %v1203
        %v1207 = vunpack.c.l.b16 %v1205
        %v1208 = vunpack.c.h.b16 %v1205
        %v1209 = vpack.c.b16 %v1207, %v1207
        %v1210 = vpack.c.b16 %v1208, %v1208
        %vm1213 = vcmask 257024
        %1214 = vst.msk [vmem:[%s555] sm:$0xf] %vm1213, %v1209
        %1215 = vst.msk [vmem:[%s555 + $0x4] sm:$0xf] %vm1213, %v1210
        %s1216 = smul.u32 2, %s31
        %p1217 = scmp.lt.s32.totalorder %s1216, 3
        %s1218 = scalar_select %p1217, %s1216, 3
        %s1219 = smul.addr %s1218, 8
        %s1220 = scalar_lea.vmem %s15, %s1219
        %s1221 = sand.u32 %s395, 1
        %s1222 = scalar_lea.sflag [#allocation3], %s1221
        %s1223 = sand.u32 %s395, 1
        %s1224 = smul.addr %s1223, 8
        %s1225 = scalar_lea.vmem [#allocation2], %s1224
        // Predicated region
        $region81: #{gns_forward.15} parent=79 // pred_check
          %p1226 = pneg %p379
        $region82: #{gns_forward.15} parent=79 // pred_check_branch
          %1228 = sbr.rel (%p1226) target = $region84
        $region83: #{gns_forward.15} parent=79 // pred_region
          %s1229 = smul.u32 2, %s31
        $region84: #{gns_forward.15} parent=79 // pred_fallthru
          _
        // Predicated region
        $region85: #{gns_forward.15} parent=79 // pred_check
          %p1230 = pneg %p405
        $region86: #{gns_forward.15} parent=79 // pred_check_branch
          %1232 = sbr.rel (%p1230) target = $region88
        $region87: #{gns_forward.15} parent=79 // pred_region
          %s1233 = smul.u32 2, %s31
          %s1235 = ssub.s32 128, 128
          %1236 = vsyncadd %s1222, %s1235
          %s1237 = smul.addr %s1233, 64
          %s1238 = scalar_lea.hbm %s16, %s1237
          %s1239 = sshll.u32 %s1225, 4
          %s1240 = int_to_ptr.vmem [resolvable:$true] %s1239
          %1245 = dma.vmem_to_hbm [thread:$0]  %s1240, 128, %s1238, %s1222, 64, 64, 4
        $region88: #{gns_forward.15} parent=79 // pred_fallthru
          _
      $region80: #{gns_forward.15} parent=5 // pred_fallthru
        _
      %p1246 = scmp.le.s32.totalorder 2, %s26
      // Predicated region
      $region89: #{gns_forward.15} parent=5 // pred_check
        %p1247 = pneg %p1246
      $region90: #{gns_forward.15} parent=5 // pred_check_branch
        %1249 = sbr.rel (%p1247) target = $region92
      $region91: #{gns_forward.15} parent=5 // pred_region
        %s1250 = ssub.s32 %s26, 2
        // Predicated region
        $region93: #{gns_forward.15} parent=91 // pred_check
          %p1251 = pneg %p385
        $region94: #{gns_forward.15} parent=91 // pred_check_branch
          %1253 = sbr.rel (%p1251) target = $region96
        $region95: #{gns_forward.15} parent=91 // pred_region
          %s1254 = smul.u32 2, %s32
          %p1255 = scmp.lt.s32.totalorder %s1254, 3
          %s1256 = scalar_select %p1255, %s1254, 3
          %s1257 = smul.addr %s1256, 8
          %s1258 = scalar_lea.vmem %s15, %s1257
        $region96: #{gns_forward.15} parent=91 // pred_fallthru
          _
        // Predicated region
        $region97: #{gns_forward.15} parent=91 // pred_check
          %p1259 = pneg %p411
        $region98: #{gns_forward.15} parent=91 // pred_check_branch
          %1261 = sbr.rel (%p1259) target = $region100
        $region99: #{gns_forward.15} parent=91 // pred_region
          %s1262 = sand.u32 %s396, 1
          %s1263 = scalar_lea.sflag [#allocation3], %s1262
          %s1264 = sand.u32 %s396, 1
          %s1265 = smul.addr %s1264, 8
          %s1266 = scalar_lea.vmem [#allocation2], %s1265
          %1267 = dma.done %s1263, 128
        $region100: #{gns_forward.15} parent=91 // pred_fallthru
          _
      $region92: #{gns_forward.15} parent=5 // pred_fallthru
        _
    $region6: #{gns_forward.15} parent=1 // loop_footer
      %s30 = sadd.s32 1, %s26
    $region7: #{gns_forward.15} parent=1 // loop_footer_branch
      %25 = sbr.rel target = $region3
    $region8: #{gns_forward.15} parent=1 // loop_exit
      _
    %1268 = vsyncpa [#allocation3], 1
    %s1269 = scalar_lea.sflag [#allocation3], 1
    %1270 = vsyncpa %s1269, 1

</llo_original>
